<compile_context>
chip_gen: v5e
topology: v5e:2x2
jax: 0.10.0
libtpu: 0.0.40
codegen_flags: <defaults>
</compile_context>

<pallas_src>
import numpy as np
import jax
import jax.numpy as jnp
from jax import lax
from jax.experimental import pallas as pl
from jax.experimental.pallas import tpu as pltpu

EPS = 1e-5


# ----------------------------------------------------------------------------
# Fused conv kernel:  relu( conv3x3(x1) [+ conv3x3(resize(x2))] [+ conv1x1(xid)]
#                           + bias )
# ----------------------------------------------------------------------------
def _make_fused_kernel(H, W, C1, C2, Cid, x2_mode, mxu_dtype):
    Cc = C1 + C2
    HW = H * W

    def kernel(*refs):
        refs = list(refs)
        x1_ref = refs.pop(0)
        x2_ref = refs.pop(0) if C2 else None
        xid_ref = refs.pop(0) if Cid else None
        w_ref = refs.pop(0)                            # (9, Cc, Co) per-tap weights
        wid_ref = refs.pop(0) if Cid else None         # (Cid, Co)
        b_ref, o_ref, xp_ref = refs
        Co = o_ref.shape[3]

        # ---- zero ONLY the 1-pixel border of the padded tile, every step ----
        zrow = jnp.zeros((1, W + 2, Cc), mxu_dtype)
        zcol = jnp.zeros((H, 1, Cc), mxu_dtype)
        xp_ref[0:1, :, :] = zrow
        xp_ref[H + 1:H + 2, :, :] = zrow
        xp_ref[1:H + 1, 0:1, :] = zcol
        xp_ref[1:H + 1, W + 1:W + 2, :] = zcol

        # ---- interior: x1 branch, plus the fused-resampled x2 branch ----
        xp_ref[1:H + 1, 1:W + 1, 0:C1] = x1_ref[0].astype(mxu_dtype)

        if C2:
            if x2_mode == "same":
                x2v = x2_ref[0]
            elif x2_mode == "up":
                # fused nearest-neighbour 2x upsample of the low-res branch
                _, Hl, Wl, _ = x2_ref.shape
                v = x2_ref[0]                                           # (Hl, Wl, C2)
                v = jnp.broadcast_to(v[:, None, :, :], (Hl, 2, Wl, C2)).reshape(H, Wl, C2)
                x2v = jnp.broadcast_to(v[:, :, None, :], (H, Wl, 2, C2)).reshape(H, W, C2)
            elif x2_mode == "pool":
                # fused 2x2 average pool of the high-res branch (strided VMEM reads)
                x2v = (x2_ref[0, pl.ds(0, H, 2), pl.ds(0, W, 2), :] +
                       x2_ref[0, pl.ds(0, H, 2), pl.ds(1, W, 2), :] +
                       x2_ref[0, pl.ds(1, H, 2), pl.ds(0, W, 2), :] +
                       x2_ref[0, pl.ds(1, H, 2), pl.ds(1, W, 2), :]) * 0.25
            else:
                raise ValueError(x2_mode)
            xp_ref[1:H + 1, 1:W + 1, C1:Cc] = x2v.astype(mxu_dtype)

        # ---- 9 accumulate matmuls straight from the shifted padded windows.
        #      No (HW, 9*Cc) im2col slab -> no col store + reload traffic; the
        #      f32 accumulator lives in vregs (16 vregs at these shapes) and the
        #      back-to-back dots map onto MRF/MRB accumulation on the MXU. ----
        acc = jnp.zeros((HW, Co), jnp.float32)
        for dy in range(3):
            for dx in range(3):
                win = xp_ref[dy:dy + H, dx:dx + W, :].reshape(HW, Cc)
                acc = acc + jnp.dot(win, w_ref[dy * 3 + dx],
                                    preferred_element_type=jnp.float32)
        if Cid:
            # 1x1 residual: one extra small-K accumulate matmul (no dead taps)
            acc = acc + jnp.dot(xid_ref[0].reshape(HW, Cid).astype(mxu_dtype),
                                wid_ref[...],
                                preferred_element_type=jnp.float32)

        # ---- f32 epilogue: bias + ReLU, cast, store ----
        acc = jnp.maximum(acc + b_ref[...], 0.0)
        o_ref[0] = acc.reshape(H, W, Co).astype(o_ref.dtype)

    return kernel


def fused_conv_bn_relu(x1, w1_taps, bias, *, x2=None, w2_taps=None,
                       x2_mode="same", xid=None, wid=None,
                       mxu_dtype=jnp.bfloat16, out_dtype=jnp.float32):
    """relu( conv3x3(x1,w1) [+ conv3x3(resize(x2),w2)] [+ conv1x1(xid,wid)] + bias ).

    x*: NHWC, unpadded.  w*_taps: (9, C, Co) already BN-scaled.  wid: (Cid, Co).
    bias: (Co,) fully folded.  x2_mode: "same" | "up" (nearest 2x) | "pool" (avg 2x2).
    """
    N, H, W, C1 = x1.shape
    Co = w1_taps.shape[-1]
    C2 = 0 if x2 is None else x2.shape[-1]
    Cid = 0 if xid is None else xid.shape[-1]
    Cc = C1 + C2

    # Per-tap weights (9, Cc, Co): x2-branch channels appended after x1's so the
    # rows match the combined padded-tile channel layout.
    wcat = w1_taps if x2 is None else jnp.concatenate([w1_taps, w2_taps], axis=1)
    w_all = wcat.astype(mxu_dtype)
    b_all = jnp.asarray(bias, jnp.float32).reshape(1, Co)

    inputs = [x1]
    in_specs = [pl.BlockSpec((1, H, W, C1), lambda n: (n, 0, 0, 0))]
    if x2 is not None:
        H2, W2 = x2.shape[1], x2.shape[2]
        in_specs.append(pl.BlockSpec((1, H2, W2, C2), lambda n: (n, 0, 0, 0)))
        inputs.append(x2)
    if xid is not None:
        in_specs.append(pl.BlockSpec((1, H, W, Cid), lambda n: (n, 0, 0, 0)))
        inputs.append(xid)
    in_specs.append(pl.BlockSpec((9, Cc, Co), lambda n: (0, 0, 0)))
    inputs.append(w_all)
    if xid is not None:
        in_specs.append(pl.BlockSpec((Cid, Co), lambda n: (0, 0)))
        inputs.append(jnp.asarray(wid).astype(mxu_dtype))
    in_specs.append(pl.BlockSpec((1, Co), lambda n: (0, 0)))
    inputs.append(b_all)

    flops = 2 * N * H * W * (9 * Cc + Cid) * Co
    bytes_accessed = sum(int(np.prod(a.shape)) * np.dtype(a.dtype).itemsize
                         for a in inputs)
    bytes_accessed += N * H * W * Co * np.dtype(out_dtype).itemsize

    kernel = _make_fused_kernel(H, W, C1, C2, Cid, x2_mode, mxu_dtype)
    return pl.pallas_call(
        kernel,
        out_shape=jax.ShapeDtypeStruct((N, H, W, Co), out_dtype),
        grid=(N,),
        in_specs=in_specs,
        out_specs=pl.BlockSpec((1, H, W, Co), lambda n: (n, 0, 0, 0)),
        scratch_shapes=[pltpu.VMEM((H + 2, W + 2, Cc), mxu_dtype)],  # padded tile
        compiler_params=pltpu.CompilerParams(dimension_semantics=("parallel",)),
        cost_estimate=pl.CostEstimate(flops=flops, transcendentals=0,
                                      bytes_accessed=bytes_accessed),
    )(*inputs)


# ----------------------------------------------------------------------------
# JAX glue (reference + portability fallback) and parameter handling
# ----------------------------------------------------------------------------
def avg_pool2(x):  # NHWC, kernel (2,2), stride 2
    N, H, W, C = x.shape
    return x.reshape(N, H // 2, 2, W // 2, 2, C).mean(axis=(2, 4))


def upsample2(x):  # NHWC, nearest, scale 2
    return jnp.repeat(jnp.repeat(x, 2, axis=1), 2, axis=2)


def _taps(w):
    """(Co, Ci, 3, 3) -> (9, Ci, Co); tap index = ky*3 + kx."""
    co, ci = w.shape[0], w.shape[1]
    return jnp.transpose(w, (2, 3, 1, 0)).reshape(9, ci, co)


def _bn_fold(bn):
    g, b, m, v = bn
    s = g / jnp.sqrt(v + EPS)
    return s, b - s * m


def _conv_init(key, cin, cout, k):
    wk, bk = jax.random.split(key)
    w = jax.random.normal(wk, (cout, cin, k, k), jnp.float32) / np.sqrt(cin * k * k)
    b = 0.1 * jax.random.normal(bk, (cout,), jnp.float32)
    return w, b


def _bn_init(key, c):
    k1, k2, k3, k4 = jax.random.split(key, 4)
    gamma = 1.0 + 0.1 * jax.random.normal(k1, (c,), jnp.float32)
    beta = 0.1 * jax.random.normal(k2, (c,), jnp.float32)
    mean = 0.1 * jax.random.normal(k3, (c,), jnp.float32)
    var = 1.0 + 0.1 * jax.random.uniform(k4, (c,), jnp.float32)
    return gamma, beta, mean, var


def init_params(key, in_hc, in_lc, out_c, main):
    mid_c = min(in_hc, in_lc)
    keys = iter(jax.random.split(key, 32))
    p = {}
    p['h2h_0'] = _conv_init(next(keys), in_hc, mid_c, 3)
    p['l2l_0'] = _conv_init(next(keys), in_lc, mid_c, 3)
    p['bnh_0'] = _bn_init(next(keys), mid_c)
    p['bnl_0'] = _bn_init(next(keys), mid_c)
    p['h2h_1'] = _conv_init(next(keys), mid_c, mid_c, 3)
    p['h2l_1'] = _conv_init(next(keys), mid_c, mid_c, 3)
    p['l2h_1'] = _conv_init(next(keys), mid_c, mid_c, 3)
    p['l2l_1'] = _conv_init(next(keys), mid_c, mid_c, 3)
    p['bnl_1'] = _bn_init(next(keys), mid_c)
    p['bnh_1'] = _bn_init(next(keys), mid_c)
    if main == 0:
        p['h2h_2'] = _conv_init(next(keys), mid_c, mid_c, 3)
        p['l2h_2'] = _conv_init(next(keys), mid_c, mid_c, 3)
        p['bnh_2'] = _bn_init(next(keys), mid_c)
        p['h2h_3'] = _conv_init(next(keys), mid_c, out_c, 3)
        p['bnh_3'] = _bn_init(next(keys), out_c)
        p['identity'] = _conv_init(next(keys), in_hc, out_c, 1)
    elif main == 1:
        p['h2l_2'] = _conv_init(next(keys), mid_c, mid_c, 3)
        p['l2l_2'] = _conv_init(next(keys), mid_c, mid_c, 3)
        p['bnl_2'] = _bn_init(next(keys), mid_c)
        p['l2l_3'] = _conv_init(next(keys), mid_c, out_c, 3)
        p['bnl_3'] = _bn_init(next(keys), out_c)
        p['identity'] = _conv_init(next(keys), in_lc, out_c, 1)
    else:
        raise NotImplementedError
    return p


# ----------------------------------------------------------------------------
# conv_2nV1 forward (Pallas)
# ----------------------------------------------------------------------------
def conv_2nV1_forward(in_h, in_l, p, main=0, mxu_dtype=jnp.bfloat16,
                      fuse_resample=True):
    """in_h: (N, H, W, in_hc) NHWC; in_l: (N, H/2, W/2, in_lc) NHWC."""
    # Inter-stage activations ride in the MXU operand dtype (bf16 by default),
    # halving HBM traffic for the 5 intermediate tensors; the final stage and
    # the f32 MXU mode keep f32 end to end.
    inter_dtype = mxu_dtype

    def single(x, conv, bn):
        s, t = _bn_fold(p[bn]); w, b = p[conv]
        return fused_conv_bn_relu(x, _taps(w) * s, b * s + t,
                                  mxu_dtype=mxu_dtype, out_dtype=inter_dtype)

    def dual(x1, conv1, x2, conv2, bn, x2_mode):
        s, t = _bn_fold(p[bn])
        w1, b1 = p[conv1]; w2, b2 = p[conv2]
        if not fuse_resample and x2_mode != "same":
            x2 = upsample2(x2) if x2_mode == "up" else avg_pool2(x2)
            x2_mode = "same"
        return fused_conv_bn_relu(x1, _taps(w1) * s, (b1 + b2) * s + t,
                                  x2=x2, w2_taps=_taps(w2) * s, x2_mode=x2_mode,
                                  mxu_dtype=mxu_dtype, out_dtype=inter_dtype)

    def final(x, conv, bn, x_id):
        s, t = _bn_fold(p[bn]); w, b = p[conv]; wi, bi = p['identity']
        wid = jnp.transpose(wi[:, :, 0, 0], (1, 0))           # (Cid, Co)
        return fused_conv_bn_relu(x, _taps(w) * s, b * s + t + bi,
                                  xid=x_id, wid=wid, mxu_dtype=mxu_dtype,
                                  out_dtype=jnp.float32)

    # ---- stage 0 ----
    h = single(in_h, 'h2h_0', 'bnh_0')
    l = single(in_l, 'l2l_0', 'bnl_0')
    # ---- stage 1: cross-scale exchange (pool / upsample fused in-kernel) ----
    h_n = dual(h, 'h2h_1', l, 'l2h_1', 'bnh_1', "up")
    l_n = dual(l, 'l2l_1', h, 'h2l_1', 'bnl_1', "pool")
    # ---- stage 2 + residual ----
    if main == 0:
        h_fuse = dual(h_n, 'h2h_2', l_n, 'l2h_2', 'bnh_2', "up")
        return final(h_fuse, 'h2h_3', 'bnh_3', in_h)
    elif main == 1:
        l_fuse = dual(l_n, 'l2l_2', h_n, 'h2l_2', 'bnl_2', "pool")
        return final(l_fuse, 'l2l_3', 'bnl_3', in_l)
    raise NotImplementedError


# ----------------------------------------------------------------------------
# Pure-JAX reference (mirrors the PyTorch forward, eval-mode BN)
# ----------------------------------------------------------------------------
def conv_2nV1_reference(in_h, in_l, p, main=0):
    def conv(x, wb, pad):
        w, b = wb
        y = lax.conv_general_dilated(
            x, jnp.transpose(w, (2, 3, 1, 0)), (1, 1),
            [(pad, pad), (pad, pad)],
            dimension_numbers=('NHWC', 'HWIO', 'NHWC'),
            precision=lax.Precision.HIGHEST)
        return y + b

    def bn(x, bnp):
        g, b, m, v = bnp
        return (x - m) * g / jnp.sqrt(v + EPS) + b

    relu = lambda x: jnp.maximum(x, 0.0)

    h = relu(bn(conv(in_h, p['h2h_0'], 1), p['bnh_0']))
    l = relu(bn(conv(in_l, p['l2l_0'], 1), p['bnl_0']))
    h2h = conv(h, p['h2h_1'], 1)
    h2l = conv(avg_pool2(h), p['h2l_1'], 1)
    l2l = conv(l, p['l2l_1'], 1)
    l2h = conv(upsample2(l), p['l2h_1'], 1)
    h = relu(bn(h2h + l2h, p['bnh_1']))
    l = relu(bn(l2l + h2l, p['bnl_1']))
    if main == 0:
        h2h = conv(h, p['h2h_2'], 1)
        l2h = conv(upsample2(l), p['l2h_2'], 1)
        h_fuse = relu(bn(h2h + l2h, p['bnh_2']))
        out = relu(bn(conv(h_fuse, p['h2h_3'], 1), p['bnh_3']) +
                   conv(in_h, p['identity'], 0))
    elif main == 1:
        h2l = conv(avg_pool2(h), p['h2l_2'], 1)
        l2l = conv(l, p['l2l_2'], 1)
        l_fuse = relu(bn(h2l + l2l, p['bnl_2']))
        out = relu(bn(conv(l_fuse, p['l2l_3'], 1), p['bnl_3']) +
                   conv(in_l, p['identity'], 0))
    else:
        raise NotImplementedError
    return out


# ----------------------------------------------------------------------------
if __name__ == "__main__":
    key = jax.random.PRNGKey(0)
    k_h, k_l, k_p0, k_p1 = jax.random.split(key, 4)

    # Shapes consistent with the module (mid_c = min(in_hc, in_lc); the low-res
    # branch has half the spatial size).  Channels kept >= 64 so the lane (last)
    # dim of every tile / store is reasonably dense.
    N, in_hc, in_lc, out_c = 2, 64, 128, 64
    H, W = 16, 16

    # Inputs built in PyTorch NCHW convention, transposed to NHWC for the kernels.
    in_h_nchw = jax.random.normal(k_h, (N, in_hc, H, W), jnp.float32)
    in_l_nchw = jax.random.normal(k_l, (N, in_lc, H // 2, W // 2), jnp.float32)
    in_h = jnp.transpose(in_h_nchw, (0, 2, 3, 1))
    in_l = jnp.transpose(in_l_nchw, (0, 2, 3, 1))

    ok = True
    for main, pkey in ((0, k_p0), (1, k_p1)):
        params = init_params(pkey, in_hc, in_lc, out_c, main)
        ref = jax.block_until_ready(conv_2nV1_reference(in_h, in_l, params, main=main))
        scale = 1.0 + float(jnp.max(jnp.abs(ref)))

        def run(**kw):
            try:
                return jax.block_until_ready(
                    conv_2nV1_forward(in_h, in_l, params, main=main, **kw))
            except Exception:
                # Narrow portability fallback: only the fused strided-pool /
                # nearest-upsample reads can hit a Mosaic lowering gap; redo the
                # resampling in XLA and keep everything else identical.  The
                # numeric assertion below still runs either way, so kernel bugs
                # are not masked.
                return jax.block_until_ready(
                    conv_2nV1_forward(in_h, in_l, params, main=main,
                                      fuse_resample=False, **kw))

        # f32 MXU path: should match the HIGHEST-precision conv reference closely.
        out32 = run(mxu_dtype=jnp.float32)
        err = float(jnp.max(jnp.abs(out32 - ref)))
        if not (np.isfinite(err) and err < 5e-3):
            ok = False
            print(f"main={main}: f32 max abs err {err}")

        # Default path: bf16 MXU operands + bf16 inter-stage activations, f32
        # accumulation and epilogue.  Sanity tolerance: bf16 rounding compounds
        # over the 4-conv chain.
        out16 = run()
        err16 = float(jnp.max(jnp.abs(out16 - ref)))
        if not (np.isfinite(err16) and err16 < 0.15 * scale):
            ok = False
            print(f"main={main}: bf16 max abs err {err16}")

    if ok:
        print("KERNEL_OK")
</pallas_src>

<mosaic_0001>
module attributes {stable_mosaic.version = 11 : i64} {
  func.func @kernel(%arg0: i32, %arg1: memref<1x16x16x64xf32, #tpu.memory_space<vmem>>, %arg2: memref<9x64x64xf32, #tpu.memory_space<vmem>>, %arg3: memref<1x64xf32, #tpu.memory_space<vmem>>, %arg4: memref<1x16x16x64xf32, #tpu.memory_space<vmem>>, %arg5: memref<18x18x64xf32, #tpu.memory_space<vmem>>) attributes {dimension_semantics = [#tpu.dimension_semantics<parallel>], iteration_bounds = array<i64: 2>, scalar_prefetch = 0 : i64, scratch_operands = 1 : i64, tpu.core_type = #tpu.core_type<tc>, window_params = [{transform_indices = @transform_0, window_bounds = array<i64: 1, 16, 16, 64>}, {pipeline_mode = #tpu.pipeline_mode<synchronous>, transform_indices = @transform_1, window_bounds = array<i64: 9, 64, 64>}, {pipeline_mode = #tpu.pipeline_mode<synchronous>, transform_indices = @transform_2, window_bounds = array<i64: 1, 64>}, {transform_indices = @transform_3, window_bounds = array<i64: 1, 16, 16, 64>}]} {
    %cst = arith.constant 0.000000e+00 : f32
    %0 = vector.broadcast %cst : f32 to vector<1x18x64xf32>
    %cst_0 = arith.constant 0.000000e+00 : f32
    %1 = vector.broadcast %cst_0 : f32 to vector<16x1x64xf32>
    %c0 = arith.constant 0 : index
    %c0_1 = arith.constant 0 : index
    %c0_2 = arith.constant 0 : index
    %2 = vector.load %arg5[%c0, %c0_1, %c0_2] : memref<18x18x64xf32, #tpu.memory_space<vmem>>, vector<1x18x64xf32>
    tpu.vector_store %arg5[%c0, %c0_1, %c0_2], %0 {strides = array<i32>} : memref<18x18x64xf32, #tpu.memory_space<vmem>>, vector<1x18x64xf32>,
    %c17 = arith.constant 17 : index
    %c0_3 = arith.constant 0 : index
    %c0_4 = arith.constant 0 : index
    %3 = vector.load %arg5[%c17, %c0_3, %c0_4] : memref<18x18x64xf32, #tpu.memory_space<vmem>>, vector<1x18x64xf32>
    tpu.vector_store %arg5[%c17, %c0_3, %c0_4], %0 {strides = array<i32>} : memref<18x18x64xf32, #tpu.memory_space<vmem>>, vector<1x18x64xf32>,
    %c1 = arith.constant 1 : index
    %c0_5 = arith.constant 0 : index
    %c0_6 = arith.constant 0 : index
    %4 = vector.load %arg5[%c1, %c0_5, %c0_6] : memref<18x18x64xf32, #tpu.memory_space<vmem>>, vector<16x1x64xf32>
    tpu.vector_store %arg5[%c1, %c0_5, %c0_6], %1 {strides = array<i32>} : memref<18x18x64xf32, #tpu.memory_space<vmem>>, vector<16x1x64xf32>,
    %c1_7 = arith.constant 1 : index
    %c17_8 = arith.constant 17 : index
    %c0_9 = arith.constant 0 : index
    %5 = vector.load %arg5[%c1_7, %c17_8, %c0_9] : memref<18x18x64xf32, #tpu.memory_space<vmem>>, vector<16x1x64xf32>
    tpu.vector_store %arg5[%c1_7, %c17_8, %c0_9], %1 {strides = array<i32>} : memref<18x18x64xf32, #tpu.memory_space<vmem>>, vector<16x1x64xf32>,
    %c0_10 = arith.constant 0 : index
    %c0_11 = arith.constant 0 : index
    %c0_12 = arith.constant 0 : index
    %c0_13 = arith.constant 0 : index
    %6 = vector.load %arg1[%c0_10, %c0_11, %c0_12, %c0_13] : memref<1x16x16x64xf32, #tpu.memory_space<vmem>>, vector<1x16x16x64xf32>
    %7 = vector.shape_cast %6 : vector<1x16x16x64xf32> to vector<16x16x64xf32>
    %c1_14 = arith.constant 1 : index
    %c1_15 = arith.constant 1 : index
    %c0_16 = arith.constant 0 : index
    %8 = vector.load %arg5[%c1_14, %c1_15, %c0_16] : memref<18x18x64xf32, #tpu.memory_space<vmem>>, vector<16x16x64xf32>
    tpu.vector_store %arg5[%c1_14, %c1_15, %c0_16], %7 {strides = array<i32>} : memref<18x18x64xf32, #tpu.memory_space<vmem>>, vector<16x16x64xf32>,
    %cst_17 = arith.constant 0.000000e+00 : f32
    %9 = vector.broadcast %cst_17 : f32 to vector<256x64xf32>
    %c0_18 = arith.constant 0 : index
    %c0_19 = arith.constant 0 : index
    %c0_20 = arith.constant 0 : index
    %10 = vector.load %arg5[%c0_18, %c0_19, %c0_20] : memref<18x18x64xf32, #tpu.memory_space<vmem>>, vector<16x16x64xf32>
    %11 = vector.shape_cast %10 : vector<16x16x64xf32> to vector<256x64xf32>
    %c0_21 = arith.constant 0 : index
    %c0_22 = arith.constant 0 : index
    %c0_23 = arith.constant 0 : index
    %12 = vector.load %arg2[%c0_21, %c0_22, %c0_23] : memref<9x64x64xf32, #tpu.memory_space<vmem>>, vector<1x64x64xf32>
    %13 = vector.shape_cast %12 : vector<1x64x64xf32> to vector<64x64xf32>
    %cst_24 = arith.constant dense<0.000000e+00> : vector<256x64xf32>
    %14 = tpu.matmul %11, %13, %cst_24 {dimension_numbers = #tpu.dot_dimension_numbers<[1], [0], [0], [1], [0, 0, 1, 1], [], []>} : vector<256x64xf32>, vector<64x64xf32>, vector<256x64xf32> -> vector<256x64xf32>
    %15 = arith.addf %9, %14 : vector<256x64xf32>
    %c0_25 = arith.constant 0 : index
    %c1_26 = arith.constant 1 : index
    %c0_27 = arith.constant 0 : index
    %16 = vector.load %arg5[%c0_25, %c1_26, %c0_27] : memref<18x18x64xf32, #tpu.memory_space<vmem>>, vector<16x16x64xf32>
    %17 = vector.shape_cast %16 : vector<16x16x64xf32> to vector<256x64xf32>
    %c1_28 = arith.constant 1 : index
    %c0_29 = arith.constant 0 : index
    %c0_30 = arith.constant 0 : index
    %18 = vector.load %arg2[%c1_28, %c0_29, %c0_30] : memref<9x64x64xf32, #tpu.memory_space<vmem>>, vector<1x64x64xf32>
    %19 = vector.shape_cast %18 : vector<1x64x64xf32> to vector<64x64xf32>
    %cst_31 = arith.constant dense<0.000000e+00> : vector<256x64xf32>
    %20 = tpu.matmul %17, %19, %cst_31 {dimension_numbers = #tpu.dot_dimension_numbers<[1], [0], [0], [1], [0, 0, 1, 1], [], []>} : vector<256x64xf32>, vector<64x64xf32>, vector<256x64xf32> -> vector<256x64xf32>
    %21 = arith.addf %15, %20 : vector<256x64xf32>
    %c0_32 = arith.constant 0 : index
    %c2 = arith.constant 2 : index
    %c0_33 = arith.constant 0 : index
    %22 = vector.load %arg5[%c0_32, %c2, %c0_33] : memref<18x18x64xf32, #tpu.memory_space<vmem>>, vector<16x16x64xf32>
    %23 = vector.shape_cast %22 : vector<16x16x64xf32> to vector<256x64xf32>
    %c2_34 = arith.constant 2 : index
    %c0_35 = arith.constant 0 : index
    %c0_36 = arith.constant 0 : index
    %24 = vector.load %arg2[%c2_34, %c0_35, %c0_36] : memref<9x64x64xf32, #tpu.memory_space<vmem>>, vector<1x64x64xf32>
    %25 = vector.shape_cast %24 : vector<1x64x64xf32> to vector<64x64xf32>
    %cst_37 = arith.constant dense<0.000000e+00> : vector<256x64xf32>
    %26 = tpu.matmul %23, %25, %cst_37 {dimension_numbers = #tpu.dot_dimension_numbers<[1], [0], [0], [1], [0, 0, 1, 1], [], []>} : vector<256x64xf32>, vector<64x64xf32>, vector<256x64xf32> -> vector<256x64xf32>
    %27 = arith.addf %21, %26 : vector<256x64xf32>
    %c1_38 = arith.constant 1 : index
    %c0_39 = arith.constant 0 : index
    %c0_40 = arith.constant 0 : index
    %28 = vector.load %arg5[%c1_38, %c0_39, %c0_40] : memref<18x18x64xf32, #tpu.memory_space<vmem>>, vector<16x16x64xf32>
    %29 = vector.shape_cast %28 : vector<16x16x64xf32> to vector<256x64xf32>
    %c3 = arith.constant 3 : index
    %c0_41 = arith.constant 0 : index
    %c0_42 = arith.constant 0 : index
    %30 = vector.load %arg2[%c3, %c0_41, %c0_42] : memref<9x64x64xf32, #tpu.memory_space<vmem>>, vector<1x64x64xf32>
    %31 = vector.shape_cast %30 : vector<1x64x64xf32> to vector<64x64xf32>
    %cst_43 = arith.constant dense<0.000000e+00> : vector<256x64xf32>
    %32 = tpu.matmul %29, %31, %cst_43 {dimension_numbers = #tpu.dot_dimension_numbers<[1], [0], [0], [1], [0, 0, 1, 1], [], []>} : vector<256x64xf32>, vector<64x64xf32>, vector<256x64xf32> -> vector<256x64xf32>
    %33 = arith.addf %27, %32 : vector<256x64xf32>
    %c1_44 = arith.constant 1 : index
    %c1_45 = arith.constant 1 : index
    %c0_46 = arith.constant 0 : index
    %34 = vector.load %arg5[%c1_44, %c1_45, %c0_46] : memref<18x18x64xf32, #tpu.memory_space<vmem>>, vector<16x16x64xf32>
    %35 = vector.shape_cast %34 : vector<16x16x64xf32> to vector<256x64xf32>
    %c4 = arith.constant 4 : index
    %c0_47 = arith.constant 0 : index
    %c0_48 = arith.constant 0 : index
    %36 = vector.load %arg2[%c4, %c0_47, %c0_48] : memref<9x64x64xf32, #tpu.memory_space<vmem>>, vector<1x64x64xf32>
    %37 = vector.shape_cast %36 : vector<1x64x64xf32> to vector<64x64xf32>
    %cst_49 = arith.constant dense<0.000000e+00> : vector<256x64xf32>
    %38 = tpu.matmul %35, %37, %cst_49 {dimension_numbers = #tpu.dot_dimension_numbers<[1], [0], [0], [1], [0, 0, 1, 1], [], []>} : vector<256x64xf32>, vector<64x64xf32>, vector<256x64xf32> -> vector<256x64xf32>
    %39 = arith.addf %33, %38 : vector<256x64xf32>
    %c1_50 = arith.constant 1 : index
    %c2_51 = arith.constant 2 : index
    %c0_52 = arith.constant 0 : index
    %40 = vector.load %arg5[%c1_50, %c2_51, %c0_52] : memref<18x18x64xf32, #tpu.memory_space<vmem>>, vector<16x16x64xf32>
    %41 = vector.shape_cast %40 : vector<16x16x64xf32> to vector<256x64xf32>
    %c5 = arith.constant 5 : index
    %c0_53 = arith.constant 0 : index
    %c0_54 = arith.constant 0 : index
    %42 = vector.load %arg2[%c5, %c0_53, %c0_54] : memref<9x64x64xf32, #tpu.memory_space<vmem>>, vector<1x64x64xf32>
    %43 = vector.shape_cast %42 : vector<1x64x64xf32> to vector<64x64xf32>
    %cst_55 = arith.constant dense<0.000000e+00> : vector<256x64xf32>
    %44 = tpu.matmul %41, %43, %cst_55 {dimension_numbers = #tpu.dot_dimension_numbers<[1], [0], [0], [1], [0, 0, 1, 1], [], []>} : vector<256x64xf32>, vector<64x64xf32>, vector<256x64xf32> -> vector<256x64xf32>
    %45 = arith.addf %39, %44 : vector<256x64xf32>
    %c2_56 = arith.constant 2 : index
    %c0_57 = arith.constant 0 : index
    %c0_58 = arith.constant 0 : index
    %46 = vector.load %arg5[%c2_56, %c0_57, %c0_58] : memref<18x18x64xf32, #tpu.memory_space<vmem>>, vector<16x16x64xf32>
    %47 = vector.shape_cast %46 : vector<16x16x64xf32> to vector<256x64xf32>
    %c6 = arith.constant 6 : index
    %c0_59 = arith.constant 0 : index
    %c0_60 = arith.constant 0 : index
    %48 = vector.load %arg2[%c6, %c0_59, %c0_60] : memref<9x64x64xf32, #tpu.memory_space<vmem>>, vector<1x64x64xf32>
    %49 = vector.shape_cast %48 : vector<1x64x64xf32> to vector<64x64xf32>
    %cst_61 = arith.constant dense<0.000000e+00> : vector<256x64xf32>
    %50 = tpu.matmul %47, %49, %cst_61 {dimension_numbers = #tpu.dot_dimension_numbers<[1], [0], [0], [1], [0, 0, 1, 1], [], []>} : vector<256x64xf32>, vector<64x64xf32>, vector<256x64xf32> -> vector<256x64xf32>
    %51 = arith.addf %45, %50 : vector<256x64xf32>
    %c2_62 = arith.constant 2 : index
    %c1_63 = arith.constant 1 : index
    %c0_64 = arith.constant 0 : index
    %52 = vector.load %arg5[%c2_62, %c1_63, %c0_64] : memref<18x18x64xf32, #tpu.memory_space<vmem>>, vector<16x16x64xf32>
    %53 = vector.shape_cast %52 : vector<16x16x64xf32> to vector<256x64xf32>
    %c7 = arith.constant 7 : index
    %c0_65 = arith.constant 0 : index
    %c0_66 = arith.constant 0 : index
    %54 = vector.load %arg2[%c7, %c0_65, %c0_66] : memref<9x64x64xf32, #tpu.memory_space<vmem>>, vector<1x64x64xf32>
    %55 = vector.shape_cast %54 : vector<1x64x64xf32> to vector<64x64xf32>
    %cst_67 = arith.constant dense<0.000000e+00> : vector<256x64xf32>
    %56 = tpu.matmul %53, %55, %cst_67 {dimension_numbers = #tpu.dot_dimension_numbers<[1], [0], [0], [1], [0, 0, 1, 1], [], []>} : vector<256x64xf32>, vector<64x64xf32>, vector<256x64xf32> -> vector<256x64xf32>
    %57 = arith.addf %51, %56 : vector<256x64xf32>
    %c2_68 = arith.constant 2 : index
    %c2_69 = arith.constant 2 : index
    %c0_70 = arith.constant 0 : index
    %58 = vector.load %arg5[%c2_68, %c2_69, %c0_70] : memref<18x18x64xf32, #tpu.memory_space<vmem>>, vector<16x16x64xf32>
    %59 = vector.shape_cast %58 : vector<16x16x64xf32> to vector<256x64xf32>
    %c8 = arith.constant 8 : index
    %c0_71 = arith.constant 0 : index
    %c0_72 = arith.constant 0 : index
    %60 = vector.load %arg2[%c8, %c0_71, %c0_72] : memref<9x64x64xf32, #tpu.memory_space<vmem>>, vector<1x64x64xf32>
    %61 = vector.shape_cast %60 : vector<1x64x64xf32> to vector<64x64xf32>
    %cst_73 = arith.constant dense<0.000000e+00> : vector<256x64xf32>
    %62 = tpu.matmul %59, %61, %cst_73 {dimension_numbers = #tpu.dot_dimension_numbers<[1], [0], [0], [1], [0, 0, 1, 1], [], []>} : vector<256x64xf32>, vector<64x64xf32>, vector<256x64xf32> -> vector<256x64xf32>
    %63 = arith.addf %57, %62 : vector<256x64xf32>
    %c0_74 = arith.constant 0 : index
    %c0_75 = arith.constant 0 : index
    %64 = vector.load %arg3[%c0_74, %c0_75] : memref<1x64xf32, #tpu.memory_space<vmem>>, vector<1x64xf32>
    %65 = vector.broadcast %64 : vector<1x64xf32> to vector<256x64xf32>
    %66 = arith.addf %63, %65 : vector<256x64xf32>
    %cst_76 = arith.constant 0.000000e+00 : f32
    %67 = vector.broadcast %cst_76 : f32 to vector<256x64xf32>
    %68 = arith.maximumf %66, %67 : vector<256x64xf32>
    %69 = vector.shape_cast %68 : vector<256x64xf32> to vector<16x16x64xf32>
    %c0_77 = arith.constant 0 : index
    %c0_78 = arith.constant 0 : index
    %c0_79 = arith.constant 0 : index
    %c0_80 = arith.constant 0 : index
    %70 = vector.load %arg4[%c0_77, %c0_78, %c0_79, %c0_80] : memref<1x16x16x64xf32, #tpu.memory_space<vmem>>, vector<1x16x16x64xf32>
    %71 = vector.shape_cast %70 : vector<1x16x16x64xf32> to vector<16x16x64xf32>
    %72 = vector.shape_cast %69 : vector<16x16x64xf32> to vector<1x16x16x64xf32>
    tpu.vector_store %arg4[%c0_77, %c0_78, %c0_79, %c0_80], %72 {strides = array<i32>} : memref<1x16x16x64xf32, #tpu.memory_space<vmem>>, vector<1x16x16x64xf32>,
    return
  }
  func.func @transform_0(%arg0: i32) -> (i32, i32, i32, i32) {
    %c0_i32 = arith.constant 0 : i32
    %c0_i32_0 = arith.constant 0 : i32
    %c0_i32_1 = arith.constant 0 : i32
    %c0_i32_2 = arith.constant 0 : i32
    return %arg0, %c0_i32, %c0_i32_0, %c0_i32_1 : i32, i32, i32, i32
  }
  func.func @transform_1(%arg0: i32) -> (i32, i32, i32) {
    %c0_i32 = arith.constant 0 : i32
    %c0_i32_0 = arith.constant 0 : i32
    %c0_i32_1 = arith.constant 0 : i32
    %c0_i32_2 = arith.constant 0 : i32
    return %c0_i32, %c0_i32_0, %c0_i32_1 : i32, i32, i32
  }
  func.func @transform_2(%arg0: i32) -> (i32, i32) {
    %c0_i32 = arith.constant 0 : i32
    %c0_i32_0 = arith.constant 0 : i32
    %c0_i32_1 = arith.constant 0 : i32
    return %c0_i32, %c0_i32_0 : i32, i32
  }
  func.func @transform_3(%arg0: i32) -> (i32, i32, i32, i32) {
    %c0_i32 = arith.constant 0 : i32
    %c0_i32_0 = arith.constant 0 : i32
    %c0_i32_1 = arith.constant 0 : i32
    %c0_i32_2 = arith.constant 0 : i32
    return %arg0, %c0_i32, %c0_i32_0, %c0_i32_1 : i32, i32, i32, i32
  }
}

module attributes {stable_mosaic.version = 11 : i64} {
  func.func @kernel(%arg0: i32, %arg1: memref<1x16x16x64xf32, #tpu.memory_space<vmem>>, %arg2: memref<9x64x64xf32, #tpu.memory_space<vmem>>, %arg3: memref<1x64xf32, #tpu.memory_space<vmem>>, %arg4: memref<1x16x16x64xf32, #tpu.memory_space<vmem>>, %arg5: memref<18x18x64xf32, #tpu.memory_space<vmem>>) attributes {dimension_semantics = [#tpu.dimension_semantics<parallel>], iteration_bounds = array<i64: 2>, scalar_prefetch = 0 : i64, scratch_operands = 1 : i64, tpu.core_type = #tpu.core_type<tc>, window_params = [{transform_indices = @transform_0, window_bounds = array<i64: 1, 16, 16, 64>}, {pipeline_mode = #tpu.pipeline_mode<synchronous>, transform_indices = @transform_1, window_bounds = array<i64: 9, 64, 64>}, {pipeline_mode = #tpu.pipeline_mode<synchronous>, transform_indices = @transform_2, window_bounds = array<i64: 1, 64>}, {transform_indices = @transform_3, window_bounds = array<i64: 1, 16, 16, 64>}]} {
    %cst = arith.constant 0.000000e+00 : f32
    %0 = vector.broadcast %cst : f32 to vector<1x18x64xf32>
    %cst_0 = arith.constant 0.000000e+00 : f32
    %1 = vector.broadcast %cst_0 : f32 to vector<16x1x64xf32>
    %c0 = arith.constant 0 : index
    %c0_1 = arith.constant 0 : index
    %c0_2 = arith.constant 0 : index
    %2 = vector.load %arg5[%c0, %c0_1, %c0_2] : memref<18x18x64xf32, #tpu.memory_space<vmem>>, vector<1x18x64xf32>
    tpu.vector_store %arg5[%c0, %c0_1, %c0_2], %0 {strides = array<i32>} : memref<18x18x64xf32, #tpu.memory_space<vmem>>, vector<1x18x64xf32>,
    %c17 = arith.constant 17 : index
    %c0_3 = arith.constant 0 : index
    %c0_4 = arith.constant 0 : index
    %3 = vector.load %arg5[%c17, %c0_3, %c0_4] : memref<18x18x64xf32, #tpu.memory_space<vmem>>, vector<1x18x64xf32>
    tpu.vector_store %arg5[%c17, %c0_3, %c0_4], %0 {strides = array<i32>} : memref<18x18x64xf32, #tpu.memory_space<vmem>>, vector<1x18x64xf32>,
    %c1 = arith.constant 1 : index
    %c0_5 = arith.constant 0 : index
    %c0_6 = arith.constant 0 : index
    %4 = vector.load %arg5[%c1, %c0_5, %c0_6] : memref<18x18x64xf32, #tpu.memory_space<vmem>>, vector<16x1x64xf32>
    tpu.vector_store %arg5[%c1, %c0_5, %c0_6], %1 {strides = array<i32>} : memref<18x18x64xf32, #tpu.memory_space<vmem>>, vector<16x1x64xf32>,
    %c1_7 = arith.constant 1 : index
    %c17_8 = arith.constant 17 : index
    %c0_9 = arith.constant 0 : index
    %5 = vector.load %arg5[%c1_7, %c17_8, %c0_9] : memref<18x18x64xf32, #tpu.memory_space<vmem>>, vector<16x1x64xf32>
    tpu.vector_store %arg5[%c1_7, %c17_8, %c0_9], %1 {strides = array<i32>} : memref<18x18x64xf32, #tpu.memory_space<vmem>>, vector<16x1x64xf32>,
    %c0_10 = arith.constant 0 : index
    %c0_11 = arith.constant 0 : index
    %c0_12 = arith.constant 0 : index
    %c0_13 = arith.constant 0 : index
    %6 = vector.load %arg1[%c0_10, %c0_11, %c0_12, %c0_13] : memref<1x16x16x64xf32, #tpu.memory_space<vmem>>, vector<1x16x16x64xf32>
    %7 = vector.shape_cast %6 : vector<1x16x16x64xf32> to vector<16x16x64xf32>
    %c1_14 = arith.constant 1 : index
    %c1_15 = arith.constant 1 : index
    %c0_16 = arith.constant 0 : index
    %8 = vector.load %arg5[%c1_14, %c1_15, %c0_16] : memref<18x18x64xf32, #tpu.memory_space<vmem>>, vector<16x16x64xf32>
    tpu.vector_store %arg5[%c1_14, %c1_15, %c0_16], %7 {strides = array<i32>} : memref<18x18x64xf32, #tpu.memory_space<vmem>>, vector<16x16x64xf32>,
    %cst_17 = arith.constant 0.000000e+00 : f32
    %9 = vector.broadcast %cst_17 : f32 to vector<256x64xf32>
    %c0_18 = arith.constant 0 : index
    %c0_19 = arith.constant 0 : index
    %c0_20 = arith.constant 0 : index
    %10 = vector.load %arg5[%c0_18, %c0_19, %c0_20] : memref<18x18x64xf32, #tpu.memory_space<vmem>>, vector<16x16x64xf32>
    %11 = vector.shape_cast %10 : vector<16x16x64xf32> to vector<256x64xf32>
    %c0_21 = arith.constant 0 : index
    %c0_22 = arith.constant 0 : index
    %c0_23 = arith.constant 0 : index
    %12 = vector.load %arg2[%c0_21, %c0_22, %c0_23] : memref<9x64x64xf32, #tpu.memory_space<vmem>>, vector<1x64x64xf32>
    %13 = vector.shape_cast %12 : vector<1x64x64xf32> to vector<64x64xf32>
    %cst_24 = arith.constant dense<0.000000e+00> : vector<256x64xf32>
    %14 = tpu.matmul %11, %13, %cst_24 {dimension_numbers = #tpu.dot_dimension_numbers<[1], [0], [0], [1], [0, 0, 1, 1], [], []>} : vector<256x64xf32>, vector<64x64xf32>, vector<256x64xf32> -> vector<256x64xf32>
    %15 = arith.addf %9, %14 : vector<256x64xf32>
    %c0_25 = arith.constant 0 : index
    %c1_26 = arith.constant 1 : index
    %c0_27 = arith.constant 0 : index
    %16 = vector.load %arg5[%c0_25, %c1_26, %c0_27] : memref<18x18x64xf32, #tpu.memory_space<vmem>>, vector<16x16x64xf32>
    %17 = vector.shape_cast %16 : vector<16x16x64xf32> to vector<256x64xf32>
    %c1_28 = arith.constant 1 : index
    %c0_29 = arith.constant 0 : index
    %c0_30 = arith.constant 0 : index
    %18 = vector.load %arg2[%c1_28, %c0_29, %c0_30] : memref<9x64x64xf32, #tpu.memory_space<vmem>>, vector<1x64x64xf32>
    %19 = vector.shape_cast %18 : vector<1x64x64xf32> to vector<64x64xf32>
    %cst_31 = arith.constant dense<0.000000e+00> : vector<256x64xf32>
    %20 = tpu.matmul %17, %19, %cst_31 {dimension_numbers = #tpu.dot_dimension_numbers<[1], [0], [0], [1], [0, 0, 1, 1], [], []>} : vector<256x64xf32>, vector<64x64xf32>, vector<256x64xf32> -> vector<256x64xf32>
    %21 = arith.addf %15, %20 : vector<256x64xf32>
    %c0_32 = arith.constant 0 : index
    %c2 = arith.constant 2 : index
    %c0_33 = arith.constant 0 : index
    %22 = vector.load %arg5[%c0_32, %c2, %c0_33] : memref<18x18x64xf32, #tpu.memory_space<vmem>>, vector<16x16x64xf32>
    %23 = vector.shape_cast %22 : vector<16x16x64xf32> to vector<256x64xf32>
    %c2_34 = arith.constant 2 : index
    %c0_35 = arith.constant 0 : index
    %c0_36 = arith.constant 0 : index
    %24 = vector.load %arg2[%c2_34, %c0_35, %c0_36] : memref<9x64x64xf32, #tpu.memory_space<vmem>>, vector<1x64x64xf32>
    %25 = vector.shape_cast %24 : vector<1x64x64xf32> to vector<64x64xf32>
    %cst_37 = arith.constant dense<0.000000e+00> : vector<256x64xf32>
    %26 = tpu.matmul %23, %25, %cst_37 {dimension_numbers = #tpu.dot_dimension_numbers<[1], [0], [0], [1], [0, 0, 1, 1], [], []>} : vector<256x64xf32>, vector<64x64xf32>, vector<256x64xf32> -> vector<256x64xf32>
    %27 = arith.addf %21, %26 : vector<256x64xf32>
    %c1_38 = arith.constant 1 : index
    %c0_39 = arith.constant 0 : index
    %c0_40 = arith.constant 0 : index
    %28 = vector.load %arg5[%c1_38, %c0_39, %c0_40] : memref<18x18x64xf32, #tpu.memory_space<vmem>>, vector<16x16x64xf32>
    %29 = vector.shape_cast %28 : vector<16x16x64xf32> to vector<256x64xf32>
    %c3 = arith.constant 3 : index
    %c0_41 = arith.constant 0 : index
    %c0_42 = arith.constant 0 : index
    %30 = vector.load %arg2[%c3, %c0_41, %c0_42] : memref<9x64x64xf32, #tpu.memory_space<vmem>>, vector<1x64x64xf32>
    %31 = vector.shape_cast %30 : vector<1x64x64xf32> to vector<64x64xf32>
    %cst_43 = arith.constant dense<0.000000e+00> : vector<256x64xf32>
    %32 = tpu.matmul %29, %31, %cst_43 {dimension_numbers = #tpu.dot_dimension_numbers<[1], [0], [0], [1], [0, 0, 1, 1], [], []>} : vector<256x64xf32>, vector<64x64xf32>, vector<256x64xf32> -> vector<256x64xf32>
    %33 = arith.addf %27, %32 : vector<256x64xf32>
    %c1_44 = arith.constant 1 : index
    %c1_45 = arith.constant 1 : index
    %c0_46 = arith.constant 0 : index
    %34 = vector.load %arg5[%c1_44, %c1_45, %c0_46] : memref<18x18x64xf32, #tpu.memory_space<vmem>>, vector<16x16x64xf32>
    %35 = vector.shape_cast %34 : vector<16x16x64xf32> to vector<256x64xf32>
    %c4 = arith.constant 4 : index
    %c0_47 = arith.constant 0 : index
    %c0_48 = arith.constant 0 : index
    %36 = vector.load %arg2[%c4, %c0_47, %c0_48] : memref<9x64x64xf32, #tpu.memory_space<vmem>>, vector<1x64x64xf32>
    %37 = vector.shape_cast %36 : vector<1x64x64xf32> to vector<64x64xf32>
    %cst_49 = arith.constant dense<0.000000e+00> : vector<256x64xf32>
    %38 = tpu.matmul %35, %37, %cst_49 {dimension_numbers = #tpu.dot_dimension_numbers<[1], [0], [0], [1], [0, 0, 1, 1], [], []>} : vector<256x64xf32>, vector<64x64xf32>, vector<256x64xf32> -> vector<256x64xf32>
    %39 = arith.addf %33, %38 : vector<256x64xf32>
    %c1_50 = arith.constant 1 : index
    %c2_51 = arith.constant 2 : index
    %c0_52 = arith.constant 0 : index
    %40 = vector.load %arg5[%c1_50, %c2_51, %c0_52] : memref<18x18x64xf32, #tpu.memory_space<vmem>>, vector<16x16x64xf32>
    %41 = vector.shape_cast %40 : vector<16x16x64xf32> to vector<256x64xf32>
    %c5 = arith.constant 5 : index
    %c0_53 = arith.constant 0 : index
    %c0_54 = arith.constant 0 : index
    %42 = vector.load %arg2[%c5, %c0_53, %c0_54] : memref<9x64x64xf32, #tpu.memory_space<vmem>>, vector<1x64x64xf32>
    %43 = vector.shape_cast %42 : vector<1x64x64xf32> to vector<64x64xf32>
    %cst_55 = arith.constant dense<0.000000e+00> : vector<256x64xf32>
    %44 = tpu.matmul %41, %43, %cst_55 {dimension_numbers = #tpu.dot_dimension_numbers<[1], [0], [0], [1], [0, 0, 1, 1], [], []>} : vector<256x64xf32>, vector<64x64xf32>, vector<256x64xf32> -> vector<256x64xf32>
    %45 = arith.addf %39, %44 : vector<256x64xf32>
    %c2_56 = arith.constant 2 : index
    %c0_57 = arith.constant 0 : index
    %c0_58 = arith.constant 0 : index
    %46 = vector.load %arg5[%c2_56, %c0_57, %c0_58] : memref<18x18x64xf32, #tpu.memory_space<vmem>>, vector<16x16x64xf32>
    %47 = vector.shape_cast %46 : vector<16x16x64xf32> to vector<256x64xf32>
    %c6 = arith.constant 6 : index
    %c0_59 = arith.constant 0 : index
    %c0_60 = arith.constant 0 : index
    %48 = vector.load %arg2[%c6, %c0_59, %c0_60] : memref<9x64x64xf32, #tpu.memory_space<vmem>>, vector<1x64x64xf32>
    %49 = vector.shape_cast %48 : vector<1x64x64xf32> to vector<64x64xf32>
    %cst_61 = arith.constant dense<0.000000e+00> : vector<256x64xf32>
    %50 = tpu.matmul %47, %49, %cst_61 {dimension_numbers = #tpu.dot_dimension_numbers<[1], [0], [0], [1], [0, 0, 1, 1], [], []>} : vector<256x64xf32>, vector<64x64xf32>, vector<256x64xf32> -> vector<256x64xf32>
    %51 = arith.addf %45, %50 : vector<256x64xf32>
    %c2_62 = arith.constant 2 : index
    %c1_63 = arith.constant 1 : index
    %c0_64 = arith.constant 0 : index
    %52 = vector.load %arg5[%c2_62, %c1_63, %c0_64] : memref<18x18x64xf32, #tpu.memory_space<vmem>>, vector<16x16x64xf32>
    %53 = vector.shape_cast %52 : vector<16x16x64xf32> to vector<256x64xf32>
    %c7 = arith.constant 7 : index
    %c0_65 = arith.constant 0 : index
    %c0_66 = arith.constant 0 : index
    %54 = vector.load %arg2[%c7, %c0_65, %c0_66] : memref<9x64x64xf32, #tpu.memory_space<vmem>>, vector<1x64x64xf32>
    %55 = vector.shape_cast %54 : vector<1x64x64xf32> to vector<64x64xf32>
    %cst_67 = arith.constant dense<0.000000e+00> : vector<256x64xf32>
    %56 = tpu.matmul %53, %55, %cst_67 {dimension_numbers = #tpu.dot_dimension_numbers<[1], [0], [0], [1], [0, 0, 1, 1], [], []>} : vector<256x64xf32>, vector<64x64xf32>, vector<256x64xf32> -> vector<256x64xf32>
    %57 = arith.addf %51, %56 : vector<256x64xf32>
    %c2_68 = arith.constant 2 : index
    %c2_69 = arith.constant 2 : index
    %c0_70 = arith.constant 0 : index
    %58 = vector.load %arg5[%c2_68, %c2_69, %c0_70] : memref<18x18x64xf32, #tpu.memory_space<vmem>>, vector<16x16x64xf32>
    %59 = vector.shape_cast %58 : vector<16x16x64xf32> to vector<256x64xf32>
    %c8 = arith.constant 8 : index
    %c0_71 = arith.constant 0 : index
    %c0_72 = arith.constant 0 : index
    %60 = vector.load %arg2[%c8, %c0_71, %c0_72] : memref<9x64x64xf32, #tpu.memory_space<vmem>>, vector<1x64x64xf32>
    %61 = vector.shape_cast %60 : vector<1x64x64xf32> to vector<64x64xf32>
    %cst_73 = arith.constant dense<0.000000e+00> : vector<256x64xf32>
    %62 = tpu.matmul %59, %61, %cst_73 {dimension_numbers = #tpu.dot_dimension_numbers<[1], [0], [0], [1], [0, 0, 1, 1], [], []>} : vector<256x64xf32>, vector<64x64xf32>, vector<256x64xf32> -> vector<256x64xf32>
    %63 = arith.addf %57, %62 : vector<256x64xf32>
    %c0_74 = arith.constant 0 : index
    %c0_75 = arith.constant 0 : index
    %64 = vector.load %arg3[%c0_74, %c0_75] : memref<1x64xf32, #tpu.memory_space<vmem>>, vector<1x64xf32>
    %65 = vector.broadcast %64 : vector<1x64xf32> to vector<256x64xf32>
    %66 = arith.addf %63, %65 : vector<256x64xf32>
    %cst_76 = arith.constant 0.000000e+00 : f32
    %67 = vector.broadcast %cst_76 : f32 to vector<256x64xf32>
    %68 = arith.maximumf %66, %67 : vector<256x64xf32>
    %69 = vector.shape_cast %68 : vector<256x64xf32> to vector<16x16x64xf32>
    %c0_77 = arith.constant 0 : index
    %c0_78 = arith.constant 0 : index
    %c0_79 = arith.constant 0 : index
    %c0_80 = arith.constant 0 : index
    %70 = vector.load %arg4[%c0_77, %c0_78, %c0_79, %c0_80] : memref<1x16x16x64xf32, #tpu.memory_space<vmem>>, vector<1x16x16x64xf32>
    %71 = vector.shape_cast %70 : vector<1x16x16x64xf32> to vector<16x16x64xf32>
    %72 = vector.shape_cast %69 : vector<16x16x64xf32> to vector<1x16x16x64xf32>
    tpu.vector_store %arg4[%c0_77, %c0_78, %c0_79, %c0_80], %72 {strides = array<i32>} : memref<1x16x16x64xf32, #tpu.memory_space<vmem>>, vector<1x16x16x64xf32>,
    return
  }
  func.func @transform_0(%arg0: i32) -> (i32, i32, i32, i32) {
    %c0_i32 = arith.constant 0 : i32
    %c0_i32_0 = arith.constant 0 : i32
    %c0_i32_1 = arith.constant 0 : i32
    %c0_i32_2 = arith.constant 0 : i32
    return %arg0, %c0_i32, %c0_i32_0, %c0_i32_1 : i32, i32, i32, i32
  }
  func.func @transform_1(%arg0: i32) -> (i32, i32, i32) {
    %c0_i32 = arith.constant 0 : i32
    %c0_i32_0 = arith.constant 0 : i32
    %c0_i32_1 = arith.constant 0 : i32
    %c0_i32_2 = arith.constant 0 : i32
    return %c0_i32, %c0_i32_0, %c0_i32_1 : i32, i32, i32
  }
  func.func @transform_2(%arg0: i32) -> (i32, i32) {
    %c0_i32 = arith.constant 0 : i32
    %c0_i32_0 = arith.constant 0 : i32
    %c0_i32_1 = arith.constant 0 : i32
    return %c0_i32, %c0_i32_0 : i32, i32
  }
  func.func @transform_3(%arg0: i32) -> (i32, i32, i32, i32) {
    %c0_i32 = arith.constant 0 : i32
    %c0_i32_0 = arith.constant 0 : i32
    %c0_i32_1 = arith.constant 0 : i32
    %c0_i32_2 = arith.constant 0 : i32
    return %arg0, %c0_i32, %c0_i32_0, %c0_i32_1 : i32, i32, i32, i32
  }
}

</mosaic_0001>

<llo_original>
// kernel: tpu_custom_call.1
$region0: #{tpu_custom_call.1}
  #allocation0 [shape = 'u32[]', space=smem, size = 0x4, offset = 0x4, fixed_abs, tag = 'smem constant byte address 0x4 - core index']
  #allocation1 [shape = 'u32[72,128]{1,0:T(1,128)}', space=vmem, size = 0x9000, scoped, tag = 'internal scratch']
  #allocation2 [shape = 'f32[18,18,64]{2,1,0:T(8,128)}', space=vmem, size = 0x36000, scoped, tag = 'scratch operand']
  %s0 = inlined_call_operand.hbm [shape: f32[2,16,16,64], index: 0, kind: input, shape index: {}]
  %s1 = inlined_call_operand.hbm [shape: f32[9,64,64], index: 1, kind: input, shape index: {}]
  %s2 = inlined_call_operand.vmem [shape: f32[1,64], index: 2, kind: input, shape index: {}]
  %s3 = inlined_call_operand.hbm [shape: f32[2,16,16,64], index: 3, kind: output, shape index: {}]
  %s4 = sld [smem:[#allocation0]]
  $region53: #{tpu_custom_call.1} parent=0
    _
  %s6 = ssub.s32 1, %s4
  %s7 = scalar_select 0, %s6, %s4
  $region1: #{tpu_custom_call.1} parent=0
    #allocation3 [shape = 'u8[262144]{0}', space=vmem, size = 0x40000, scoped, tag = 'input window, operand 0']
    #allocation4 [shape = 's32[2]{0}', space=sflag, size = 0x8, scoped, tag = 'scoped memory for tpu_custom_call.1']
    #allocation5 [shape = 's32[2]{0}', space=sflag, size = 0x8, scoped, tag = 'scoped memory for tpu_custom_call.1']
    #allocation6 [shape = 'u8[294912]{0}', space=vmem, size = 0x48000, scoped, tag = 'input window, operand 1, single buffered']
    #allocation7 [shape = 's32[1]{0}', space=sflag, size = 0x4, scoped, tag = 'scoped memory for tpu_custom_call.1']
    #allocation8 [shape = 'u8[262144]{0}', space=vmem, size = 0x40000, scoped, tag = 'output window, operand 0']
    %8 = vsyncpa [#allocation4], 0
    %s9 = scalar_lea.sflag [#allocation4], 1
    %10 = vsyncpa %s9, 0
    %11 = vsyncpa [#allocation7], 0
    %12 = vsyncpa [#allocation5], 0
    %s13 = scalar_lea.sflag [#allocation5], 1
    %14 = vsyncpa %s13, 0
    loop: start=0, step=1, limit=4
    $region2: #{tpu_custom_call.1} parent=1 // loop_pre_header
      _
    $region3: #{tpu_custom_call.1} parent=1 // loop_header
      %s16 = sphi 0, %s20
      %p17 = scmp.ge.s32.totalorder %s16, 4
      %s26 = sphi 0, %s28
      %s29 = sphi 0, %s26
      %s30 = sphi 0, %s29
      %s46 = sphi 0, %s30
      %s50 = sphi 0, %s50
      %s52 = sphi 0, %s50
      %s53 = sphi 0, %s52
      %s67 = sphi 0, %s53
      %s71 = sphi 0, %s71
      %s73 = sphi 0, %s71
      %s74 = sphi 0, %s73
      %s88 = sphi 0, %s74
      %s94 = sphi 0, %s96
      %s97 = sphi 0, %s94
      %s98 = sphi 0, %s97
      %s114 = sphi 0, %s98
    $region4: #{tpu_custom_call.1} parent=1 // loop_header_branch
      %19 = sbr.rel (%p17) target = $region8
    $region5: #{tpu_custom_call.1} parent=1 // loop_body
      %s21 = ssub.s32 %s16, 1
      %s22 = ssub.s32 %s16, 2
      %s23 = sadd.s32 %s16, 1
      %s24 = ssub.s32 %s16, %s23
      %p25 = scmp.eq.s32.totalorder %s24, 0
      %s27 = sadd.s32 %s26, 1
      %s28 = scalar_select %p25, %s26, %s27
      %p31 = pneg %p25
      %p32 = scmp.eq.s32.totalorder %s16, 1
      %p33 = por %p31, %p32
      %p34 = scmp.ne.s32.totalorder %s26, %s29
      %p35 = scmp.eq.s32.totalorder %s16, 0
      %p36 = por %p34, %p35
      %p37 = scmp.ne.s32.totalorder %s26, %s29
      %p38 = scmp.eq.s32.totalorder %s21, 1
      %p39 = por %p37, %p38
      %p40 = scmp.ne.s32.totalorder %s29, %s30
      %p41 = scmp.eq.s32.totalorder %s21, 0
      %p42 = por %p40, %p41
      %p43 = scmp.ne.s32.totalorder %s29, %s30
      %p44 = scmp.eq.s32.totalorder %s22, 1
      %p45 = por %p43, %p44
      %p47 = scmp.ne.s32.totalorder %s30, %s46
      %p48 = scmp.eq.s32.totalorder %s22, 0
      %p49 = por %p47, %p48
      %s51 = sadd.s32 %s50, 1
      %p54 = scmp.eq.s32.totalorder %s16, 1
      %p55 = scmp.ne.s32.totalorder %s50, %s52
      %p56 = scmp.eq.s32.totalorder %s16, 0
      %p57 = por %p55, %p56
      %p58 = scmp.ne.s32.totalorder %s50, %s52
      %p59 = scmp.eq.s32.totalorder %s21, 1
      %p60 = por %p58, %p59
      %p61 = scmp.ne.s32.totalorder %s52, %s53
      %p62 = scmp.eq.s32.totalorder %s21, 0
      %p63 = por %p61, %p62
      %p64 = scmp.ne.s32.totalorder %s52, %s53
      %p65 = scmp.eq.s32.totalorder %s22, 1
      %p66 = por %p64, %p65
      %p68 = scmp.ne.s32.totalorder %s53, %s67
      %p69 = scmp.eq.s32.totalorder %s22, 0
      %p70 = por %p68, %p69
      %s72 = sadd.s32 %s71, 1
      %p75 = scmp.eq.s32.totalorder %s16, 1
      %p76 = scmp.ne.s32.totalorder %s71, %s73
      %p77 = scmp.eq.s32.totalorder %s16, 0
      %p78 = por %p76, %p77
      %p79 = scmp.ne.s32.totalorder %s71, %s73
      %p80 = scmp.eq.s32.totalorder %s21, 1
      %p81 = por %p79, %p80
      %p82 = scmp.ne.s32.totalorder %s73, %s74
      %p83 = scmp.eq.s32.totalorder %s21, 0
      %p84 = por %p82, %p83
      %p85 = scmp.ne.s32.totalorder %s73, %s74
      %p86 = scmp.eq.s32.totalorder %s22, 1
      %p87 = por %p85, %p86
      %p89 = scmp.ne.s32.totalorder %s74, %s88
      %p90 = scmp.eq.s32.totalorder %s22, 0
      %p91 = por %p89, %p90
      %s92 = ssub.s32 %s16, %s23
      %p93 = scmp.eq.s32.totalorder %s92, 0
      %s95 = sadd.s32 %s94, 1
      %s96 = scalar_select %p93, %s94, %s95
      %p99 = pneg %p93
      %p100 = scmp.eq.s32.totalorder %s16, 1
      %p101 = por %p99, %p100
      %p102 = scmp.ne.s32.totalorder %s94, %s97
      %p103 = scmp.eq.s32.totalorder %s16, 0
      %p104 = por %p102, %p103
      %p105 = scmp.ne.s32.totalorder %s94, %s97
      %p106 = scmp.eq.s32.totalorder %s21, 1
      %p107 = por %p105, %p106
      %p108 = scmp.ne.s32.totalorder %s97, %s98
      %p109 = scmp.eq.s32.totalorder %s21, 0
      %p110 = por %p108, %p109
      %p111 = scmp.ne.s32.totalorder %s97, %s98
      %p112 = scmp.eq.s32.totalorder %s22, 1
      %p113 = por %p111, %p112
      %p115 = scmp.ne.s32.totalorder %s98, %s114
      %p116 = scmp.eq.s32.totalorder %s22, 0
      %p117 = por %p115, %p116
      %p118 = scmp.le.s32.totalorder 1, %s16
      %p119 = scmp.lt.s32.totalorder %s16, 3
      %p120 = pnand %p118, %p119
      %p121 = pneg %p120
      // Predicated region
      $region9: #{tpu_custom_call.1} parent=5 // pred_check
        _
      $region10: #{tpu_custom_call.1} parent=5 // pred_check_branch
        %123 = sbr.rel (%p120) target = $region12
      $region11: #{tpu_custom_call.1} parent=5 // pred_region
        %s124 = ssub.s32 %s16, 1
        // Predicated region
        $region13: #{tpu_custom_call.1} parent=11 // pred_check
          %p125 = pneg %p63
        $region14: #{tpu_custom_call.1} parent=11 // pred_check_branch
          %127 = sbr.rel (%p125) target = $region16
        $region15: #{tpu_custom_call.1} parent=11 // pred_region
          %129 = vsyncadd [#allocation7], 0
          %s130 = sshll.u32 %s1, 4
          %s131 = int_to_ptr.hbm [resolvable:$true] %s130
          %s132 = sshll.u32 [#allocation6], 4
          %s133 = int_to_ptr.vmem [resolvable:$true] %s132
          %138 = dma.hbm_to_vmem [thread:$0]  %s131, 9216, %s133, [#allocation7], 128, 128, 8
        $region16: #{tpu_custom_call.1} parent=11 // pred_fallthru
          _
        // Predicated region
        $region17: #{tpu_custom_call.1} parent=11 // pred_check
          %p139 = pneg %p84
        $region18: #{tpu_custom_call.1} parent=11 // pred_check_branch
          %141 = sbr.rel (%p139) target = $region20
        $region19: #{tpu_custom_call.1} parent=11 // pred_region
          _
        $region20: #{tpu_custom_call.1} parent=11 // pred_fallthru
          _
      $region12: #{tpu_custom_call.1} parent=5 // pred_fallthru
        _
      %p142 = scmp.lt.s32.totalorder %s16, 2
      // Predicated region
      $region21: #{tpu_custom_call.1} parent=5 // pred_check
        %p143 = pneg %p142
      $region22: #{tpu_custom_call.1} parent=5 // pred_check_branch
        %145 = sbr.rel (%p143) target = $region24
      $region23: #{tpu_custom_call.1} parent=5 // pred_region
        // Predicated region
        $region25: #{tpu_custom_call.1} parent=23 // pred_check
          %p146 = pneg %p36
        $region26: #{tpu_custom_call.1} parent=23 // pred_check_branch
          %148 = sbr.rel (%p146) target = $region28
        $region27: #{tpu_custom_call.1} parent=23 // pred_region
          %s149 = sand.u32 %s26, 1
          %s150 = scalar_lea.sflag [#allocation4], %s149
          %s151 = sand.u32 %s26, 1
          %s152 = smul.addr %s151, 256
          %s153 = scalar_lea.vmem [#allocation3], %s152
          %155 = vsyncadd %s150, 0
          %s156 = smul.addr %s16, 32
          %s157 = smul.addr %s156, 8
          %s158 = scalar_lea.hbm %s0, %s157
          %s159 = sshll.u32 %s158, 4
          %s160 = int_to_ptr.hbm [resolvable:$true] %s159
          %s161 = sshll.u32 %s153, 4
          %s162 = int_to_ptr.vmem [resolvable:$true] %s161
          %167 = dma.hbm_to_vmem [thread:$0]  %s160, 4096, %s162, %s150, 128, 128, 8
        $region28: #{tpu_custom_call.1} parent=23 // pred_fallthru
          _
      $region24: #{tpu_custom_call.1} parent=5 // pred_fallthru
        _
      %p168 = scmp.le.s32.totalorder 1, %s16
      %p169 = scmp.lt.s32.totalorder %s16, 3
      %p170 = pnand %p168, %p169
      %p171 = pneg %p170
      // Predicated region
      $region29: #{tpu_custom_call.1} parent=5 // pred_check
        _
      $region30: #{tpu_custom_call.1} parent=5 // pred_check_branch
        %173 = sbr.rel (%p170) target = $region32
      $region31: #{tpu_custom_call.1} parent=5 // pred_region
        %s174 = ssub.s32 %s16, 1
        %s175 = sand.u32 %s29, 1
        %s176 = scalar_lea.sflag [#allocation4], %s175
        %s177 = sand.u32 %s29, 1
        %s178 = smul.addr %s177, 256
        %s179 = scalar_lea.vmem [#allocation3], %s178
        // Predicated region
        $region33: #{tpu_custom_call.1} parent=31 // pred_check
          %p180 = pneg %p42
        $region34: #{tpu_custom_call.1} parent=31 // pred_check_branch
          %182 = sbr.rel (%p180) target = $region36
        $region35: #{tpu_custom_call.1} parent=31 // pred_region
          %184 = dma.done %s176, 4096
        $region36: #{tpu_custom_call.1} parent=31 // pred_fallthru
          _
        // Predicated region
        $region37: #{tpu_custom_call.1} parent=31 // pred_check
          %p185 = pneg %p63
        $region38: #{tpu_custom_call.1} parent=31 // pred_check_branch
          %187 = sbr.rel (%p185) target = $region40
        $region39: #{tpu_custom_call.1} parent=31 // pred_region
          %189 = dma.done [#allocation7], 9216
        $region40: #{tpu_custom_call.1} parent=31 // pred_fallthru
          _
        %s190 = sand.u32 %s29, 1
        %s191 = scalar_lea.sflag [#allocation4], %s190
        %s192 = sand.u32 %s29, 1
        %s193 = smul.addr %s192, 256
        %s194 = scalar_lea.vmem [#allocation3], %s193
        %p195 = pneg %p42
        %p196 = pneg %p39
        %p197 = pneg %p63
        %p198 = pneg %p60
        %p199 = pneg %p84
        %p200 = pneg %p81
        %p201 = pneg %p110
        %p202 = pneg %p107
        %s203 = sand.u32 %s97, 1
        %s204 = scalar_lea.sflag [#allocation5], %s203
        %s205 = sand.u32 %s97, 1
        %s206 = smul.addr %s205, 256
        %s207 = scalar_lea.vmem [#allocation8], %s206
        %vm208 = vcmask 523264
        %209 = vst.msk [vmem:[#allocation2] sm:$0xff] %vm208, 0.0
        %210 = vst.msk [vmem:[#allocation2 + $0x8] sm:$0xff] %vm208, 0.0
        %vm211 = vcmask 517120
        %212 = vst.msk [vmem:[#allocation2 + $0x10] sm:$0x3] %vm211, 0.0
        %s213 = scalar_lea.vmem [#allocation2], 408
        %214 = vst.msk [vmem:[%s213] sm:$0xff] %vm208, 0.0
        %215 = vst.msk [vmem:[%s213 + $0x8] sm:$0xff] %vm208, 0.0
        %216 = vst.msk [vmem:[%s213 + $0x10] sm:$0x3] %vm211, 0.0
        %s217 = scalar_lea.vmem [#allocation2], 24
        %vm218 = vcmask 516096
        %219 = vst.msk [vmem:[%s217] sm:$0x1] %vm218, 0.0
        %220 = vst.msk [vmem:[%s217 + $0x18] sm:$0x1] %vm218, 0.0
        %221 = vst.msk [vmem:[%s217 + $0x30] sm:$0x1] %vm218, 0.0
        %222 = vst.msk [vmem:[%s217 + $0x48] sm:$0x1] %vm218, 0.0
        %223 = vst.msk [vmem:[%s217 + $0x60] sm:$0x1] %vm218, 0.0
        %224 = vst.msk [vmem:[%s217 + $0x78] sm:$0x1] %vm218, 0.0
        %225 = vst.msk [vmem:[%s217 + $0x90] sm:$0x1] %vm218, 0.0
        %226 = vst.msk [vmem:[%s217 + $0xa8] sm:$0x1] %vm218, 0.0
        %227 = vst.msk [vmem:[%s217 + $0xc0] sm:$0x1] %vm218, 0.0
        %228 = vst.msk [vmem:[%s217 + $0xd8] sm:$0x1] %vm218, 0.0
        %229 = vst.msk [vmem:[%s217 + $0xf0] sm:$0x1] %vm218, 0.0
        %230 = vst.msk [vmem:[%s217 + $0x108] sm:$0x1] %vm218, 0.0
        %231 = vst.msk [vmem:[%s217 + $0x120] sm:$0x1] %vm218, 0.0
        %232 = vst.msk [vmem:[%s217 + $0x138] sm:$0x1] %vm218, 0.0
        %233 = vst.msk [vmem:[%s217 + $0x150] sm:$0x1] %vm218, 0.0
        %234 = vst.msk [vmem:[%s217 + $0x168] sm:$0x1] %vm218, 0.0
        %235 = vst.msk [vmem:[%s217 + $0x11] sm:$0x1] %vm218, 0.0
        %236 = vst.msk [vmem:[%s217 + $0x29] sm:$0x1] %vm218, 0.0
        %237 = vst.msk [vmem:[%s217 + $0x41] sm:$0x1] %vm218, 0.0
        %238 = vst.msk [vmem:[%s217 + $0x59] sm:$0x1] %vm218, 0.0
        %239 = vst.msk [vmem:[%s217 + $0x71] sm:$0x1] %vm218, 0.0
        %240 = vst.msk [vmem:[%s217 + $0x89] sm:$0x1] %vm218, 0.0
        %241 = vst.msk [vmem:[%s217 + $0xa1] sm:$0x1] %vm218, 0.0
        %242 = vst.msk [vmem:[%s217 + $0xb9] sm:$0x1] %vm218, 0.0
        %243 = vst.msk [vmem:[%s217 + $0xd1] sm:$0x1] %vm218, 0.0
        %244 = vst.msk [vmem:[%s217 + $0xe9] sm:$0x1] %vm218, 0.0
        %245 = vst.msk [vmem:[%s217 + $0x101] sm:$0x1] %vm218, 0.0
        %246 = vst.msk [vmem:[%s217 + $0x119] sm:$0x1] %vm218, 0.0
        %247 = vst.msk [vmem:[%s217 + $0x131] sm:$0x1] %vm218, 0.0
        %248 = vst.msk [vmem:[%s217 + $0x149] sm:$0x1] %vm218, 0.0
        %249 = vst.msk [vmem:[%s217 + $0x161] sm:$0x1] %vm218, 0.0
        %250 = vst.msk [vmem:[%s217 + $0x179] sm:$0x1] %vm218, 0.0
        %v251 = vld [vmem:[%s179] sm:$0xff]
        %v252 = vld [vmem:[%s179 + $0x8] sm:$0xff]
        %v253 = vld [vmem:[%s179 + $0x10] sm:$0xff]
        %v254 = vld [vmem:[%s179 + $0x18] sm:$0xff]
        %v255 = vld [vmem:[%s179 + $0x20] sm:$0xff]
        %v256 = vld [vmem:[%s179 + $0x28] sm:$0xff]
        %v257 = vld [vmem:[%s179 + $0x30] sm:$0xff]
        %v258 = vld [vmem:[%s179 + $0x38] sm:$0xff]
        %v259 = vld [vmem:[%s179 + $0x40] sm:$0xff]
        %v260 = vld [vmem:[%s179 + $0x48] sm:$0xff]
        %v261 = vld [vmem:[%s179 + $0x50] sm:$0xff]
        %v262 = vld [vmem:[%s179 + $0x58] sm:$0xff]
        %v263 = vld [vmem:[%s179 + $0x60] sm:$0xff]
        %v264 = vld [vmem:[%s179 + $0x68] sm:$0xff]
        %v265 = vld [vmem:[%s179 + $0x70] sm:$0xff]
        %v266 = vld [vmem:[%s179 + $0x78] sm:$0xff]
        %v267 = vld [vmem:[%s179 + $0x80] sm:$0xff]
        %v268 = vld [vmem:[%s179 + $0x88] sm:$0xff]
        %v269 = vld [vmem:[%s179 + $0x90] sm:$0xff]
        %v270 = vld [vmem:[%s179 + $0x98] sm:$0xff]
        %v271 = vld [vmem:[%s179 + $0xa0] sm:$0xff]
        %v272 = vld [vmem:[%s179 + $0xa8] sm:$0xff]
        %v273 = vld [vmem:[%s179 + $0xb0] sm:$0xff]
        %v274 = vld [vmem:[%s179 + $0xb8] sm:$0xff]
        %v275 = vld [vmem:[%s179 + $0xc0] sm:$0xff]
        %v276 = vld [vmem:[%s179 + $0xc8] sm:$0xff]
        %v277 = vld [vmem:[%s179 + $0xd0] sm:$0xff]
        %v278 = vld [vmem:[%s179 + $0xd8] sm:$0xff]
        %v279 = vld [vmem:[%s179 + $0xe0] sm:$0xff]
        %v280 = vld [vmem:[%s179 + $0xe8] sm:$0xff]
        %v281 = vld [vmem:[%s179 + $0xf0] sm:$0xff]
        %v282 = vld [vmem:[%s179 + $0xf8] sm:$0xff]
        %283 = vst.msk [vmem:[%s217 + $0x1] sm:$0xff] %vm208, %v251
        %284 = vst.msk [vmem:[%s217 + $0x9] sm:$0xff] %vm208, %v252
        %285 = vst.msk [vmem:[%s217 + $0x19] sm:$0xff] %vm208, %v253
        %286 = vst.msk [vmem:[%s217 + $0x21] sm:$0xff] %vm208, %v254
        %287 = vst.msk [vmem:[%s217 + $0x31] sm:$0xff] %vm208, %v255
        %288 = vst.msk [vmem:[%s217 + $0x39] sm:$0xff] %vm208, %v256
        %289 = vst.msk [vmem:[%s217 + $0x49] sm:$0xff] %vm208, %v257
        %290 = vst.msk [vmem:[%s217 + $0x51] sm:$0xff] %vm208, %v258
        %291 = vst.msk [vmem:[%s217 + $0x61] sm:$0xff] %vm208, %v259
        %292 = vst.msk [vmem:[%s217 + $0x69] sm:$0xff] %vm208, %v260
        %293 = vst.msk [vmem:[%s217 + $0x79] sm:$0xff] %vm208, %v261
        %294 = vst.msk [vmem:[%s217 + $0x81] sm:$0xff] %vm208, %v262
        %295 = vst.msk [vmem:[%s217 + $0x91] sm:$0xff] %vm208, %v263
        %296 = vst.msk [vmem:[%s217 + $0x99] sm:$0xff] %vm208, %v264
        %297 = vst.msk [vmem:[%s217 + $0xa9] sm:$0xff] %vm208, %v265
        %298 = vst.msk [vmem:[%s217 + $0xb1] sm:$0xff] %vm208, %v266
        %299 = vst.msk [vmem:[%s217 + $0xc1] sm:$0xff] %vm208, %v267
        %300 = vst.msk [vmem:[%s217 + $0xc9] sm:$0xff] %vm208, %v268
        %301 = vst.msk [vmem:[%s217 + $0xd9] sm:$0xff] %vm208, %v269
        %302 = vst.msk [vmem:[%s217 + $0xe1] sm:$0xff] %vm208, %v270
        %303 = vst.msk [vmem:[%s217 + $0xf1] sm:$0xff] %vm208, %v271
        %304 = vst.msk [vmem:[%s217 + $0xf9] sm:$0xff] %vm208, %v272
        %305 = vst.msk [vmem:[%s217 + $0x109] sm:$0xff] %vm208, %v273
        %306 = vst.msk [vmem:[%s217 + $0x111] sm:$0xff] %vm208, %v274
        %307 = vst.msk [vmem:[%s217 + $0x121] sm:$0xff] %vm208, %v275
        %308 = vst.msk [vmem:[%s217 + $0x129] sm:$0xff] %vm208, %v276
        %309 = vst.msk [vmem:[%s217 + $0x139] sm:$0xff] %vm208, %v277
        %310 = vst.msk [vmem:[%s217 + $0x141] sm:$0xff] %vm208, %v278
        %311 = vst.msk [vmem:[%s217 + $0x151] sm:$0xff] %vm208, %v279
        %312 = vst.msk [vmem:[%s217 + $0x159] sm:$0xff] %vm208, %v280
        %313 = vst.msk [vmem:[%s217 + $0x169] sm:$0xff] %vm208, %v281
        %314 = vst.msk [vmem:[%s217 + $0x171] sm:$0xff] %vm208, %v282
        %v315 = vld [vmem:[#allocation2] sm:$0xff]
        %v316 = vld [vmem:[#allocation2 + $0x8] sm:$0xff]
        %v317 = vld [vmem:[#allocation2 + $0x18] sm:$0xff]
        %v318 = vld [vmem:[#allocation2 + $0x20] sm:$0xff]
        %v319 = vld [vmem:[#allocation2 + $0x30] sm:$0xff]
        %v320 = vld [vmem:[#allocation2 + $0x38] sm:$0xff]
        %v321 = vld [vmem:[#allocation2 + $0x48] sm:$0xff]
        %v322 = vld [vmem:[#allocation2 + $0x50] sm:$0xff]
        %v323 = vld [vmem:[#allocation2 + $0x60] sm:$0xff]
        %v324 = vld [vmem:[#allocation2 + $0x68] sm:$0xff]
        %v325 = vld [vmem:[#allocation2 + $0x78] sm:$0xff]
        %v326 = vld [vmem:[#allocation2 + $0x80] sm:$0xff]
        %v327 = vld [vmem:[#allocation2 + $0x90] sm:$0xff]
        %v328 = vld [vmem:[#allocation2 + $0x98] sm:$0xff]
        %v329 = vld [vmem:[#allocation2 + $0xa8] sm:$0xff]
        %v330 = vld [vmem:[#allocation2 + $0xb0] sm:$0xff]
        %v331 = vld [vmem:[#allocation2 + $0xc0] sm:$0xff]
        %v332 = vld [vmem:[#allocation2 + $0xc8] sm:$0xff]
        %v333 = vld [vmem:[#allocation2 + $0xd8] sm:$0xff]
        %v334 = vld [vmem:[#allocation2 + $0xe0] sm:$0xff]
        %v335 = vld [vmem:[#allocation2 + $0xf0] sm:$0xff]
        %v336 = vld [vmem:[#allocation2 + $0xf8] sm:$0xff]
        %v337 = vld [vmem:[#allocation2 + $0x108] sm:$0xff]
        %v338 = vld [vmem:[#allocation2 + $0x110] sm:$0xff]
        %v339 = vld [vmem:[#allocation2 + $0x120] sm:$0xff]
        %v340 = vld [vmem:[#allocation2 + $0x128] sm:$0xff]
        %v341 = vld [vmem:[#allocation2 + $0x138] sm:$0xff]
        %v342 = vld [vmem:[#allocation2 + $0x140] sm:$0xff]
        %v343 = vld [vmem:[#allocation2 + $0x150] sm:$0xff]
        %v344 = vld [vmem:[#allocation2 + $0x158] sm:$0xff]
        %v345 = vld [vmem:[#allocation2 + $0x168] sm:$0xff]
        %v346 = vld [vmem:[#allocation2 + $0x170] sm:$0xff]
        %v347 = vld [vmem:[#allocation6] sm:$0xff]
        %v348 = vld [vmem:[#allocation6 + $0x8] sm:$0xff]
        %v349 = vld [vmem:[#allocation6 + $0x10] sm:$0xff]
        %v350 = vld [vmem:[#allocation6 + $0x18] sm:$0xff]
        %v351 = vld [vmem:[#allocation6 + $0x20] sm:$0xff]
        %v352 = vld [vmem:[#allocation6 + $0x28] sm:$0xff]
        %v353 = vld [vmem:[#allocation6 + $0x30] sm:$0xff]
        %v354 = vld [vmem:[#allocation6 + $0x38] sm:$0xff]
        %v355 = vld [vmem:[#allocation2 + $0x1] sm:$0xff]
        %v356 = vld [vmem:[#allocation2 + $0x9] sm:$0xff]
        %v357 = vld [vmem:[#allocation2 + $0x19] sm:$0xff]
        %v358 = vld [vmem:[#allocation2 + $0x21] sm:$0xff]
        %v359 = vld [vmem:[#allocation2 + $0x31] sm:$0xff]
        %v360 = vld [vmem:[#allocation2 + $0x39] sm:$0xff]
        %v361 = vld [vmem:[#allocation2 + $0x49] sm:$0xff]
        %v362 = vld [vmem:[#allocation2 + $0x51] sm:$0xff]
        %v363 = vld [vmem:[#allocation2 + $0x61] sm:$0xff]
        %v364 = vld [vmem:[#allocation2 + $0x69] sm:$0xff]
        %v365 = vld [vmem:[#allocation2 + $0x79] sm:$0xff]
        %v366 = vld [vmem:[#allocation2 + $0x81] sm:$0xff]
        %v367 = vld [vmem:[#allocation2 + $0x91] sm:$0xff]
        %v368 = vld [vmem:[#allocation2 + $0x99] sm:$0xff]
        %v369 = vld [vmem:[#allocation2 + $0xa9] sm:$0xff]
        %v370 = vld [vmem:[#allocation2 + $0xb1] sm:$0xff]
        %v371 = vld [vmem:[#allocation2 + $0xc1] sm:$0xff]
        %v372 = vld [vmem:[#allocation2 + $0xc9] sm:$0xff]
        %v373 = vld [vmem:[#allocation2 + $0xd9] sm:$0xff]
        %v374 = vld [vmem:[#allocation2 + $0xe1] sm:$0xff]
        %v375 = vld [vmem:[#allocation2 + $0xf1] sm:$0xff]
        %v376 = vld [vmem:[#allocation2 + $0xf9] sm:$0xff]
        %v377 = vld [vmem:[#allocation2 + $0x109] sm:$0xff]
        %v378 = vld [vmem:[#allocation2 + $0x111] sm:$0xff]
        %v379 = vld [vmem:[#allocation2 + $0x121] sm:$0xff]
        %v380 = vld [vmem:[#allocation2 + $0x129] sm:$0xff]
        %v381 = vld [vmem:[#allocation2 + $0x139] sm:$0xff]
        %v382 = vld [vmem:[#allocation2 + $0x141] sm:$0xff]
        %v383 = vld [vmem:[#allocation2 + $0x151] sm:$0xff]
        %v384 = vld [vmem:[#allocation2 + $0x159] sm:$0xff]
        %v385 = vld [vmem:[#allocation2 + $0x169] sm:$0xff]
        %v386 = vld [vmem:[#allocation2 + $0x171] sm:$0xff]
        %s387 = scalar_lea.vmem [#allocation6], 64
        %v388 = vld [vmem:[%s387] sm:$0xff]
        %v389 = vld [vmem:[%s387 + $0x8] sm:$0xff]
        %v390 = vld [vmem:[%s387 + $0x10] sm:$0xff]
        %v391 = vld [vmem:[%s387 + $0x18] sm:$0xff]
        %v392 = vld [vmem:[%s387 + $0x20] sm:$0xff]
        %v393 = vld [vmem:[%s387 + $0x28] sm:$0xff]
        %v394 = vld [vmem:[%s387 + $0x30] sm:$0xff]
        %v395 = vld [vmem:[%s387 + $0x38] sm:$0xff]
        %v397 = vsel %vm208, %v355, 0
        %v400 = vsel %vm208, %v356, 0
        %v403 = vsel %vm208, %v357, 0
        %v406 = vsel %vm208, %v358, 0
        %v409 = vsel %vm208, %v359, 0
        %v412 = vsel %vm208, %v360, 0
        %v415 = vsel %vm208, %v361, 0
        %v418 = vsel %vm208, %v362, 0
        %v421 = vsel %vm208, %v363, 0
        %v424 = vsel %vm208, %v364, 0
        %v427 = vsel %vm208, %v365, 0
        %v430 = vsel %vm208, %v366, 0
        %v433 = vsel %vm208, %v367, 0
        %v436 = vsel %vm208, %v368, 0
        %v439 = vsel %vm208, %v369, 0
        %v442 = vsel %vm208, %v370, 0
        %v445 = vsel %vm208, %v371, 0
        %v448 = vsel %vm208, %v372, 0
        %v451 = vsel %vm208, %v373, 0
        %v454 = vsel %vm208, %v374, 0
        %v457 = vsel %vm208, %v375, 0
        %v460 = vsel %vm208, %v376, 0
        %v463 = vsel %vm208, %v377, 0
        %v466 = vsel %vm208, %v378, 0
        %v469 = vsel %vm208, %v379, 0
        %v472 = vsel %vm208, %v380, 0
        %v475 = vsel %vm208, %v381, 0
        %v478 = vsel %vm208, %v382, 0
        %v481 = vsel %vm208, %v383, 0
        %v484 = vsel %vm208, %v384, 0
        %v487 = vsel %vm208, %v385, 0
        %v490 = vsel %vm208, %v386, 0
        %492 = vmatpush.msra.mxu0 0.0
        %493 = vmatpush.msra.mxu0 0.0
        %494 = vmatpush.msra.mxu0 0.0
        %495 = vmatpush.msra.mxu0 0.0
        %496 = vmatpush.msra.mxu0 0.0
        %497 = vmatpush.msra.mxu0 0.0
        %498 = vmatpush.msra.mxu0 0.0
        %499 = vmatpush.msra.mxu0 0.0
        %500 = vmatpush.msra.mxu0 %v395
        %501 = vmatpush.msra.mxu0 %v394
        %502 = vmatpush.msra.mxu0 %v393
        %503 = vmatpush.msra.mxu0 %v392
        %504 = vmatpush.msra.mxu0 %v391
        %505 = vmatpush.msra.mxu0 %v390
        %506 = vmatpush.msra.mxu0 %v389
        %507 = vmatpush.msra.mxu0 %v388
        %508 = vmatmul.f32.gmra.mxu0 %v397
        %v509 = vpop.f32.mrf.mxu0
        %v510 = vadd.f32 0.0, %v509
        %511 = vmatmul.f32.gmra.mxu0 %v400
        %v512 = vpop.f32.mrf.mxu0
        %v513 = vadd.f32 0.0, %v512
        %514 = vmatmul.f32.gmra.mxu0 %v403
        %v515 = vpop.f32.mrf.mxu0
        %v516 = vadd.f32 0.0, %v515
        %517 = vmatmul.f32.gmra.mxu0 %v406
        %v518 = vpop.f32.mrf.mxu0
        %v519 = vadd.f32 0.0, %v518
        %520 = vmatmul.f32.gmra.mxu0 %v409
        %v521 = vpop.f32.mrf.mxu0
        %v522 = vadd.f32 0.0, %v521
        %523 = vmatmul.f32.gmra.mxu0 %v412
        %v524 = vpop.f32.mrf.mxu0
        %v525 = vadd.f32 0.0, %v524
        %526 = vmatmul.f32.gmra.mxu0 %v415
        %v527 = vpop.f32.mrf.mxu0
        %v528 = vadd.f32 0.0, %v527
        %529 = vmatmul.f32.gmra.mxu0 %v418
        %v530 = vpop.f32.mrf.mxu0
        %v531 = vadd.f32 0.0, %v530
        %532 = vmatmul.f32.gmra.mxu0 %v421
        %v533 = vpop.f32.mrf.mxu0
        %v534 = vadd.f32 0.0, %v533
        %535 = vmatmul.f32.gmra.mxu0 %v424
        %v536 = vpop.f32.mrf.mxu0
        %v537 = vadd.f32 0.0, %v536
        %538 = vmatmul.f32.gmra.mxu0 %v427
        %v539 = vpop.f32.mrf.mxu0
        %v540 = vadd.f32 0.0, %v539
        %541 = vmatmul.f32.gmra.mxu0 %v430
        %v542 = vpop.f32.mrf.mxu0
        %v543 = vadd.f32 0.0, %v542
        %544 = vmatmul.f32.gmra.mxu0 %v433
        %v545 = vpop.f32.mrf.mxu0
        %v546 = vadd.f32 0.0, %v545
        %547 = vmatmul.f32.gmra.mxu0 %v436
        %v548 = vpop.f32.mrf.mxu0
        %v549 = vadd.f32 0.0, %v548
        %550 = vmatmul.f32.gmra.mxu0 %v439
        %v551 = vpop.f32.mrf.mxu0
        %v552 = vadd.f32 0.0, %v551
        %553 = vmatmul.f32.gmra.mxu0 %v442
        %v554 = vpop.f32.mrf.mxu0
        %v555 = vadd.f32 0.0, %v554
        %556 = vmatmul.f32.gmra.mxu0 %v445
        %v557 = vpop.f32.mrf.mxu0
        %v558 = vadd.f32 0.0, %v557
        %559 = vmatmul.f32.gmra.mxu0 %v448
        %v560 = vpop.f32.mrf.mxu0
        %v561 = vadd.f32 0.0, %v560
        %562 = vmatmul.f32.gmra.mxu0 %v451
        %v563 = vpop.f32.mrf.mxu0
        %v564 = vadd.f32 0.0, %v563
        %565 = vmatmul.f32.gmra.mxu0 %v454
        %v566 = vpop.f32.mrf.mxu0
        %v567 = vadd.f32 0.0, %v566
        %568 = vmatmul.f32.gmra.mxu0 %v457
        %v569 = vpop.f32.mrf.mxu0
        %v570 = vadd.f32 0.0, %v569
        %571 = vmatmul.f32.gmra.mxu0 %v460
        %v572 = vpop.f32.mrf.mxu0
        %v573 = vadd.f32 0.0, %v572
        %574 = vmatmul.f32.gmra.mxu0 %v463
        %v575 = vpop.f32.mrf.mxu0
        %v576 = vadd.f32 0.0, %v575
        %577 = vmatmul.f32.gmra.mxu0 %v466
        %v578 = vpop.f32.mrf.mxu0
        %v579 = vadd.f32 0.0, %v578
        %580 = vmatmul.f32.gmra.mxu0 %v469
        %v581 = vpop.f32.mrf.mxu0
        %v582 = vadd.f32 0.0, %v581
        %583 = vmatmul.f32.gmra.mxu0 %v472
        %v584 = vpop.f32.mrf.mxu0
        %v585 = vadd.f32 0.0, %v584
        %586 = vmatmul.f32.gmra.mxu0 %v475
        %v587 = vpop.f32.mrf.mxu0
        %v588 = vadd.f32 0.0, %v587
        %589 = vmatmul.f32.gmra.mxu0 %v478
        %v590 = vpop.f32.mrf.mxu0
        %v591 = vadd.f32 0.0, %v590
        %592 = vmatmul.f32.gmra.mxu0 %v481
        %v593 = vpop.f32.mrf.mxu0
        %v594 = vadd.f32 0.0, %v593
        %595 = vmatmul.f32.gmra.mxu0 %v484
        %v596 = vpop.f32.mrf.mxu0
        %v597 = vadd.f32 0.0, %v596
        %598 = vmatmul.f32.gmra.mxu0 %v487
        %v599 = vpop.f32.mrf.mxu0
        %v600 = vadd.f32 0.0, %v599
        %601 = vmatmul.f32.gmra.mxu0 %v490
        %v602 = vpop.f32.mrf.mxu0
        %v603 = vadd.f32 0.0, %v602
        %604 = vdwg.mxu0
        %v606 = vsel %vm208, %v315, 0
        %v609 = vsel %vm208, %v316, 0
        %v612 = vsel %vm208, %v317, 0
        %v615 = vsel %vm208, %v318, 0
        %v618 = vsel %vm208, %v319, 0
        %v621 = vsel %vm208, %v320, 0
        %v624 = vsel %vm208, %v321, 0
        %v627 = vsel %vm208, %v322, 0
        %v630 = vsel %vm208, %v323, 0
        %v633 = vsel %vm208, %v324, 0
        %v636 = vsel %vm208, %v325, 0
        %v639 = vsel %vm208, %v326, 0
        %v642 = vsel %vm208, %v327, 0
        %v645 = vsel %vm208, %v328, 0
        %v648 = vsel %vm208, %v329, 0
        %v651 = vsel %vm208, %v330, 0
        %v654 = vsel %vm208, %v331, 0
        %v657 = vsel %vm208, %v332, 0
        %v660 = vsel %vm208, %v333, 0
        %v663 = vsel %vm208, %v334, 0
        %v666 = vsel %vm208, %v335, 0
        %v669 = vsel %vm208, %v336, 0
        %v672 = vsel %vm208, %v337, 0
        %v675 = vsel %vm208, %v338, 0
        %v678 = vsel %vm208, %v339, 0
        %v681 = vsel %vm208, %v340, 0
        %v684 = vsel %vm208, %v341, 0
        %v687 = vsel %vm208, %v342, 0
        %v690 = vsel %vm208, %v343, 0
        %v693 = vsel %vm208, %v344, 0
        %v696 = vsel %vm208, %v345, 0
        %v699 = vsel %vm208, %v346, 0
        %701 = vmatpush.msra.mxu0 0.0
        %702 = vmatpush.msra.mxu0 0.0
        %703 = vmatpush.msra.mxu0 0.0
        %704 = vmatpush.msra.mxu0 0.0
        %705 = vmatpush.msra.mxu0 0.0
        %706 = vmatpush.msra.mxu0 0.0
        %707 = vmatpush.msra.mxu0 0.0
        %708 = vmatpush.msra.mxu0 0.0
        %709 = vmatpush.msra.mxu0 %v354
        %710 = vmatpush.msra.mxu0 %v353
        %711 = vmatpush.msra.mxu0 %v352
        %712 = vmatpush.msra.mxu0 %v351
        %713 = vmatpush.msra.mxu0 %v350
        %714 = vmatpush.msra.mxu0 %v349
        %715 = vmatpush.msra.mxu0 %v348
        %716 = vmatpush.msra.mxu0 %v347
        %717 = vmatmul.f32.gmra.mxu0 %v606
        %v718 = vpop.f32.mrf.mxu0
        %v719 = vadd.f32 %v510, %v718
        %720 = vmatmul.f32.gmra.mxu0 %v609
        %v721 = vpop.f32.mrf.mxu0
        %v722 = vadd.f32 %v513, %v721
        %723 = vmatmul.f32.gmra.mxu0 %v612
        %v724 = vpop.f32.mrf.mxu0
        %v725 = vadd.f32 %v516, %v724
        %726 = vmatmul.f32.gmra.mxu0 %v615
        %v727 = vpop.f32.mrf.mxu0
        %v728 = vadd.f32 %v519, %v727
        %729 = vmatmul.f32.gmra.mxu0 %v618
        %v730 = vpop.f32.mrf.mxu0
        %v731 = vadd.f32 %v522, %v730
        %732 = vmatmul.f32.gmra.mxu0 %v621
        %v733 = vpop.f32.mrf.mxu0
        %v734 = vadd.f32 %v525, %v733
        %735 = vmatmul.f32.gmra.mxu0 %v624
        %v736 = vpop.f32.mrf.mxu0
        %v737 = vadd.f32 %v528, %v736
        %738 = vmatmul.f32.gmra.mxu0 %v627
        %v739 = vpop.f32.mrf.mxu0
        %v740 = vadd.f32 %v531, %v739
        %741 = vmatmul.f32.gmra.mxu0 %v630
        %v742 = vpop.f32.mrf.mxu0
        %v743 = vadd.f32 %v534, %v742
        %744 = vmatmul.f32.gmra.mxu0 %v633
        %v745 = vpop.f32.mrf.mxu0
        %v746 = vadd.f32 %v537, %v745
        %747 = vmatmul.f32.gmra.mxu0 %v636
        %v748 = vpop.f32.mrf.mxu0
        %v749 = vadd.f32 %v540, %v748
        %750 = vmatmul.f32.gmra.mxu0 %v639
        %v751 = vpop.f32.mrf.mxu0
        %v752 = vadd.f32 %v543, %v751
        %753 = vmatmul.f32.gmra.mxu0 %v642
        %v754 = vpop.f32.mrf.mxu0
        %v755 = vadd.f32 %v546, %v754
        %756 = vmatmul.f32.gmra.mxu0 %v645
        %v757 = vpop.f32.mrf.mxu0
        %v758 = vadd.f32 %v549, %v757
        %759 = vmatmul.f32.gmra.mxu0 %v648
        %v760 = vpop.f32.mrf.mxu0
        %v761 = vadd.f32 %v552, %v760
        %762 = vmatmul.f32.gmra.mxu0 %v651
        %v763 = vpop.f32.mrf.mxu0
        %v764 = vadd.f32 %v555, %v763
        %765 = vmatmul.f32.gmra.mxu0 %v654
        %v766 = vpop.f32.mrf.mxu0
        %v767 = vadd.f32 %v558, %v766
        %768 = vmatmul.f32.gmra.mxu0 %v657
        %v769 = vpop.f32.mrf.mxu0
        %v770 = vadd.f32 %v561, %v769
        %771 = vmatmul.f32.gmra.mxu0 %v660
        %v772 = vpop.f32.mrf.mxu0
        %v773 = vadd.f32 %v564, %v772
        %774 = vmatmul.f32.gmra.mxu0 %v663
        %v775 = vpop.f32.mrf.mxu0
        %v776 = vadd.f32 %v567, %v775
        %777 = vmatmul.f32.gmra.mxu0 %v666
        %v778 = vpop.f32.mrf.mxu0
        %v779 = vadd.f32 %v570, %v778
        %780 = vmatmul.f32.gmra.mxu0 %v669
        %v781 = vpop.f32.mrf.mxu0
        %v782 = vadd.f32 %v573, %v781
        %783 = vmatmul.f32.gmra.mxu0 %v672
        %v784 = vpop.f32.mrf.mxu0
        %v785 = vadd.f32 %v576, %v784
        %786 = vmatmul.f32.gmra.mxu0 %v675
        %v787 = vpop.f32.mrf.mxu0
        %v788 = vadd.f32 %v579, %v787
        %789 = vmatmul.f32.gmra.mxu0 %v678
        %v790 = vpop.f32.mrf.mxu0
        %v791 = vadd.f32 %v582, %v790
        %792 = vmatmul.f32.gmra.mxu0 %v681
        %v793 = vpop.f32.mrf.mxu0
        %v794 = vadd.f32 %v585, %v793
        %795 = vmatmul.f32.gmra.mxu0 %v684
        %v796 = vpop.f32.mrf.mxu0
        %v797 = vadd.f32 %v588, %v796
        %798 = vmatmul.f32.gmra.mxu0 %v687
        %v799 = vpop.f32.mrf.mxu0
        %v800 = vadd.f32 %v591, %v799
        %801 = vmatmul.f32.gmra.mxu0 %v690
        %v802 = vpop.f32.mrf.mxu0
        %v803 = vadd.f32 %v594, %v802
        %804 = vmatmul.f32.gmra.mxu0 %v693
        %v805 = vpop.f32.mrf.mxu0
        %v806 = vadd.f32 %v597, %v805
        %807 = vmatmul.f32.gmra.mxu0 %v696
        %v808 = vpop.f32.mrf.mxu0
        %v809 = vadd.f32 %v600, %v808
        %810 = vmatmul.f32.gmra.mxu0 %v699
        %v811 = vpop.f32.mrf.mxu0
        %v812 = vadd.f32 %v603, %v811
        %813 = vdwg.mxu0
        %v814 = vld [vmem:[#allocation2 + $0x2] sm:$0xff]
        %v815 = vld [vmem:[#allocation2 + $0xa] sm:$0xff]
        %v816 = vld [vmem:[#allocation2 + $0x1a] sm:$0xff]
        %v817 = vld [vmem:[#allocation2 + $0x22] sm:$0xff]
        %v818 = vld [vmem:[#allocation2 + $0x32] sm:$0xff]
        %v819 = vld [vmem:[#allocation2 + $0x3a] sm:$0xff]
        %v820 = vld [vmem:[#allocation2 + $0x4a] sm:$0xff]
        %v821 = vld [vmem:[#allocation2 + $0x52] sm:$0xff]
        %v822 = vld [vmem:[#allocation2 + $0x62] sm:$0xff]
        %v823 = vld [vmem:[#allocation2 + $0x6a] sm:$0xff]
        %v824 = vld [vmem:[#allocation2 + $0x7a] sm:$0xff]
        %v825 = vld [vmem:[#allocation2 + $0x82] sm:$0xff]
        %v826 = vld [vmem:[#allocation2 + $0x92] sm:$0xff]
        %v827 = vld [vmem:[#allocation2 + $0x9a] sm:$0xff]
        %v828 = vld [vmem:[#allocation2 + $0xaa] sm:$0xff]
        %v829 = vld [vmem:[#allocation2 + $0xb2] sm:$0xff]
        %v830 = vld [vmem:[#allocation2 + $0xc2] sm:$0xff]
        %v831 = vld [vmem:[#allocation2 + $0xca] sm:$0xff]
        %v832 = vld [vmem:[#allocation2 + $0xda] sm:$0xff]
        %v833 = vld [vmem:[#allocation2 + $0xe2] sm:$0xff]
        %v834 = vld [vmem:[#allocation2 + $0xf2] sm:$0xff]
        %v835 = vld [vmem:[#allocation2 + $0xfa] sm:$0xff]
        %v836 = vld [vmem:[#allocation2 + $0x10a] sm:$0xff]
        %v837 = vld [vmem:[#allocation2 + $0x112] sm:$0xff]
        %v838 = vld [vmem:[#allocation2 + $0x122] sm:$0xff]
        %v839 = vld [vmem:[#allocation2 + $0x12a] sm:$0xff]
        %v840 = vld [vmem:[#allocation2 + $0x13a] sm:$0xff]
        %v841 = vld [vmem:[#allocation2 + $0x142] sm:$0xff]
        %v842 = vld [vmem:[#allocation2 + $0x152] sm:$0xff]
        %v843 = vld [vmem:[#allocation2 + $0x15a] sm:$0xff]
        %v844 = vld [vmem:[#allocation2 + $0x16a] sm:$0xff]
        %v845 = vld [vmem:[#allocation2 + $0x172] sm:$0xff]
        %s846 = scalar_lea.vmem [#allocation6], 128
        %v847 = vld [vmem:[%s846] sm:$0xff]
        %v848 = vld [vmem:[%s846 + $0x8] sm:$0xff]
        %v849 = vld [vmem:[%s846 + $0x10] sm:$0xff]
        %v850 = vld [vmem:[%s846 + $0x18] sm:$0xff]
        %v851 = vld [vmem:[%s846 + $0x20] sm:$0xff]
        %v852 = vld [vmem:[%s846 + $0x28] sm:$0xff]
        %v853 = vld [vmem:[%s846 + $0x30] sm:$0xff]
        %v854 = vld [vmem:[%s846 + $0x38] sm:$0xff]
        %v856 = vsel %vm208, %v814, 0
        %v859 = vsel %vm208, %v815, 0
        %v862 = vsel %vm208, %v816, 0
        %v865 = vsel %vm208, %v817, 0
        %v868 = vsel %vm208, %v818, 0
        %v871 = vsel %vm208, %v819, 0
        %v874 = vsel %vm208, %v820, 0
        %v877 = vsel %vm208, %v821, 0
        %v880 = vsel %vm208, %v822, 0
        %v883 = vsel %vm208, %v823, 0
        %v886 = vsel %vm208, %v824, 0
        %v889 = vsel %vm208, %v825, 0
        %v892 = vsel %vm208, %v826, 0
        %v895 = vsel %vm208, %v827, 0
        %v898 = vsel %vm208, %v828, 0
        %v901 = vsel %vm208, %v829, 0
        %v904 = vsel %vm208, %v830, 0
        %v907 = vsel %vm208, %v831, 0
        %v910 = vsel %vm208, %v832, 0
        %v913 = vsel %vm208, %v833, 0
        %v916 = vsel %vm208, %v834, 0
        %v919 = vsel %vm208, %v835, 0
        %v922 = vsel %vm208, %v836, 0
        %v925 = vsel %vm208, %v837, 0
        %v928 = vsel %vm208, %v838, 0
        %v931 = vsel %vm208, %v839, 0
        %v934 = vsel %vm208, %v840, 0
        %v937 = vsel %vm208, %v841, 0
        %v940 = vsel %vm208, %v842, 0
        %v943 = vsel %vm208, %v843, 0
        %v946 = vsel %vm208, %v844, 0
        %v949 = vsel %vm208, %v845, 0
        %951 = vmatpush.msra.mxu0 0.0
        %952 = vmatpush.msra.mxu0 0.0
        %953 = vmatpush.msra.mxu0 0.0
        %954 = vmatpush.msra.mxu0 0.0
        %955 = vmatpush.msra.mxu0 0.0
        %956 = vmatpush.msra.mxu0 0.0
        %957 = vmatpush.msra.mxu0 0.0
        %958 = vmatpush.msra.mxu0 0.0
        %959 = vmatpush.msra.mxu0 %v854
        %960 = vmatpush.msra.mxu0 %v853
        %961 = vmatpush.msra.mxu0 %v852
        %962 = vmatpush.msra.mxu0 %v851
        %963 = vmatpush.msra.mxu0 %v850
        %964 = vmatpush.msra.mxu0 %v849
        %965 = vmatpush.msra.mxu0 %v848
        %966 = vmatpush.msra.mxu0 %v847
        %967 = vmatmul.f32.gmra.mxu0 %v856
        %v968 = vpop.f32.mrf.mxu0
        %v969 = vadd.f32 0.0, %v968
        %970 = vmatmul.f32.gmra.mxu0 %v859
        %v971 = vpop.f32.mrf.mxu0
        %v972 = vadd.f32 0.0, %v971
        %973 = vmatmul.f32.gmra.mxu0 %v862
        %v974 = vpop.f32.mrf.mxu0
        %v975 = vadd.f32 0.0, %v974
        %976 = vmatmul.f32.gmra.mxu0 %v865
        %v977 = vpop.f32.mrf.mxu0
        %v978 = vadd.f32 0.0, %v977
        %979 = vmatmul.f32.gmra.mxu0 %v868
        %v980 = vpop.f32.mrf.mxu0
        %v981 = vadd.f32 0.0, %v980
        %982 = vmatmul.f32.gmra.mxu0 %v871
        %v983 = vpop.f32.mrf.mxu0
        %v984 = vadd.f32 0.0, %v983
        %985 = vmatmul.f32.gmra.mxu0 %v874
        %v986 = vpop.f32.mrf.mxu0
        %v987 = vadd.f32 0.0, %v986
        %988 = vmatmul.f32.gmra.mxu0 %v877
        %v989 = vpop.f32.mrf.mxu0
        %v990 = vadd.f32 0.0, %v989
        %991 = vmatmul.f32.gmra.mxu0 %v880
        %v992 = vpop.f32.mrf.mxu0
        %v993 = vadd.f32 0.0, %v992
        %994 = vmatmul.f32.gmra.mxu0 %v883
        %v995 = vpop.f32.mrf.mxu0
        %v996 = vadd.f32 0.0, %v995
        %997 = vmatmul.f32.gmra.mxu0 %v886
        %v998 = vpop.f32.mrf.mxu0
        %v999 = vadd.f32 0.0, %v998
        %1000 = vmatmul.f32.gmra.mxu0 %v889
        %v1001 = vpop.f32.mrf.mxu0
        %v1002 = vadd.f32 0.0, %v1001
        %1003 = vmatmul.f32.gmra.mxu0 %v892
        %v1004 = vpop.f32.mrf.mxu0
        %v1005 = vadd.f32 0.0, %v1004
        %1006 = vmatmul.f32.gmra.mxu0 %v895
        %v1007 = vpop.f32.mrf.mxu0
        %v1008 = vadd.f32 0.0, %v1007
        %1009 = vmatmul.f32.gmra.mxu0 %v898
        %v1010 = vpop.f32.mrf.mxu0
        %v1011 = vadd.f32 0.0, %v1010
        %1012 = vmatmul.f32.gmra.mxu0 %v901
        %v1013 = vpop.f32.mrf.mxu0
        %v1014 = vadd.f32 0.0, %v1013
        %1015 = vmatmul.f32.gmra.mxu0 %v904
        %v1016 = vpop.f32.mrf.mxu0
        %v1017 = vadd.f32 0.0, %v1016
        %1018 = vmatmul.f32.gmra.mxu0 %v907
        %v1019 = vpop.f32.mrf.mxu0
        %v1020 = vadd.f32 0.0, %v1019
        %1021 = vmatmul.f32.gmra.mxu0 %v910
        %v1022 = vpop.f32.mrf.mxu0
        %v1023 = vadd.f32 0.0, %v1022
        %1024 = vmatmul.f32.gmra.mxu0 %v913
        %v1025 = vpop.f32.mrf.mxu0
        %v1026 = vadd.f32 0.0, %v1025
        %1027 = vmatmul.f32.gmra.mxu0 %v916
        %v1028 = vpop.f32.mrf.mxu0
        %v1029 = vadd.f32 0.0, %v1028
        %1030 = vmatmul.f32.gmra.mxu0 %v919
        %v1031 = vpop.f32.mrf.mxu0
        %v1032 = vadd.f32 0.0, %v1031
        %1033 = vmatmul.f32.gmra.mxu0 %v922
        %v1034 = vpop.f32.mrf.mxu0
        %v1035 = vadd.f32 0.0, %v1034
        %1036 = vmatmul.f32.gmra.mxu0 %v925
        %v1037 = vpop.f32.mrf.mxu0
        %v1038 = vadd.f32 0.0, %v1037
        %1039 = vmatmul.f32.gmra.mxu0 %v928
        %v1040 = vpop.f32.mrf.mxu0
        %v1041 = vadd.f32 0.0, %v1040
        %1042 = vmatmul.f32.gmra.mxu0 %v931
        %v1043 = vpop.f32.mrf.mxu0
        %v1044 = vadd.f32 0.0, %v1043
        %1045 = vmatmul.f32.gmra.mxu0 %v934
        %v1046 = vpop.f32.mrf.mxu0
        %v1047 = vadd.f32 0.0, %v1046
        %1048 = vmatmul.f32.gmra.mxu0 %v937
        %v1049 = vpop.f32.mrf.mxu0
        %v1050 = vadd.f32 0.0, %v1049
        %1051 = vmatmul.f32.gmra.mxu0 %v940
        %v1052 = vpop.f32.mrf.mxu0
        %v1053 = vadd.f32 0.0, %v1052
        %1054 = vmatmul.f32.gmra.mxu0 %v943
        %v1055 = vpop.f32.mrf.mxu0
        %v1056 = vadd.f32 0.0, %v1055
        %1057 = vmatmul.f32.gmra.mxu0 %v946
        %v1058 = vpop.f32.mrf.mxu0
        %v1059 = vadd.f32 0.0, %v1058
        %1060 = vmatmul.f32.gmra.mxu0 %v949
        %v1061 = vpop.f32.mrf.mxu0
        %v1062 = vadd.f32 0.0, %v1061
        %1063 = vdwg.mxu0
        %v1064 = vadd.f32 %v719, %v969
        %v1065 = vadd.f32 %v722, %v972
        %v1066 = vadd.f32 %v725, %v975
        %v1067 = vadd.f32 %v728, %v978
        %v1068 = vadd.f32 %v731, %v981
        %v1069 = vadd.f32 %v734, %v984
        %v1070 = vadd.f32 %v737, %v987
        %v1071 = vadd.f32 %v740, %v990
        %v1072 = vadd.f32 %v743, %v993
        %v1073 = vadd.f32 %v746, %v996
        %v1074 = vadd.f32 %v749, %v999
        %v1075 = vadd.f32 %v752, %v1002
        %v1076 = vadd.f32 %v755, %v1005
        %v1077 = vadd.f32 %v758, %v1008
        %v1078 = vadd.f32 %v761, %v1011
        %v1079 = vadd.f32 %v764, %v1014
        %v1080 = vadd.f32 %v767, %v1017
        %v1081 = vadd.f32 %v770, %v1020
        %v1082 = vadd.f32 %v773, %v1023
        %v1083 = vadd.f32 %v776, %v1026
        %v1084 = vadd.f32 %v779, %v1029
        %v1085 = vadd.f32 %v782, %v1032
        %v1086 = vadd.f32 %v785, %v1035
        %v1087 = vadd.f32 %v788, %v1038
        %v1088 = vadd.f32 %v791, %v1041
        %v1089 = vadd.f32 %v794, %v1044
        %v1090 = vadd.f32 %v797, %v1047
        %v1091 = vadd.f32 %v800, %v1050
        %v1092 = vadd.f32 %v803, %v1053
        %v1093 = vadd.f32 %v806, %v1056
        %v1094 = vadd.f32 %v809, %v1059
        %v1095 = vadd.f32 %v812, %v1062
        %v1096 = vld [vmem:[%s217] sm:$0xff]
        %v1097 = vld [vmem:[%s217 + $0x8] sm:$0xff]
        %v1098 = vld [vmem:[%s217 + $0x18] sm:$0xff]
        %v1099 = vld [vmem:[%s217 + $0x20] sm:$0xff]
        %v1100 = vld [vmem:[%s217 + $0x30] sm:$0xff]
        %v1101 = vld [vmem:[%s217 + $0x38] sm:$0xff]
        %v1102 = vld [vmem:[%s217 + $0x48] sm:$0xff]
        %v1103 = vld [vmem:[%s217 + $0x50] sm:$0xff]
        %v1104 = vld [vmem:[%s217 + $0x60] sm:$0xff]
        %v1105 = vld [vmem:[%s217 + $0x68] sm:$0xff]
        %v1106 = vld [vmem:[%s217 + $0x78] sm:$0xff]
        %v1107 = vld [vmem:[%s217 + $0x80] sm:$0xff]
        %v1108 = vld [vmem:[%s217 + $0x90] sm:$0xff]
        %v1109 = vld [vmem:[%s217 + $0x98] sm:$0xff]
        %v1110 = vld [vmem:[%s217 + $0xa8] sm:$0xff]
        %v1111 = vld [vmem:[%s217 + $0xb0] sm:$0xff]
        %v1112 = vld [vmem:[%s217 + $0xc0] sm:$0xff]
        %v1113 = vld [vmem:[%s217 + $0xc8] sm:$0xff]
        %v1114 = vld [vmem:[%s217 + $0xd8] sm:$0xff]
        %v1115 = vld [vmem:[%s217 + $0xe0] sm:$0xff]
        %v1116 = vld [vmem:[%s217 + $0xf0] sm:$0xff]
        %v1117 = vld [vmem:[%s217 + $0xf8] sm:$0xff]
        %v1118 = vld [vmem:[%s217 + $0x108] sm:$0xff]
        %v1119 = vld [vmem:[%s217 + $0x110] sm:$0xff]
        %v1120 = vld [vmem:[%s217 + $0x120] sm:$0xff]
        %v1121 = vld [vmem:[%s217 + $0x128] sm:$0xff]
        %v1122 = vld [vmem:[%s217 + $0x138] sm:$0xff]
        %v1123 = vld [vmem:[%s217 + $0x140] sm:$0xff]
        %v1124 = vld [vmem:[%s217 + $0x150] sm:$0xff]
        %v1125 = vld [vmem:[%s217 + $0x158] sm:$0xff]
        %v1126 = vld [vmem:[%s217 + $0x168] sm:$0xff]
        %v1127 = vld [vmem:[%s217 + $0x170] sm:$0xff]
        %s1128 = scalar_lea.vmem [#allocation6], 192
        %v1129 = vld [vmem:[%s1128] sm:$0xff]
        %v1130 = vld [vmem:[%s1128 + $0x8] sm:$0xff]
        %v1131 = vld [vmem:[%s1128 + $0x10] sm:$0xff]
        %v1132 = vld [vmem:[%s1128 + $0x18] sm:$0xff]
        %v1133 = vld [vmem:[%s1128 + $0x20] sm:$0xff]
        %v1134 = vld [vmem:[%s1128 + $0x28] sm:$0xff]
        %v1135 = vld [vmem:[%s1128 + $0x30] sm:$0xff]
        %v1136 = vld [vmem:[%s1128 + $0x38] sm:$0xff]
        %v1138 = vsel %vm208, %v1096, 0
        %v1141 = vsel %vm208, %v1097, 0
        %v1144 = vsel %vm208, %v1098, 0
        %v1147 = vsel %vm208, %v1099, 0
        %v1150 = vsel %vm208, %v1100, 0
        %v1153 = vsel %vm208, %v1101, 0
        %v1156 = vsel %vm208, %v1102, 0
        %v1159 = vsel %vm208, %v1103, 0
        %v1162 = vsel %vm208, %v1104, 0
        %v1165 = vsel %vm208, %v1105, 0
        %v1168 = vsel %vm208, %v1106, 0
        %v1171 = vsel %vm208, %v1107, 0
        %v1174 = vsel %vm208, %v1108, 0
        %v1177 = vsel %vm208, %v1109, 0
        %v1180 = vsel %vm208, %v1110, 0
        %v1183 = vsel %vm208, %v1111, 0
        %v1186 = vsel %vm208, %v1112, 0
        %v1189 = vsel %vm208, %v1113, 0
        %v1192 = vsel %vm208, %v1114, 0
        %v1195 = vsel %vm208, %v1115, 0
        %v1198 = vsel %vm208, %v1116, 0
        %v1201 = vsel %vm208, %v1117, 0
        %v1204 = vsel %vm208, %v1118, 0
        %v1207 = vsel %vm208, %v1119, 0
        %v1210 = vsel %vm208, %v1120, 0
        %v1213 = vsel %vm208, %v1121, 0
        %v1216 = vsel %vm208, %v1122, 0
        %v1219 = vsel %vm208, %v1123, 0
        %v1222 = vsel %vm208, %v1124, 0
        %v1225 = vsel %vm208, %v1125, 0
        %v1228 = vsel %vm208, %v1126, 0
        %v1231 = vsel %vm208, %v1127, 0
        %1233 = vmatpush.msra.mxu0 0.0
        %1234 = vmatpush.msra.mxu0 0.0
        %1235 = vmatpush.msra.mxu0 0.0
        %1236 = vmatpush.msra.mxu0 0.0
        %1237 = vmatpush.msra.mxu0 0.0
        %1238 = vmatpush.msra.mxu0 0.0
        %1239 = vmatpush.msra.mxu0 0.0
        %1240 = vmatpush.msra.mxu0 0.0
        %1241 = vmatpush.msra.mxu0 %v1136
        %1242 = vmatpush.msra.mxu0 %v1135
        %1243 = vmatpush.msra.mxu0 %v1134
        %1244 = vmatpush.msra.mxu0 %v1133
        %1245 = vmatpush.msra.mxu0 %v1132
        %1246 = vmatpush.msra.mxu0 %v1131
        %1247 = vmatpush.msra.mxu0 %v1130
        %1248 = vmatpush.msra.mxu0 %v1129
        %1249 = vmatmul.f32.gmra.mxu0 %v1138
        %v1250 = vpop.f32.mrf.mxu0
        %v1251 = vadd.f32 0.0, %v1250
        %1252 = vmatmul.f32.gmra.mxu0 %v1141
        %v1253 = vpop.f32.mrf.mxu0
        %v1254 = vadd.f32 0.0, %v1253
        %1255 = vmatmul.f32.gmra.mxu0 %v1144
        %v1256 = vpop.f32.mrf.mxu0
        %v1257 = vadd.f32 0.0, %v1256
        %1258 = vmatmul.f32.gmra.mxu0 %v1147
        %v1259 = vpop.f32.mrf.mxu0
        %v1260 = vadd.f32 0.0, %v1259
        %1261 = vmatmul.f32.gmra.mxu0 %v1150
        %v1262 = vpop.f32.mrf.mxu0
        %v1263 = vadd.f32 0.0, %v1262
        %1264 = vmatmul.f32.gmra.mxu0 %v1153
        %v1265 = vpop.f32.mrf.mxu0
        %v1266 = vadd.f32 0.0, %v1265
        %1267 = vmatmul.f32.gmra.mxu0 %v1156
        %v1268 = vpop.f32.mrf.mxu0
        %v1269 = vadd.f32 0.0, %v1268
        %1270 = vmatmul.f32.gmra.mxu0 %v1159
        %v1271 = vpop.f32.mrf.mxu0
        %v1272 = vadd.f32 0.0, %v1271
        %1273 = vmatmul.f32.gmra.mxu0 %v1162
        %v1274 = vpop.f32.mrf.mxu0
        %v1275 = vadd.f32 0.0, %v1274
        %1276 = vmatmul.f32.gmra.mxu0 %v1165
        %v1277 = vpop.f32.mrf.mxu0
        %v1278 = vadd.f32 0.0, %v1277
        %1279 = vmatmul.f32.gmra.mxu0 %v1168
        %v1280 = vpop.f32.mrf.mxu0
        %v1281 = vadd.f32 0.0, %v1280
        %1282 = vmatmul.f32.gmra.mxu0 %v1171
        %v1283 = vpop.f32.mrf.mxu0
        %v1284 = vadd.f32 0.0, %v1283
        %1285 = vmatmul.f32.gmra.mxu0 %v1174
        %v1286 = vpop.f32.mrf.mxu0
        %v1287 = vadd.f32 0.0, %v1286
        %1288 = vmatmul.f32.gmra.mxu0 %v1177
        %v1289 = vpop.f32.mrf.mxu0
        %v1290 = vadd.f32 0.0, %v1289
        %1291 = vmatmul.f32.gmra.mxu0 %v1180
        %v1292 = vpop.f32.mrf.mxu0
        %v1293 = vadd.f32 0.0, %v1292
        %1294 = vmatmul.f32.gmra.mxu0 %v1183
        %v1295 = vpop.f32.mrf.mxu0
        %v1296 = vadd.f32 0.0, %v1295
        %1297 = vmatmul.f32.gmra.mxu0 %v1186
        %v1298 = vpop.f32.mrf.mxu0
        %v1299 = vadd.f32 0.0, %v1298
        %1300 = vmatmul.f32.gmra.mxu0 %v1189
        %v1301 = vpop.f32.mrf.mxu0
        %v1302 = vadd.f32 0.0, %v1301
        %1303 = vmatmul.f32.gmra.mxu0 %v1192
        %v1304 = vpop.f32.mrf.mxu0
        %v1305 = vadd.f32 0.0, %v1304
        %1306 = vmatmul.f32.gmra.mxu0 %v1195
        %v1307 = vpop.f32.mrf.mxu0
        %v1308 = vadd.f32 0.0, %v1307
        %1309 = vmatmul.f32.gmra.mxu0 %v1198
        %v1310 = vpop.f32.mrf.mxu0
        %v1311 = vadd.f32 0.0, %v1310
        %1312 = vmatmul.f32.gmra.mxu0 %v1201
        %v1313 = vpop.f32.mrf.mxu0
        %v1314 = vadd.f32 0.0, %v1313
        %1315 = vmatmul.f32.gmra.mxu0 %v1204
        %v1316 = vpop.f32.mrf.mxu0
        %v1317 = vadd.f32 0.0, %v1316
        %1318 = vmatmul.f32.gmra.mxu0 %v1207
        %v1319 = vpop.f32.mrf.mxu0
        %v1320 = vadd.f32 0.0, %v1319
        %1321 = vmatmul.f32.gmra.mxu0 %v1210
        %v1322 = vpop.f32.mrf.mxu0
        %v1323 = vadd.f32 0.0, %v1322
        %1324 = vmatmul.f32.gmra.mxu0 %v1213
        %v1325 = vpop.f32.mrf.mxu0
        %v1326 = vadd.f32 0.0, %v1325
        %1327 = vmatmul.f32.gmra.mxu0 %v1216
        %v1328 = vpop.f32.mrf.mxu0
        %v1329 = vadd.f32 0.0, %v1328
        %1330 = vmatmul.f32.gmra.mxu0 %v1219
        %v1331 = vpop.f32.mrf.mxu0
        %v1332 = vadd.f32 0.0, %v1331
        %1333 = vmatmul.f32.gmra.mxu0 %v1222
        %v1334 = vpop.f32.mrf.mxu0
        %v1335 = vadd.f32 0.0, %v1334
        %1336 = vmatmul.f32.gmra.mxu0 %v1225
        %v1337 = vpop.f32.mrf.mxu0
        %v1338 = vadd.f32 0.0, %v1337
        %1339 = vmatmul.f32.gmra.mxu0 %v1228
        %v1340 = vpop.f32.mrf.mxu0
        %v1341 = vadd.f32 0.0, %v1340
        %1342 = vmatmul.f32.gmra.mxu0 %v1231
        %v1343 = vpop.f32.mrf.mxu0
        %v1344 = vadd.f32 0.0, %v1343
        %1345 = vdwg.mxu0
        %v1346 = vadd.f32 %v1064, %v1251
        %v1347 = vadd.f32 %v1065, %v1254
        %v1348 = vadd.f32 %v1066, %v1257
        %v1349 = vadd.f32 %v1067, %v1260
        %v1350 = vadd.f32 %v1068, %v1263
        %v1351 = vadd.f32 %v1069, %v1266
        %v1352 = vadd.f32 %v1070, %v1269
        %v1353 = vadd.f32 %v1071, %v1272
        %v1354 = vadd.f32 %v1072, %v1275
        %v1355 = vadd.f32 %v1073, %v1278
        %v1356 = vadd.f32 %v1074, %v1281
        %v1357 = vadd.f32 %v1075, %v1284
        %v1358 = vadd.f32 %v1076, %v1287
        %v1359 = vadd.f32 %v1077, %v1290
        %v1360 = vadd.f32 %v1078, %v1293
        %v1361 = vadd.f32 %v1079, %v1296
        %v1362 = vadd.f32 %v1080, %v1299
        %v1363 = vadd.f32 %v1081, %v1302
        %v1364 = vadd.f32 %v1082, %v1305
        %v1365 = vadd.f32 %v1083, %v1308
        %v1366 = vadd.f32 %v1084, %v1311
        %v1367 = vadd.f32 %v1085, %v1314
        %v1368 = vadd.f32 %v1086, %v1317
        %v1369 = vadd.f32 %v1087, %v1320
        %v1370 = vadd.f32 %v1088, %v1323
        %v1371 = vadd.f32 %v1089, %v1326
        %v1372 = vadd.f32 %v1090, %v1329
        %v1373 = vadd.f32 %v1091, %v1332
        %v1374 = vadd.f32 %v1092, %v1335
        %v1375 = vadd.f32 %v1093, %v1338
        %v1376 = vadd.f32 %v1094, %v1341
        %v1377 = vadd.f32 %v1095, %v1344
        %v1378 = vld [vmem:[%s217 + $0x1] sm:$0xff]
        %v1379 = vld [vmem:[%s217 + $0x9] sm:$0xff]
        %v1380 = vld [vmem:[%s217 + $0x19] sm:$0xff]
        %v1381 = vld [vmem:[%s217 + $0x21] sm:$0xff]
        %v1382 = vld [vmem:[%s217 + $0x31] sm:$0xff]
        %v1383 = vld [vmem:[%s217 + $0x39] sm:$0xff]
        %v1384 = vld [vmem:[%s217 + $0x49] sm:$0xff]
        %v1385 = vld [vmem:[%s217 + $0x51] sm:$0xff]
        %v1386 = vld [vmem:[%s217 + $0x61] sm:$0xff]
        %v1387 = vld [vmem:[%s217 + $0x69] sm:$0xff]
        %v1388 = vld [vmem:[%s217 + $0x79] sm:$0xff]
        %v1389 = vld [vmem:[%s217 + $0x81] sm:$0xff]
        %v1390 = vld [vmem:[%s217 + $0x91] sm:$0xff]
        %v1391 = vld [vmem:[%s217 + $0x99] sm:$0xff]
        %v1392 = vld [vmem:[%s217 + $0xa9] sm:$0xff]
        %v1393 = vld [vmem:[%s217 + $0xb1] sm:$0xff]
        %v1394 = vld [vmem:[%s217 + $0xc1] sm:$0xff]
        %v1395 = vld [vmem:[%s217 + $0xc9] sm:$0xff]
        %v1396 = vld [vmem:[%s217 + $0xd9] sm:$0xff]
        %v1397 = vld [vmem:[%s217 + $0xe1] sm:$0xff]
        %v1398 = vld [vmem:[%s217 + $0xf1] sm:$0xff]
        %v1399 = vld [vmem:[%s217 + $0xf9] sm:$0xff]
        %v1400 = vld [vmem:[%s217 + $0x109] sm:$0xff]
        %v1401 = vld [vmem:[%s217 + $0x111] sm:$0xff]
        %v1402 = vld [vmem:[%s217 + $0x121] sm:$0xff]
        %v1403 = vld [vmem:[%s217 + $0x129] sm:$0xff]
        %v1404 = vld [vmem:[%s217 + $0x139] sm:$0xff]
        %v1405 = vld [vmem:[%s217 + $0x141] sm:$0xff]
        %v1406 = vld [vmem:[%s217 + $0x151] sm:$0xff]
        %v1407 = vld [vmem:[%s217 + $0x159] sm:$0xff]
        %v1408 = vld [vmem:[%s217 + $0x169] sm:$0xff]
        %v1409 = vld [vmem:[%s217 + $0x171] sm:$0xff]
        %s1410 = scalar_lea.vmem [#allocation6], 256
        %v1411 = vld [vmem:[%s1410] sm:$0xff]
        %v1412 = vld [vmem:[%s1410 + $0x8] sm:$0xff]
        %v1413 = vld [vmem:[%s1410 + $0x10] sm:$0xff]
        %v1414 = vld [vmem:[%s1410 + $0x18] sm:$0xff]
        %v1415 = vld [vmem:[%s1410 + $0x20] sm:$0xff]
        %v1416 = vld [vmem:[%s1410 + $0x28] sm:$0xff]
        %v1417 = vld [vmem:[%s1410 + $0x30] sm:$0xff]
        %v1418 = vld [vmem:[%s1410 + $0x38] sm:$0xff]
        %v1420 = vsel %vm208, %v1378, 0
        %v1423 = vsel %vm208, %v1379, 0
        %v1426 = vsel %vm208, %v1380, 0
        %v1429 = vsel %vm208, %v1381, 0
        %v1432 = vsel %vm208, %v1382, 0
        %v1435 = vsel %vm208, %v1383, 0
        %v1438 = vsel %vm208, %v1384, 0
        %v1441 = vsel %vm208, %v1385, 0
        %v1444 = vsel %vm208, %v1386, 0
        %v1447 = vsel %vm208, %v1387, 0
        %v1450 = vsel %vm208, %v1388, 0
        %v1453 = vsel %vm208, %v1389, 0
        %v1456 = vsel %vm208, %v1390, 0
        %v1459 = vsel %vm208, %v1391, 0
        %v1462 = vsel %vm208, %v1392, 0
        %v1465 = vsel %vm208, %v1393, 0
        %v1468 = vsel %vm208, %v1394, 0
        %v1471 = vsel %vm208, %v1395, 0
        %v1474 = vsel %vm208, %v1396, 0
        %v1477 = vsel %vm208, %v1397, 0
        %v1480 = vsel %vm208, %v1398, 0
        %v1483 = vsel %vm208, %v1399, 0
        %v1486 = vsel %vm208, %v1400, 0
        %v1489 = vsel %vm208, %v1401, 0
        %v1492 = vsel %vm208, %v1402, 0
        %v1495 = vsel %vm208, %v1403, 0
        %v1498 = vsel %vm208, %v1404, 0
        %v1501 = vsel %vm208, %v1405, 0
        %v1504 = vsel %vm208, %v1406, 0
        %v1507 = vsel %vm208, %v1407, 0
        %v1510 = vsel %vm208, %v1408, 0
        %v1513 = vsel %vm208, %v1409, 0
        %1515 = vmatpush.msra.mxu0 0.0
        %1516 = vmatpush.msra.mxu0 0.0
        %1517 = vmatpush.msra.mxu0 0.0
        %1518 = vmatpush.msra.mxu0 0.0
        %1519 = vmatpush.msra.mxu0 0.0
        %1520 = vmatpush.msra.mxu0 0.0
        %1521 = vmatpush.msra.mxu0 0.0
        %1522 = vmatpush.msra.mxu0 0.0
        %1523 = vmatpush.msra.mxu0 %v1418
        %1524 = vmatpush.msra.mxu0 %v1417
        %1525 = vmatpush.msra.mxu0 %v1416
        %1526 = vmatpush.msra.mxu0 %v1415
        %1527 = vmatpush.msra.mxu0 %v1414
        %1528 = vmatpush.msra.mxu0 %v1413
        %1529 = vmatpush.msra.mxu0 %v1412
        %1530 = vmatpush.msra.mxu0 %v1411
        %1531 = vmatmul.f32.gmra.mxu0 %v1420
        %v1532 = vpop.f32.mrf.mxu0
        %v1533 = vadd.f32 0.0, %v1532
        %1534 = vmatmul.f32.gmra.mxu0 %v1423
        %v1535 = vpop.f32.mrf.mxu0
        %v1536 = vadd.f32 0.0, %v1535
        %1537 = vmatmul.f32.gmra.mxu0 %v1426
        %v1538 = vpop.f32.mrf.mxu0
        %v1539 = vadd.f32 0.0, %v1538
        %1540 = vmatmul.f32.gmra.mxu0 %v1429
        %v1541 = vpop.f32.mrf.mxu0
        %v1542 = vadd.f32 0.0, %v1541
        %1543 = vmatmul.f32.gmra.mxu0 %v1432
        %v1544 = vpop.f32.mrf.mxu0
        %v1545 = vadd.f32 0.0, %v1544
        %1546 = vmatmul.f32.gmra.mxu0 %v1435
        %v1547 = vpop.f32.mrf.mxu0
        %v1548 = vadd.f32 0.0, %v1547
        %1549 = vmatmul.f32.gmra.mxu0 %v1438
        %v1550 = vpop.f32.mrf.mxu0
        %v1551 = vadd.f32 0.0, %v1550
        %1552 = vmatmul.f32.gmra.mxu0 %v1441
        %v1553 = vpop.f32.mrf.mxu0
        %v1554 = vadd.f32 0.0, %v1553
        %1555 = vmatmul.f32.gmra.mxu0 %v1444
        %v1556 = vpop.f32.mrf.mxu0
        %v1557 = vadd.f32 0.0, %v1556
        %1558 = vmatmul.f32.gmra.mxu0 %v1447
        %v1559 = vpop.f32.mrf.mxu0
        %v1560 = vadd.f32 0.0, %v1559
        %1561 = vmatmul.f32.gmra.mxu0 %v1450
        %v1562 = vpop.f32.mrf.mxu0
        %v1563 = vadd.f32 0.0, %v1562
        %1564 = vmatmul.f32.gmra.mxu0 %v1453
        %v1565 = vpop.f32.mrf.mxu0
        %v1566 = vadd.f32 0.0, %v1565
        %1567 = vmatmul.f32.gmra.mxu0 %v1456
        %v1568 = vpop.f32.mrf.mxu0
        %v1569 = vadd.f32 0.0, %v1568
        %1570 = vmatmul.f32.gmra.mxu0 %v1459
        %v1571 = vpop.f32.mrf.mxu0
        %v1572 = vadd.f32 0.0, %v1571
        %1573 = vmatmul.f32.gmra.mxu0 %v1462
        %v1574 = vpop.f32.mrf.mxu0
        %v1575 = vadd.f32 0.0, %v1574
        %1576 = vmatmul.f32.gmra.mxu0 %v1465
        %v1577 = vpop.f32.mrf.mxu0
        %v1578 = vadd.f32 0.0, %v1577
        %1579 = vmatmul.f32.gmra.mxu0 %v1468
        %v1580 = vpop.f32.mrf.mxu0
        %v1581 = vadd.f32 0.0, %v1580
        %1582 = vmatmul.f32.gmra.mxu0 %v1471
        %v1583 = vpop.f32.mrf.mxu0
        %v1584 = vadd.f32 0.0, %v1583
        %1585 = vmatmul.f32.gmra.mxu0 %v1474
        %v1586 = vpop.f32.mrf.mxu0
        %v1587 = vadd.f32 0.0, %v1586
        %1588 = vmatmul.f32.gmra.mxu0 %v1477
        %v1589 = vpop.f32.mrf.mxu0
        %v1590 = vadd.f32 0.0, %v1589
        %1591 = vmatmul.f32.gmra.mxu0 %v1480
        %v1592 = vpop.f32.mrf.mxu0
        %v1593 = vadd.f32 0.0, %v1592
        %1594 = vmatmul.f32.gmra.mxu0 %v1483
        %v1595 = vpop.f32.mrf.mxu0
        %v1596 = vadd.f32 0.0, %v1595
        %1597 = vmatmul.f32.gmra.mxu0 %v1486
        %v1598 = vpop.f32.mrf.mxu0
        %v1599 = vadd.f32 0.0, %v1598
        %1600 = vmatmul.f32.gmra.mxu0 %v1489
        %v1601 = vpop.f32.mrf.mxu0
        %v1602 = vadd.f32 0.0, %v1601
        %1603 = vmatmul.f32.gmra.mxu0 %v1492
        %v1604 = vpop.f32.mrf.mxu0
        %v1605 = vadd.f32 0.0, %v1604
        %1606 = vmatmul.f32.gmra.mxu0 %v1495
        %v1607 = vpop.f32.mrf.mxu0
        %v1608 = vadd.f32 0.0, %v1607
        %1609 = vmatmul.f32.gmra.mxu0 %v1498
        %v1610 = vpop.f32.mrf.mxu0
        %v1611 = vadd.f32 0.0, %v1610
        %1612 = vmatmul.f32.gmra.mxu0 %v1501
        %v1613 = vpop.f32.mrf.mxu0
        %v1614 = vadd.f32 0.0, %v1613
        %1615 = vmatmul.f32.gmra.mxu0 %v1504
        %v1616 = vpop.f32.mrf.mxu0
        %v1617 = vadd.f32 0.0, %v1616
        %1618 = vmatmul.f32.gmra.mxu0 %v1507
        %v1619 = vpop.f32.mrf.mxu0
        %v1620 = vadd.f32 0.0, %v1619
        %1621 = vmatmul.f32.gmra.mxu0 %v1510
        %v1622 = vpop.f32.mrf.mxu0
        %v1623 = vadd.f32 0.0, %v1622
        %1624 = vmatmul.f32.gmra.mxu0 %v1513
        %v1625 = vpop.f32.mrf.mxu0
        %v1626 = vadd.f32 0.0, %v1625
        %1627 = vdwg.mxu0
        %v1628 = vadd.f32 %v1346, %v1533
        %v1629 = vadd.f32 %v1347, %v1536
        %v1630 = vadd.f32 %v1348, %v1539
        %v1631 = vadd.f32 %v1349, %v1542
        %v1632 = vadd.f32 %v1350, %v1545
        %v1633 = vadd.f32 %v1351, %v1548
        %v1634 = vadd.f32 %v1352, %v1551
        %v1635 = vadd.f32 %v1353, %v1554
        %v1636 = vadd.f32 %v1354, %v1557
        %v1637 = vadd.f32 %v1355, %v1560
        %v1638 = vadd.f32 %v1356, %v1563
        %v1639 = vadd.f32 %v1357, %v1566
        %v1640 = vadd.f32 %v1358, %v1569
        %v1641 = vadd.f32 %v1359, %v1572
        %v1642 = vadd.f32 %v1360, %v1575
        %v1643 = vadd.f32 %v1361, %v1578
        %v1644 = vadd.f32 %v1362, %v1581
        %v1645 = vadd.f32 %v1363, %v1584
        %v1646 = vadd.f32 %v1364, %v1587
        %v1647 = vadd.f32 %v1365, %v1590
        %v1648 = vadd.f32 %v1366, %v1593
        %v1649 = vadd.f32 %v1367, %v1596
        %v1650 = vadd.f32 %v1368, %v1599
        %v1651 = vadd.f32 %v1369, %v1602
        %v1652 = vadd.f32 %v1370, %v1605
        %v1653 = vadd.f32 %v1371, %v1608
        %v1654 = vadd.f32 %v1372, %v1611
        %v1655 = vadd.f32 %v1373, %v1614
        %v1656 = vadd.f32 %v1374, %v1617
        %v1657 = vadd.f32 %v1375, %v1620
        %v1658 = vadd.f32 %v1376, %v1623
        %v1659 = vadd.f32 %v1377, %v1626
        %v1660 = vld [vmem:[%s217 + $0x2] sm:$0xff]
        %v1661 = vld [vmem:[%s217 + $0xa] sm:$0xff]
        %v1662 = vld [vmem:[%s217 + $0x1a] sm:$0xff]
        %v1663 = vld [vmem:[%s217 + $0x22] sm:$0xff]
        %v1664 = vld [vmem:[%s217 + $0x32] sm:$0xff]
        %v1665 = vld [vmem:[%s217 + $0x3a] sm:$0xff]
        %v1666 = vld [vmem:[%s217 + $0x4a] sm:$0xff]
        %v1667 = vld [vmem:[%s217 + $0x52] sm:$0xff]
        %v1668 = vld [vmem:[%s217 + $0x62] sm:$0xff]
        %v1669 = vld [vmem:[%s217 + $0x6a] sm:$0xff]
        %v1670 = vld [vmem:[%s217 + $0x7a] sm:$0xff]
        %v1671 = vld [vmem:[%s217 + $0x82] sm:$0xff]
        %v1672 = vld [vmem:[%s217 + $0x92] sm:$0xff]
        %v1673 = vld [vmem:[%s217 + $0x9a] sm:$0xff]
        %v1674 = vld [vmem:[%s217 + $0xaa] sm:$0xff]
        %v1675 = vld [vmem:[%s217 + $0xb2] sm:$0xff]
        %v1676 = vld [vmem:[%s217 + $0xc2] sm:$0xff]
        %v1677 = vld [vmem:[%s217 + $0xca] sm:$0xff]
        %v1678 = vld [vmem:[%s217 + $0xda] sm:$0xff]
        %v1679 = vld [vmem:[%s217 + $0xe2] sm:$0xff]
        %v1680 = vld [vmem:[%s217 + $0xf2] sm:$0xff]
        %v1681 = vld [vmem:[%s217 + $0xfa] sm:$0xff]
        %v1682 = vld [vmem:[%s217 + $0x10a] sm:$0xff]
        %v1683 = vld [vmem:[%s217 + $0x112] sm:$0xff]
        %v1684 = vld [vmem:[%s217 + $0x122] sm:$0xff]
        %v1685 = vld [vmem:[%s217 + $0x12a] sm:$0xff]
        %v1686 = vld [vmem:[%s217 + $0x13a] sm:$0xff]
        %v1687 = vld [vmem:[%s217 + $0x142] sm:$0xff]
        %v1688 = vld [vmem:[%s217 + $0x152] sm:$0xff]
        %v1689 = vld [vmem:[%s217 + $0x15a] sm:$0xff]
        %v1690 = vld [vmem:[%s217 + $0x16a] sm:$0xff]
        %v1691 = vld [vmem:[%s217 + $0x172] sm:$0xff]
        %s1692 = scalar_lea.vmem [#allocation6], 320
        %v1693 = vld [vmem:[%s1692] sm:$0xff]
        %v1694 = vld [vmem:[%s1692 + $0x8] sm:$0xff]
        %v1695 = vld [vmem:[%s1692 + $0x10] sm:$0xff]
        %v1696 = vld [vmem:[%s1692 + $0x18] sm:$0xff]
        %v1697 = vld [vmem:[%s1692 + $0x20] sm:$0xff]
        %v1698 = vld [vmem:[%s1692 + $0x28] sm:$0xff]
        %v1699 = vld [vmem:[%s1692 + $0x30] sm:$0xff]
        %v1700 = vld [vmem:[%s1692 + $0x38] sm:$0xff]
        %v1702 = vsel %vm208, %v1660, 0
        %v1705 = vsel %vm208, %v1661, 0
        %v1708 = vsel %vm208, %v1662, 0
        %v1711 = vsel %vm208, %v1663, 0
        %v1714 = vsel %vm208, %v1664, 0
        %v1717 = vsel %vm208, %v1665, 0
        %v1720 = vsel %vm208, %v1666, 0
        %v1723 = vsel %vm208, %v1667, 0
        %v1726 = vsel %vm208, %v1668, 0
        %v1729 = vsel %vm208, %v1669, 0
        %v1732 = vsel %vm208, %v1670, 0
        %v1735 = vsel %vm208, %v1671, 0
        %v1738 = vsel %vm208, %v1672, 0
        %v1741 = vsel %vm208, %v1673, 0
        %v1744 = vsel %vm208, %v1674, 0
        %v1747 = vsel %vm208, %v1675, 0
        %v1750 = vsel %vm208, %v1676, 0
        %v1753 = vsel %vm208, %v1677, 0
        %v1756 = vsel %vm208, %v1678, 0
        %v1759 = vsel %vm208, %v1679, 0
        %v1762 = vsel %vm208, %v1680, 0
        %v1765 = vsel %vm208, %v1681, 0
        %v1768 = vsel %vm208, %v1682, 0
        %v1771 = vsel %vm208, %v1683, 0
        %v1774 = vsel %vm208, %v1684, 0
        %v1777 = vsel %vm208, %v1685, 0
        %v1780 = vsel %vm208, %v1686, 0
        %v1783 = vsel %vm208, %v1687, 0
        %v1786 = vsel %vm208, %v1688, 0
        %v1789 = vsel %vm208, %v1689, 0
        %v1792 = vsel %vm208, %v1690, 0
        %v1795 = vsel %vm208, %v1691, 0
        %1797 = vmatpush.msra.mxu0 0.0
        %1798 = vmatpush.msra.mxu0 0.0
        %1799 = vmatpush.msra.mxu0 0.0
        %1800 = vmatpush.msra.mxu0 0.0
        %1801 = vmatpush.msra.mxu0 0.0
        %1802 = vmatpush.msra.mxu0 0.0
        %1803 = vmatpush.msra.mxu0 0.0
        %1804 = vmatpush.msra.mxu0 0.0
        %1805 = vmatpush.msra.mxu0 %v1700
        %1806 = vmatpush.msra.mxu0 %v1699
        %1807 = vmatpush.msra.mxu0 %v1698
        %1808 = vmatpush.msra.mxu0 %v1697
        %1809 = vmatpush.msra.mxu0 %v1696
        %1810 = vmatpush.msra.mxu0 %v1695
        %1811 = vmatpush.msra.mxu0 %v1694
        %1812 = vmatpush.msra.mxu0 %v1693
        %1813 = vmatmul.f32.gmra.mxu0 %v1702
        %v1814 = vpop.f32.mrf.mxu0
        %v1815 = vadd.f32 0.0, %v1814
        %1816 = vmatmul.f32.gmra.mxu0 %v1705
        %v1817 = vpop.f32.mrf.mxu0
        %v1818 = vadd.f32 0.0, %v1817
        %1819 = vmatmul.f32.gmra.mxu0 %v1708
        %v1820 = vpop.f32.mrf.mxu0
        %v1821 = vadd.f32 0.0, %v1820
        %1822 = vmatmul.f32.gmra.mxu0 %v1711
        %v1823 = vpop.f32.mrf.mxu0
        %v1824 = vadd.f32 0.0, %v1823
        %1825 = vmatmul.f32.gmra.mxu0 %v1714
        %v1826 = vpop.f32.mrf.mxu0
        %v1827 = vadd.f32 0.0, %v1826
        %1828 = vmatmul.f32.gmra.mxu0 %v1717
        %v1829 = vpop.f32.mrf.mxu0
        %v1830 = vadd.f32 0.0, %v1829
        %1831 = vmatmul.f32.gmra.mxu0 %v1720
        %v1832 = vpop.f32.mrf.mxu0
        %v1833 = vadd.f32 0.0, %v1832
        %1834 = vmatmul.f32.gmra.mxu0 %v1723
        %v1835 = vpop.f32.mrf.mxu0
        %v1836 = vadd.f32 0.0, %v1835
        %1837 = vmatmul.f32.gmra.mxu0 %v1726
        %v1838 = vpop.f32.mrf.mxu0
        %v1839 = vadd.f32 0.0, %v1838
        %1840 = vmatmul.f32.gmra.mxu0 %v1729
        %v1841 = vpop.f32.mrf.mxu0
        %v1842 = vadd.f32 0.0, %v1841
        %1843 = vmatmul.f32.gmra.mxu0 %v1732
        %v1844 = vpop.f32.mrf.mxu0
        %v1845 = vadd.f32 0.0, %v1844
        %1846 = vmatmul.f32.gmra.mxu0 %v1735
        %v1847 = vpop.f32.mrf.mxu0
        %v1848 = vadd.f32 0.0, %v1847
        %1849 = vmatmul.f32.gmra.mxu0 %v1738
        %v1850 = vpop.f32.mrf.mxu0
        %v1851 = vadd.f32 0.0, %v1850
        %1852 = vmatmul.f32.gmra.mxu0 %v1741
        %v1853 = vpop.f32.mrf.mxu0
        %v1854 = vadd.f32 0.0, %v1853
        %1855 = vmatmul.f32.gmra.mxu0 %v1744
        %v1856 = vpop.f32.mrf.mxu0
        %v1857 = vadd.f32 0.0, %v1856
        %1858 = vmatmul.f32.gmra.mxu0 %v1747
        %v1859 = vpop.f32.mrf.mxu0
        %v1860 = vadd.f32 0.0, %v1859
        %1861 = vmatmul.f32.gmra.mxu0 %v1750
        %v1862 = vpop.f32.mrf.mxu0
        %v1863 = vadd.f32 0.0, %v1862
        %1864 = vmatmul.f32.gmra.mxu0 %v1753
        %v1865 = vpop.f32.mrf.mxu0
        %v1866 = vadd.f32 0.0, %v1865
        %1867 = vmatmul.f32.gmra.mxu0 %v1756
        %v1868 = vpop.f32.mrf.mxu0
        %v1869 = vadd.f32 0.0, %v1868
        %1870 = vmatmul.f32.gmra.mxu0 %v1759
        %v1871 = vpop.f32.mrf.mxu0
        %v1872 = vadd.f32 0.0, %v1871
        %1873 = vmatmul.f32.gmra.mxu0 %v1762
        %v1874 = vpop.f32.mrf.mxu0
        %v1875 = vadd.f32 0.0, %v1874
        %1876 = vmatmul.f32.gmra.mxu0 %v1765
        %v1877 = vpop.f32.mrf.mxu0
        %v1878 = vadd.f32 0.0, %v1877
        %1879 = vmatmul.f32.gmra.mxu0 %v1768
        %v1880 = vpop.f32.mrf.mxu0
        %v1881 = vadd.f32 0.0, %v1880
        %1882 = vmatmul.f32.gmra.mxu0 %v1771
        %v1883 = vpop.f32.mrf.mxu0
        %v1884 = vadd.f32 0.0, %v1883
        %1885 = vmatmul.f32.gmra.mxu0 %v1774
        %v1886 = vpop.f32.mrf.mxu0
        %v1887 = vadd.f32 0.0, %v1886
        %1888 = vmatmul.f32.gmra.mxu0 %v1777
        %v1889 = vpop.f32.mrf.mxu0
        %v1890 = vadd.f32 0.0, %v1889
        %1891 = vmatmul.f32.gmra.mxu0 %v1780
        %v1892 = vpop.f32.mrf.mxu0
        %v1893 = vadd.f32 0.0, %v1892
        %1894 = vmatmul.f32.gmra.mxu0 %v1783
        %v1895 = vpop.f32.mrf.mxu0
        %v1896 = vadd.f32 0.0, %v1895
        %1897 = vmatmul.f32.gmra.mxu0 %v1786
        %v1898 = vpop.f32.mrf.mxu0
        %v1899 = vadd.f32 0.0, %v1898
        %1900 = vmatmul.f32.gmra.mxu0 %v1789
        %v1901 = vpop.f32.mrf.mxu0
        %v1902 = vadd.f32 0.0, %v1901
        %1903 = vmatmul.f32.gmra.mxu0 %v1792
        %v1904 = vpop.f32.mrf.mxu0
        %v1905 = vadd.f32 0.0, %v1904
        %1906 = vmatmul.f32.gmra.mxu0 %v1795
        %v1907 = vpop.f32.mrf.mxu0
        %v1908 = vadd.f32 0.0, %v1907
        %1909 = vdwg.mxu0
        %v1910 = vadd.f32 %v1628, %v1815
        %v1911 = vadd.f32 %v1629, %v1818
        %v1912 = vadd.f32 %v1630, %v1821
        %v1913 = vadd.f32 %v1631, %v1824
        %v1914 = vadd.f32 %v1632, %v1827
        %v1915 = vadd.f32 %v1633, %v1830
        %v1916 = vadd.f32 %v1634, %v1833
        %v1917 = vadd.f32 %v1635, %v1836
        %v1918 = vadd.f32 %v1636, %v1839
        %v1919 = vadd.f32 %v1637, %v1842
        %v1920 = vadd.f32 %v1638, %v1845
        %v1921 = vadd.f32 %v1639, %v1848
        %v1922 = vadd.f32 %v1640, %v1851
        %v1923 = vadd.f32 %v1641, %v1854
        %v1924 = vadd.f32 %v1642, %v1857
        %v1925 = vadd.f32 %v1643, %v1860
        %v1926 = vadd.f32 %v1644, %v1863
        %v1927 = vadd.f32 %v1645, %v1866
        %v1928 = vadd.f32 %v1646, %v1869
        %v1929 = vadd.f32 %v1647, %v1872
        %v1930 = vadd.f32 %v1648, %v1875
        %v1931 = vadd.f32 %v1649, %v1878
        %v1932 = vadd.f32 %v1650, %v1881
        %v1933 = vadd.f32 %v1651, %v1884
        %v1934 = vadd.f32 %v1652, %v1887
        %v1935 = vadd.f32 %v1653, %v1890
        %v1936 = vadd.f32 %v1654, %v1893
        %v1937 = vadd.f32 %v1655, %v1896
        %v1938 = vadd.f32 %v1656, %v1899
        %v1939 = vadd.f32 %v1657, %v1902
        %v1940 = vadd.f32 %v1658, %v1905
        %v1941 = vadd.f32 %v1659, %v1908
        %s1942 = scalar_lea.vmem [#allocation2], 48
        %v1943 = vld [vmem:[%s1942] sm:$0xff]
        %v1944 = vld [vmem:[%s1942 + $0x8] sm:$0xff]
        %v1945 = vld [vmem:[%s1942 + $0x18] sm:$0xff]
        %v1946 = vld [vmem:[%s1942 + $0x20] sm:$0xff]
        %v1947 = vld [vmem:[%s1942 + $0x30] sm:$0xff]
        %v1948 = vld [vmem:[%s1942 + $0x38] sm:$0xff]
        %v1949 = vld [vmem:[%s1942 + $0x48] sm:$0xff]
        %v1950 = vld [vmem:[%s1942 + $0x50] sm:$0xff]
        %v1951 = vld [vmem:[%s1942 + $0x60] sm:$0xff]
        %v1952 = vld [vmem:[%s1942 + $0x68] sm:$0xff]
        %v1953 = vld [vmem:[%s1942 + $0x78] sm:$0xff]
        %v1954 = vld [vmem:[%s1942 + $0x80] sm:$0xff]
        %v1955 = vld [vmem:[%s1942 + $0x90] sm:$0xff]
        %v1956 = vld [vmem:[%s1942 + $0x98] sm:$0xff]
        %v1957 = vld [vmem:[%s1942 + $0xa8] sm:$0xff]
        %v1958 = vld [vmem:[%s1942 + $0xb0] sm:$0xff]
        %v1959 = vld [vmem:[%s1942 + $0xc0] sm:$0xff]
        %v1960 = vld [vmem:[%s1942 + $0xc8] sm:$0xff]
        %v1961 = vld [vmem:[%s1942 + $0xd8] sm:$0xff]
        %v1962 = vld [vmem:[%s1942 + $0xe0] sm:$0xff]
        %v1963 = vld [vmem:[%s1942 + $0xf0] sm:$0xff]
        %v1964 = vld [vmem:[%s1942 + $0xf8] sm:$0xff]
        %v1965 = vld [vmem:[%s1942 + $0x108] sm:$0xff]
        %v1966 = vld [vmem:[%s1942 + $0x110] sm:$0xff]
        %v1967 = vld [vmem:[%s1942 + $0x120] sm:$0xff]
        %v1968 = vld [vmem:[%s1942 + $0x128] sm:$0xff]
        %v1969 = vld [vmem:[%s1942 + $0x138] sm:$0xff]
        %v1970 = vld [vmem:[%s1942 + $0x140] sm:$0xff]
        %v1971 = vld [vmem:[%s1942 + $0x150] sm:$0xff]
        %v1972 = vld [vmem:[%s1942 + $0x158] sm:$0xff]
        %v1973 = vld [vmem:[%s1942 + $0x168] sm:$0xff]
        %v1974 = vld [vmem:[%s1942 + $0x170] sm:$0xff]
        %s1975 = scalar_lea.vmem [#allocation6], 384
        %v1976 = vld [vmem:[%s1975] sm:$0xff]
        %v1977 = vld [vmem:[%s1975 + $0x8] sm:$0xff]
        %v1978 = vld [vmem:[%s1975 + $0x10] sm:$0xff]
        %v1979 = vld [vmem:[%s1975 + $0x18] sm:$0xff]
        %v1980 = vld [vmem:[%s1975 + $0x20] sm:$0xff]
        %v1981 = vld [vmem:[%s1975 + $0x28] sm:$0xff]
        %v1982 = vld [vmem:[%s1975 + $0x30] sm:$0xff]
        %v1983 = vld [vmem:[%s1975 + $0x38] sm:$0xff]
        %v1985 = vsel %vm208, %v1943, 0
        %v1988 = vsel %vm208, %v1944, 0
        %v1991 = vsel %vm208, %v1945, 0
        %v1994 = vsel %vm208, %v1946, 0
        %v1997 = vsel %vm208, %v1947, 0
        %v2000 = vsel %vm208, %v1948, 0
        %v2003 = vsel %vm208, %v1949, 0
        %v2006 = vsel %vm208, %v1950, 0
        %v2009 = vsel %vm208, %v1951, 0
        %v2012 = vsel %vm208, %v1952, 0
        %v2015 = vsel %vm208, %v1953, 0
        %v2018 = vsel %vm208, %v1954, 0
        %v2021 = vsel %vm208, %v1955, 0
        %v2024 = vsel %vm208, %v1956, 0
        %v2027 = vsel %vm208, %v1957, 0
        %v2030 = vsel %vm208, %v1958, 0
        %v2033 = vsel %vm208, %v1959, 0
        %v2036 = vsel %vm208, %v1960, 0
        %v2039 = vsel %vm208, %v1961, 0
        %v2042 = vsel %vm208, %v1962, 0
        %v2045 = vsel %vm208, %v1963, 0
        %v2048 = vsel %vm208, %v1964, 0
        %v2051 = vsel %vm208, %v1965, 0
        %v2054 = vsel %vm208, %v1966, 0
        %v2057 = vsel %vm208, %v1967, 0
        %v2060 = vsel %vm208, %v1968, 0
        %v2063 = vsel %vm208, %v1969, 0
        %v2066 = vsel %vm208, %v1970, 0
        %v2069 = vsel %vm208, %v1971, 0
        %v2072 = vsel %vm208, %v1972, 0
        %v2075 = vsel %vm208, %v1973, 0
        %v2078 = vsel %vm208, %v1974, 0
        %2080 = vmatpush.msra.mxu0 0.0
        %2081 = vmatpush.msra.mxu0 0.0
        %2082 = vmatpush.msra.mxu0 0.0
        %2083 = vmatpush.msra.mxu0 0.0
        %2084 = vmatpush.msra.mxu0 0.0
        %2085 = vmatpush.msra.mxu0 0.0
        %2086 = vmatpush.msra.mxu0 0.0
        %2087 = vmatpush.msra.mxu0 0.0
        %2088 = vmatpush.msra.mxu0 %v1983
        %2089 = vmatpush.msra.mxu0 %v1982
        %2090 = vmatpush.msra.mxu0 %v1981
        %2091 = vmatpush.msra.mxu0 %v1980
        %2092 = vmatpush.msra.mxu0 %v1979
        %2093 = vmatpush.msra.mxu0 %v1978
        %2094 = vmatpush.msra.mxu0 %v1977
        %2095 = vmatpush.msra.mxu0 %v1976
        %2096 = vmatmul.f32.gmra.mxu0 %v1985
        %v2097 = vpop.f32.mrf.mxu0
        %v2098 = vadd.f32 0.0, %v2097
        %2099 = vmatmul.f32.gmra.mxu0 %v1988
        %v2100 = vpop.f32.mrf.mxu0
        %v2101 = vadd.f32 0.0, %v2100
        %2102 = vmatmul.f32.gmra.mxu0 %v1991
        %v2103 = vpop.f32.mrf.mxu0
        %v2104 = vadd.f32 0.0, %v2103
        %2105 = vmatmul.f32.gmra.mxu0 %v1994
        %v2106 = vpop.f32.mrf.mxu0
        %v2107 = vadd.f32 0.0, %v2106
        %2108 = vmatmul.f32.gmra.mxu0 %v1997
        %v2109 = vpop.f32.mrf.mxu0
        %v2110 = vadd.f32 0.0, %v2109
        %2111 = vmatmul.f32.gmra.mxu0 %v2000
        %v2112 = vpop.f32.mrf.mxu0
        %v2113 = vadd.f32 0.0, %v2112
        %2114 = vmatmul.f32.gmra.mxu0 %v2003
        %v2115 = vpop.f32.mrf.mxu0
        %v2116 = vadd.f32 0.0, %v2115
        %2117 = vmatmul.f32.gmra.mxu0 %v2006
        %v2118 = vpop.f32.mrf.mxu0
        %v2119 = vadd.f32 0.0, %v2118
        %2120 = vmatmul.f32.gmra.mxu0 %v2009
        %v2121 = vpop.f32.mrf.mxu0
        %v2122 = vadd.f32 0.0, %v2121
        %2123 = vmatmul.f32.gmra.mxu0 %v2012
        %v2124 = vpop.f32.mrf.mxu0
        %v2125 = vadd.f32 0.0, %v2124
        %2126 = vmatmul.f32.gmra.mxu0 %v2015
        %v2127 = vpop.f32.mrf.mxu0
        %v2128 = vadd.f32 0.0, %v2127
        %2129 = vmatmul.f32.gmra.mxu0 %v2018
        %v2130 = vpop.f32.mrf.mxu0
        %v2131 = vadd.f32 0.0, %v2130
        %2132 = vmatmul.f32.gmra.mxu0 %v2021
        %v2133 = vpop.f32.mrf.mxu0
        %v2134 = vadd.f32 0.0, %v2133
        %2135 = vmatmul.f32.gmra.mxu0 %v2024
        %v2136 = vpop.f32.mrf.mxu0
        %v2137 = vadd.f32 0.0, %v2136
        %2138 = vmatmul.f32.gmra.mxu0 %v2027
        %v2139 = vpop.f32.mrf.mxu0
        %v2140 = vadd.f32 0.0, %v2139
        %2141 = vmatmul.f32.gmra.mxu0 %v2030
        %v2142 = vpop.f32.mrf.mxu0
        %v2143 = vadd.f32 0.0, %v2142
        %2144 = vmatmul.f32.gmra.mxu0 %v2033
        %v2145 = vpop.f32.mrf.mxu0
        %v2146 = vadd.f32 0.0, %v2145
        %2147 = vmatmul.f32.gmra.mxu0 %v2036
        %v2148 = vpop.f32.mrf.mxu0
        %v2149 = vadd.f32 0.0, %v2148
        %2150 = vmatmul.f32.gmra.mxu0 %v2039
        %v2151 = vpop.f32.mrf.mxu0
        %v2152 = vadd.f32 0.0, %v2151
        %2153 = vmatmul.f32.gmra.mxu0 %v2042
        %v2154 = vpop.f32.mrf.mxu0
        %v2155 = vadd.f32 0.0, %v2154
        %2156 = vmatmul.f32.gmra.mxu0 %v2045
        %v2157 = vpop.f32.mrf.mxu0
        %v2158 = vadd.f32 0.0, %v2157
        %2159 = vmatmul.f32.gmra.mxu0 %v2048
        %v2160 = vpop.f32.mrf.mxu0
        %v2161 = vadd.f32 0.0, %v2160
        %2162 = vmatmul.f32.gmra.mxu0 %v2051
        %v2163 = vpop.f32.mrf.mxu0
        %v2164 = vadd.f32 0.0, %v2163
        %2165 = vmatmul.f32.gmra.mxu0 %v2054
        %v2166 = vpop.f32.mrf.mxu0
        %v2167 = vadd.f32 0.0, %v2166
        %2168 = vmatmul.f32.gmra.mxu0 %v2057
        %v2169 = vpop.f32.mrf.mxu0
        %v2170 = vadd.f32 0.0, %v2169
        %2171 = vmatmul.f32.gmra.mxu0 %v2060
        %v2172 = vpop.f32.mrf.mxu0
        %v2173 = vadd.f32 0.0, %v2172
        %2174 = vmatmul.f32.gmra.mxu0 %v2063
        %v2175 = vpop.f32.mrf.mxu0
        %v2176 = vadd.f32 0.0, %v2175
        %2177 = vmatmul.f32.gmra.mxu0 %v2066
        %v2178 = vpop.f32.mrf.mxu0
        %v2179 = vadd.f32 0.0, %v2178
        %2180 = vmatmul.f32.gmra.mxu0 %v2069
        %v2181 = vpop.f32.mrf.mxu0
        %v2182 = vadd.f32 0.0, %v2181
        %2183 = vmatmul.f32.gmra.mxu0 %v2072
        %v2184 = vpop.f32.mrf.mxu0
        %v2185 = vadd.f32 0.0, %v2184
        %2186 = vmatmul.f32.gmra.mxu0 %v2075
        %v2187 = vpop.f32.mrf.mxu0
        %v2188 = vadd.f32 0.0, %v2187
        %2189 = vmatmul.f32.gmra.mxu0 %v2078
        %v2190 = vpop.f32.mrf.mxu0
        %v2191 = vadd.f32 0.0, %v2190
        %2192 = vdwg.mxu0
        %v2193 = vadd.f32 %v1910, %v2098
        %v2194 = vadd.f32 %v1911, %v2101
        %v2195 = vadd.f32 %v1912, %v2104
        %v2196 = vadd.f32 %v1913, %v2107
        %v2197 = vadd.f32 %v1914, %v2110
        %v2198 = vadd.f32 %v1915, %v2113
        %v2199 = vadd.f32 %v1916, %v2116
        %v2200 = vadd.f32 %v1917, %v2119
        %v2201 = vadd.f32 %v1918, %v2122
        %v2202 = vadd.f32 %v1919, %v2125
        %v2203 = vadd.f32 %v1920, %v2128
        %v2204 = vadd.f32 %v1921, %v2131
        %v2205 = vadd.f32 %v1922, %v2134
        %v2206 = vadd.f32 %v1923, %v2137
        %v2207 = vadd.f32 %v1924, %v2140
        %v2208 = vadd.f32 %v1925, %v2143
        %v2209 = vadd.f32 %v1926, %v2146
        %v2210 = vadd.f32 %v1927, %v2149
        %v2211 = vadd.f32 %v1928, %v2152
        %v2212 = vadd.f32 %v1929, %v2155
        %v2213 = vadd.f32 %v1930, %v2158
        %v2214 = vadd.f32 %v1931, %v2161
        %v2215 = vadd.f32 %v1932, %v2164
        %v2216 = vadd.f32 %v1933, %v2167
        %v2217 = vadd.f32 %v1934, %v2170
        %v2218 = vadd.f32 %v1935, %v2173
        %v2219 = vadd.f32 %v1936, %v2176
        %v2220 = vadd.f32 %v1937, %v2179
        %v2221 = vadd.f32 %v1938, %v2182
        %v2222 = vadd.f32 %v1939, %v2185
        %v2223 = vadd.f32 %v1940, %v2188
        %v2224 = vadd.f32 %v1941, %v2191
        %v2225 = vld [vmem:[%s1942 + $0x1] sm:$0xff]
        %v2226 = vld [vmem:[%s1942 + $0x9] sm:$0xff]
        %v2227 = vld [vmem:[%s1942 + $0x19] sm:$0xff]
        %v2228 = vld [vmem:[%s1942 + $0x21] sm:$0xff]
        %v2229 = vld [vmem:[%s1942 + $0x31] sm:$0xff]
        %v2230 = vld [vmem:[%s1942 + $0x39] sm:$0xff]
        %v2231 = vld [vmem:[%s1942 + $0x49] sm:$0xff]
        %v2232 = vld [vmem:[%s1942 + $0x51] sm:$0xff]
        %v2233 = vld [vmem:[%s1942 + $0x61] sm:$0xff]
        %v2234 = vld [vmem:[%s1942 + $0x69] sm:$0xff]
        %v2235 = vld [vmem:[%s1942 + $0x79] sm:$0xff]
        %v2236 = vld [vmem:[%s1942 + $0x81] sm:$0xff]
        %v2237 = vld [vmem:[%s1942 + $0x91] sm:$0xff]
        %v2238 = vld [vmem:[%s1942 + $0x99] sm:$0xff]
        %v2239 = vld [vmem:[%s1942 + $0xa9] sm:$0xff]
        %v2240 = vld [vmem:[%s1942 + $0xb1] sm:$0xff]
        %v2241 = vld [vmem:[%s1942 + $0xc1] sm:$0xff]
        %v2242 = vld [vmem:[%s1942 + $0xc9] sm:$0xff]
        %v2243 = vld [vmem:[%s1942 + $0xd9] sm:$0xff]
        %v2244 = vld [vmem:[%s1942 + $0xe1] sm:$0xff]
        %v2245 = vld [vmem:[%s1942 + $0xf1] sm:$0xff]
        %v2246 = vld [vmem:[%s1942 + $0xf9] sm:$0xff]
        %v2247 = vld [vmem:[%s1942 + $0x109] sm:$0xff]
        %v2248 = vld [vmem:[%s1942 + $0x111] sm:$0xff]
        %v2249 = vld [vmem:[%s1942 + $0x121] sm:$0xff]
        %v2250 = vld [vmem:[%s1942 + $0x129] sm:$0xff]
        %v2251 = vld [vmem:[%s1942 + $0x139] sm:$0xff]
        %v2252 = vld [vmem:[%s1942 + $0x141] sm:$0xff]
        %v2253 = vld [vmem:[%s1942 + $0x151] sm:$0xff]
        %v2254 = vld [vmem:[%s1942 + $0x159] sm:$0xff]
        %v2255 = vld [vmem:[%s1942 + $0x169] sm:$0xff]
        %v2256 = vld [vmem:[%s1942 + $0x171] sm:$0xff]
        %s2257 = scalar_lea.vmem [#allocation6], 448
        %v2258 = vld [vmem:[%s2257] sm:$0xff]
        %v2259 = vld [vmem:[%s2257 + $0x8] sm:$0xff]
        %v2260 = vld [vmem:[%s2257 + $0x10] sm:$0xff]
        %v2261 = vld [vmem:[%s2257 + $0x18] sm:$0xff]
        %v2262 = vld [vmem:[%s2257 + $0x20] sm:$0xff]
        %v2263 = vld [vmem:[%s2257 + $0x28] sm:$0xff]
        %v2264 = vld [vmem:[%s2257 + $0x30] sm:$0xff]
        %v2265 = vld [vmem:[%s2257 + $0x38] sm:$0xff]
        %v2267 = vsel %vm208, %v2225, 0
        %v2270 = vsel %vm208, %v2226, 0
        %v2273 = vsel %vm208, %v2227, 0
        %v2276 = vsel %vm208, %v2228, 0
        %v2279 = vsel %vm208, %v2229, 0
        %v2282 = vsel %vm208, %v2230, 0
        %v2285 = vsel %vm208, %v2231, 0
        %v2288 = vsel %vm208, %v2232, 0
        %v2291 = vsel %vm208, %v2233, 0
        %v2294 = vsel %vm208, %v2234, 0
        %v2297 = vsel %vm208, %v2235, 0
        %v2300 = vsel %vm208, %v2236, 0
        %v2303 = vsel %vm208, %v2237, 0
        %v2306 = vsel %vm208, %v2238, 0
        %v2309 = vsel %vm208, %v2239, 0
        %v2312 = vsel %vm208, %v2240, 0
        %v2315 = vsel %vm208, %v2241, 0
        %v2318 = vsel %vm208, %v2242, 0
        %v2321 = vsel %vm208, %v2243, 0
        %v2324 = vsel %vm208, %v2244, 0
        %v2327 = vsel %vm208, %v2245, 0
        %v2330 = vsel %vm208, %v2246, 0
        %v2333 = vsel %vm208, %v2247, 0
        %v2336 = vsel %vm208, %v2248, 0
        %v2339 = vsel %vm208, %v2249, 0
        %v2342 = vsel %vm208, %v2250, 0
        %v2345 = vsel %vm208, %v2251, 0
        %v2348 = vsel %vm208, %v2252, 0
        %v2351 = vsel %vm208, %v2253, 0
        %v2354 = vsel %vm208, %v2254, 0
        %v2357 = vsel %vm208, %v2255, 0
        %v2360 = vsel %vm208, %v2256, 0
        %2362 = vmatpush.msra.mxu0 0.0
        %2363 = vmatpush.msra.mxu0 0.0
        %2364 = vmatpush.msra.mxu0 0.0
        %2365 = vmatpush.msra.mxu0 0.0
        %2366 = vmatpush.msra.mxu0 0.0
        %2367 = vmatpush.msra.mxu0 0.0
        %2368 = vmatpush.msra.mxu0 0.0
        %2369 = vmatpush.msra.mxu0 0.0
        %2370 = vmatpush.msra.mxu0 %v2265
        %2371 = vmatpush.msra.mxu0 %v2264
        %2372 = vmatpush.msra.mxu0 %v2263
        %2373 = vmatpush.msra.mxu0 %v2262
        %2374 = vmatpush.msra.mxu0 %v2261
        %2375 = vmatpush.msra.mxu0 %v2260
        %2376 = vmatpush.msra.mxu0 %v2259
        %2377 = vmatpush.msra.mxu0 %v2258
        %2378 = vmatmul.f32.gmra.mxu0 %v2267
        %v2379 = vpop.f32.mrf.mxu0
        %v2380 = vadd.f32 0.0, %v2379
        %2381 = vmatmul.f32.gmra.mxu0 %v2270
        %v2382 = vpop.f32.mrf.mxu0
        %v2383 = vadd.f32 0.0, %v2382
        %2384 = vmatmul.f32.gmra.mxu0 %v2273
        %v2385 = vpop.f32.mrf.mxu0
        %v2386 = vadd.f32 0.0, %v2385
        %2387 = vmatmul.f32.gmra.mxu0 %v2276
        %v2388 = vpop.f32.mrf.mxu0
        %v2389 = vadd.f32 0.0, %v2388
        %2390 = vmatmul.f32.gmra.mxu0 %v2279
        %v2391 = vpop.f32.mrf.mxu0
        %v2392 = vadd.f32 0.0, %v2391
        %2393 = vmatmul.f32.gmra.mxu0 %v2282
        %v2394 = vpop.f32.mrf.mxu0
        %v2395 = vadd.f32 0.0, %v2394
        %2396 = vmatmul.f32.gmra.mxu0 %v2285
        %v2397 = vpop.f32.mrf.mxu0
        %v2398 = vadd.f32 0.0, %v2397
        %2399 = vmatmul.f32.gmra.mxu0 %v2288
        %v2400 = vpop.f32.mrf.mxu0
        %v2401 = vadd.f32 0.0, %v2400
        %2402 = vmatmul.f32.gmra.mxu0 %v2291
        %v2403 = vpop.f32.mrf.mxu0
        %v2404 = vadd.f32 0.0, %v2403
        %2405 = vmatmul.f32.gmra.mxu0 %v2294
        %v2406 = vpop.f32.mrf.mxu0
        %v2407 = vadd.f32 0.0, %v2406
        %2408 = vmatmul.f32.gmra.mxu0 %v2297
        %v2409 = vpop.f32.mrf.mxu0
        %v2410 = vadd.f32 0.0, %v2409
        %2411 = vmatmul.f32.gmra.mxu0 %v2300
        %v2412 = vpop.f32.mrf.mxu0
        %v2413 = vadd.f32 0.0, %v2412
        %2414 = vmatmul.f32.gmra.mxu0 %v2303
        %v2415 = vpop.f32.mrf.mxu0
        %v2416 = vadd.f32 0.0, %v2415
        %2417 = vmatmul.f32.gmra.mxu0 %v2306
        %v2418 = vpop.f32.mrf.mxu0
        %v2419 = vadd.f32 0.0, %v2418
        %2420 = vmatmul.f32.gmra.mxu0 %v2309
        %v2421 = vpop.f32.mrf.mxu0
        %v2422 = vadd.f32 0.0, %v2421
        %2423 = vmatmul.f32.gmra.mxu0 %v2312
        %v2424 = vpop.f32.mrf.mxu0
        %v2425 = vadd.f32 0.0, %v2424
        %2426 = vmatmul.f32.gmra.mxu0 %v2315
        %v2427 = vpop.f32.mrf.mxu0
        %v2428 = vadd.f32 0.0, %v2427
        %2429 = vmatmul.f32.gmra.mxu0 %v2318
        %v2430 = vpop.f32.mrf.mxu0
        %v2431 = vadd.f32 0.0, %v2430
        %2432 = vmatmul.f32.gmra.mxu0 %v2321
        %v2433 = vpop.f32.mrf.mxu0
        %v2434 = vadd.f32 0.0, %v2433
        %2435 = vmatmul.f32.gmra.mxu0 %v2324
        %v2436 = vpop.f32.mrf.mxu0
        %v2437 = vadd.f32 0.0, %v2436
        %2438 = vmatmul.f32.gmra.mxu0 %v2327
        %v2439 = vpop.f32.mrf.mxu0
        %v2440 = vadd.f32 0.0, %v2439
        %2441 = vmatmul.f32.gmra.mxu0 %v2330
        %v2442 = vpop.f32.mrf.mxu0
        %v2443 = vadd.f32 0.0, %v2442
        %2444 = vmatmul.f32.gmra.mxu0 %v2333
        %v2445 = vpop.f32.mrf.mxu0
        %v2446 = vadd.f32 0.0, %v2445
        %2447 = vmatmul.f32.gmra.mxu0 %v2336
        %v2448 = vpop.f32.mrf.mxu0
        %v2449 = vadd.f32 0.0, %v2448
        %2450 = vmatmul.f32.gmra.mxu0 %v2339
        %v2451 = vpop.f32.mrf.mxu0
        %v2452 = vadd.f32 0.0, %v2451
        %2453 = vmatmul.f32.gmra.mxu0 %v2342
        %v2454 = vpop.f32.mrf.mxu0
        %v2455 = vadd.f32 0.0, %v2454
        %2456 = vmatmul.f32.gmra.mxu0 %v2345
        %v2457 = vpop.f32.mrf.mxu0
        %v2458 = vadd.f32 0.0, %v2457
        %2459 = vmatmul.f32.gmra.mxu0 %v2348
        %v2460 = vpop.f32.mrf.mxu0
        %v2461 = vadd.f32 0.0, %v2460
        %2462 = vmatmul.f32.gmra.mxu0 %v2351
        %v2463 = vpop.f32.mrf.mxu0
        %v2464 = vadd.f32 0.0, %v2463
        %2465 = vmatmul.f32.gmra.mxu0 %v2354
        %v2466 = vpop.f32.mrf.mxu0
        %v2467 = vadd.f32 0.0, %v2466
        %2468 = vmatmul.f32.gmra.mxu0 %v2357
        %v2469 = vpop.f32.mrf.mxu0
        %v2470 = vadd.f32 0.0, %v2469
        %2471 = vmatmul.f32.gmra.mxu0 %v2360
        %v2472 = vpop.f32.mrf.mxu0
        %v2473 = vadd.f32 0.0, %v2472
        %2474 = vdwg.mxu0
        %v2475 = vadd.f32 %v2193, %v2380
        %v2476 = vadd.f32 %v2194, %v2383
        %v2477 = vadd.f32 %v2195, %v2386
        %v2478 = vadd.f32 %v2196, %v2389
        %v2479 = vadd.f32 %v2197, %v2392
        %v2480 = vadd.f32 %v2198, %v2395
        %v2481 = vadd.f32 %v2199, %v2398
        %v2482 = vadd.f32 %v2200, %v2401
        %v2483 = vadd.f32 %v2201, %v2404
        %v2484 = vadd.f32 %v2202, %v2407
        %v2485 = vadd.f32 %v2203, %v2410
        %v2486 = vadd.f32 %v2204, %v2413
        %v2487 = vadd.f32 %v2205, %v2416
        %v2488 = vadd.f32 %v2206, %v2419
        %v2489 = vadd.f32 %v2207, %v2422
        %v2490 = vadd.f32 %v2208, %v2425
        %v2491 = vadd.f32 %v2209, %v2428
        %v2492 = vadd.f32 %v2210, %v2431
        %v2493 = vadd.f32 %v2211, %v2434
        %v2494 = vadd.f32 %v2212, %v2437
        %v2495 = vadd.f32 %v2213, %v2440
        %v2496 = vadd.f32 %v2214, %v2443
        %v2497 = vadd.f32 %v2215, %v2446
        %v2498 = vadd.f32 %v2216, %v2449
        %v2499 = vadd.f32 %v2217, %v2452
        %v2500 = vadd.f32 %v2218, %v2455
        %v2501 = vadd.f32 %v2219, %v2458
        %v2502 = vadd.f32 %v2220, %v2461
        %v2503 = vadd.f32 %v2221, %v2464
        %v2504 = vadd.f32 %v2222, %v2467
        %v2505 = vadd.f32 %v2223, %v2470
        %v2506 = vadd.f32 %v2224, %v2473
        %v2507 = vld [vmem:[%s1942 + $0x2] sm:$0xff]
        %v2508 = vld [vmem:[%s1942 + $0xa] sm:$0xff]
        %v2509 = vld [vmem:[%s1942 + $0x1a] sm:$0xff]
        %v2510 = vld [vmem:[%s1942 + $0x22] sm:$0xff]
        %v2511 = vld [vmem:[%s1942 + $0x32] sm:$0xff]
        %v2512 = vld [vmem:[%s1942 + $0x3a] sm:$0xff]
        %v2513 = vld [vmem:[%s1942 + $0x4a] sm:$0xff]
        %v2514 = vld [vmem:[%s1942 + $0x52] sm:$0xff]
        %v2515 = vld [vmem:[%s1942 + $0x62] sm:$0xff]
        %v2516 = vld [vmem:[%s1942 + $0x6a] sm:$0xff]
        %v2517 = vld [vmem:[%s1942 + $0x7a] sm:$0xff]
        %v2518 = vld [vmem:[%s1942 + $0x82] sm:$0xff]
        %v2519 = vld [vmem:[%s1942 + $0x92] sm:$0xff]
        %v2520 = vld [vmem:[%s1942 + $0x9a] sm:$0xff]
        %v2521 = vld [vmem:[%s1942 + $0xaa] sm:$0xff]
        %v2522 = vld [vmem:[%s1942 + $0xb2] sm:$0xff]
        %v2523 = vld [vmem:[%s1942 + $0xc2] sm:$0xff]
        %v2524 = vld [vmem:[%s1942 + $0xca] sm:$0xff]
        %v2525 = vld [vmem:[%s1942 + $0xda] sm:$0xff]
        %v2526 = vld [vmem:[%s1942 + $0xe2] sm:$0xff]
        %v2527 = vld [vmem:[%s1942 + $0xf2] sm:$0xff]
        %v2528 = vld [vmem:[%s1942 + $0xfa] sm:$0xff]
        %v2529 = vld [vmem:[%s1942 + $0x10a] sm:$0xff]
        %v2530 = vld [vmem:[%s1942 + $0x112] sm:$0xff]
        %v2531 = vld [vmem:[%s1942 + $0x122] sm:$0xff]
        %v2532 = vld [vmem:[%s1942 + $0x12a] sm:$0xff]
        %v2533 = vld [vmem:[%s1942 + $0x13a] sm:$0xff]
        %v2534 = vld [vmem:[%s1942 + $0x142] sm:$0xff]
        %v2535 = vld [vmem:[%s1942 + $0x152] sm:$0xff]
        %v2536 = vld [vmem:[%s1942 + $0x15a] sm:$0xff]
        %v2537 = vld [vmem:[%s1942 + $0x16a] sm:$0xff]
        %v2538 = vld [vmem:[%s1942 + $0x172] sm:$0xff]
        %s2539 = scalar_lea.vmem [#allocation6], 512
        %v2540 = vld [vmem:[%s2539] sm:$0xff]
        %v2541 = vld [vmem:[%s2539 + $0x8] sm:$0xff]
        %v2542 = vld [vmem:[%s2539 + $0x10] sm:$0xff]
        %v2543 = vld [vmem:[%s2539 + $0x18] sm:$0xff]
        %v2544 = vld [vmem:[%s2539 + $0x20] sm:$0xff]
        %v2545 = vld [vmem:[%s2539 + $0x28] sm:$0xff]
        %v2546 = vld [vmem:[%s2539 + $0x30] sm:$0xff]
        %v2547 = vld [vmem:[%s2539 + $0x38] sm:$0xff]
        %v2549 = vsel %vm208, %v2507, 0
        %v2552 = vsel %vm208, %v2508, 0
        %v2555 = vsel %vm208, %v2509, 0
        %v2558 = vsel %vm208, %v2510, 0
        %v2561 = vsel %vm208, %v2511, 0
        %v2564 = vsel %vm208, %v2512, 0
        %v2567 = vsel %vm208, %v2513, 0
        %v2570 = vsel %vm208, %v2514, 0
        %v2573 = vsel %vm208, %v2515, 0
        %v2576 = vsel %vm208, %v2516, 0
        %v2579 = vsel %vm208, %v2517, 0
        %v2582 = vsel %vm208, %v2518, 0
        %v2585 = vsel %vm208, %v2519, 0
        %v2588 = vsel %vm208, %v2520, 0
        %v2591 = vsel %vm208, %v2521, 0
        %v2594 = vsel %vm208, %v2522, 0
        %v2597 = vsel %vm208, %v2523, 0
        %v2600 = vsel %vm208, %v2524, 0
        %v2603 = vsel %vm208, %v2525, 0
        %v2606 = vsel %vm208, %v2526, 0
        %v2609 = vsel %vm208, %v2527, 0
        %v2612 = vsel %vm208, %v2528, 0
        %v2615 = vsel %vm208, %v2529, 0
        %v2618 = vsel %vm208, %v2530, 0
        %v2621 = vsel %vm208, %v2531, 0
        %v2624 = vsel %vm208, %v2532, 0
        %v2627 = vsel %vm208, %v2533, 0
        %v2630 = vsel %vm208, %v2534, 0
        %v2633 = vsel %vm208, %v2535, 0
        %v2636 = vsel %vm208, %v2536, 0
        %v2639 = vsel %vm208, %v2537, 0
        %v2642 = vsel %vm208, %v2538, 0
        %2644 = vmatpush.msra.mxu0 0.0
        %2645 = vmatpush.msra.mxu0 0.0
        %2646 = vmatpush.msra.mxu0 0.0
        %2647 = vmatpush.msra.mxu0 0.0
        %2648 = vmatpush.msra.mxu0 0.0
        %2649 = vmatpush.msra.mxu0 0.0
        %2650 = vmatpush.msra.mxu0 0.0
        %2651 = vmatpush.msra.mxu0 0.0
        %2652 = vmatpush.msra.mxu0 %v2547
        %2653 = vmatpush.msra.mxu0 %v2546
        %2654 = vmatpush.msra.mxu0 %v2545
        %2655 = vmatpush.msra.mxu0 %v2544
        %2656 = vmatpush.msra.mxu0 %v2543
        %2657 = vmatpush.msra.mxu0 %v2542
        %2658 = vmatpush.msra.mxu0 %v2541
        %2659 = vmatpush.msra.mxu0 %v2540
        %2660 = vmatmul.f32.gmra.mxu0 %v2549
        %v2661 = vpop.f32.mrf.mxu0
        %v2662 = vadd.f32 0.0, %v2661
        %2663 = vmatmul.f32.gmra.mxu0 %v2552
        %v2664 = vpop.f32.mrf.mxu0
        %v2665 = vadd.f32 0.0, %v2664
        %2666 = vmatmul.f32.gmra.mxu0 %v2555
        %v2667 = vpop.f32.mrf.mxu0
        %v2668 = vadd.f32 0.0, %v2667
        %2669 = vmatmul.f32.gmra.mxu0 %v2558
        %v2670 = vpop.f32.mrf.mxu0
        %v2671 = vadd.f32 0.0, %v2670
        %2672 = vmatmul.f32.gmra.mxu0 %v2561
        %v2673 = vpop.f32.mrf.mxu0
        %v2674 = vadd.f32 0.0, %v2673
        %2675 = vmatmul.f32.gmra.mxu0 %v2564
        %v2676 = vpop.f32.mrf.mxu0
        %v2677 = vadd.f32 0.0, %v2676
        %2678 = vmatmul.f32.gmra.mxu0 %v2567
        %v2679 = vpop.f32.mrf.mxu0
        %v2680 = vadd.f32 0.0, %v2679
        %2681 = vmatmul.f32.gmra.mxu0 %v2570
        %v2682 = vpop.f32.mrf.mxu0
        %v2683 = vadd.f32 0.0, %v2682
        %2684 = vmatmul.f32.gmra.mxu0 %v2573
        %v2685 = vpop.f32.mrf.mxu0
        %v2686 = vadd.f32 0.0, %v2685
        %2687 = vmatmul.f32.gmra.mxu0 %v2576
        %v2688 = vpop.f32.mrf.mxu0
        %v2689 = vadd.f32 0.0, %v2688
        %2690 = vmatmul.f32.gmra.mxu0 %v2579
        %v2691 = vpop.f32.mrf.mxu0
        %v2692 = vadd.f32 0.0, %v2691
        %2693 = vmatmul.f32.gmra.mxu0 %v2582
        %v2694 = vpop.f32.mrf.mxu0
        %v2695 = vadd.f32 0.0, %v2694
        %2696 = vmatmul.f32.gmra.mxu0 %v2585
        %v2697 = vpop.f32.mrf.mxu0
        %v2698 = vadd.f32 0.0, %v2697
        %2699 = vmatmul.f32.gmra.mxu0 %v2588
        %v2700 = vpop.f32.mrf.mxu0
        %v2701 = vadd.f32 0.0, %v2700
        %2702 = vmatmul.f32.gmra.mxu0 %v2591
        %v2703 = vpop.f32.mrf.mxu0
        %v2704 = vadd.f32 0.0, %v2703
        %2705 = vmatmul.f32.gmra.mxu0 %v2594
        %v2706 = vpop.f32.mrf.mxu0
        %v2707 = vadd.f32 0.0, %v2706
        %2708 = vmatmul.f32.gmra.mxu0 %v2597
        %v2709 = vpop.f32.mrf.mxu0
        %v2710 = vadd.f32 0.0, %v2709
        %2711 = vmatmul.f32.gmra.mxu0 %v2600
        %v2712 = vpop.f32.mrf.mxu0
        %v2713 = vadd.f32 0.0, %v2712
        %2714 = vmatmul.f32.gmra.mxu0 %v2603
        %v2715 = vpop.f32.mrf.mxu0
        %v2716 = vadd.f32 0.0, %v2715
        %2717 = vmatmul.f32.gmra.mxu0 %v2606
        %v2718 = vpop.f32.mrf.mxu0
        %v2719 = vadd.f32 0.0, %v2718
        %2720 = vmatmul.f32.gmra.mxu0 %v2609
        %v2721 = vpop.f32.mrf.mxu0
        %v2722 = vadd.f32 0.0, %v2721
        %2723 = vmatmul.f32.gmra.mxu0 %v2612
        %v2724 = vpop.f32.mrf.mxu0
        %v2725 = vadd.f32 0.0, %v2724
        %2726 = vmatmul.f32.gmra.mxu0 %v2615
        %v2727 = vpop.f32.mrf.mxu0
        %v2728 = vadd.f32 0.0, %v2727
        %2729 = vmatmul.f32.gmra.mxu0 %v2618
        %v2730 = vpop.f32.mrf.mxu0
        %v2731 = vadd.f32 0.0, %v2730
        %2732 = vmatmul.f32.gmra.mxu0 %v2621
        %v2733 = vpop.f32.mrf.mxu0
        %v2734 = vadd.f32 0.0, %v2733
        %2735 = vmatmul.f32.gmra.mxu0 %v2624
        %v2736 = vpop.f32.mrf.mxu0
        %v2737 = vadd.f32 0.0, %v2736
        %2738 = vmatmul.f32.gmra.mxu0 %v2627
        %v2739 = vpop.f32.mrf.mxu0
        %v2740 = vadd.f32 0.0, %v2739
        %2741 = vmatmul.f32.gmra.mxu0 %v2630
        %v2742 = vpop.f32.mrf.mxu0
        %v2743 = vadd.f32 0.0, %v2742
        %2744 = vmatmul.f32.gmra.mxu0 %v2633
        %v2745 = vpop.f32.mrf.mxu0
        %v2746 = vadd.f32 0.0, %v2745
        %2747 = vmatmul.f32.gmra.mxu0 %v2636
        %v2748 = vpop.f32.mrf.mxu0
        %v2749 = vadd.f32 0.0, %v2748
        %2750 = vmatmul.f32.gmra.mxu0 %v2639
        %v2751 = vpop.f32.mrf.mxu0
        %v2752 = vadd.f32 0.0, %v2751
        %2753 = vmatmul.f32.gmra.mxu0 %v2642
        %v2754 = vpop.f32.mrf.mxu0
        %v2755 = vadd.f32 0.0, %v2754
        %2756 = vdwg.mxu0
        %v2757 = vadd.f32 %v2475, %v2662
        %v2758 = vadd.f32 %v2476, %v2665
        %v2759 = vadd.f32 %v2477, %v2668
        %v2760 = vadd.f32 %v2478, %v2671
        %v2761 = vadd.f32 %v2479, %v2674
        %v2762 = vadd.f32 %v2480, %v2677
        %v2763 = vadd.f32 %v2481, %v2680
        %v2764 = vadd.f32 %v2482, %v2683
        %v2765 = vadd.f32 %v2483, %v2686
        %v2766 = vadd.f32 %v2484, %v2689
        %v2767 = vadd.f32 %v2485, %v2692
        %v2768 = vadd.f32 %v2486, %v2695
        %v2769 = vadd.f32 %v2487, %v2698
        %v2770 = vadd.f32 %v2488, %v2701
        %v2771 = vadd.f32 %v2489, %v2704
        %v2772 = vadd.f32 %v2490, %v2707
        %v2773 = vadd.f32 %v2491, %v2710
        %v2774 = vadd.f32 %v2492, %v2713
        %v2775 = vadd.f32 %v2493, %v2716
        %v2776 = vadd.f32 %v2494, %v2719
        %v2777 = vadd.f32 %v2495, %v2722
        %v2778 = vadd.f32 %v2496, %v2725
        %v2779 = vadd.f32 %v2497, %v2728
        %v2780 = vadd.f32 %v2498, %v2731
        %v2781 = vadd.f32 %v2499, %v2734
        %v2782 = vadd.f32 %v2500, %v2737
        %v2783 = vadd.f32 %v2501, %v2740
        %v2784 = vadd.f32 %v2502, %v2743
        %v2785 = vadd.f32 %v2503, %v2746
        %v2786 = vadd.f32 %v2504, %v2749
        %v2787 = vadd.f32 %v2505, %v2752
        %v2788 = vadd.f32 %v2506, %v2755
        %v2789 = vld [vmem:[%s2] sm:$0x1]
        %v2791 = vperm.slane %v2789, 0
        %v2793 = vadd.f32 %v2757, %v2791
        %v2794 = vadd.f32 %v2758, %v2791
        %v2795 = vadd.f32 %v2759, %v2791
        %v2796 = vadd.f32 %v2760, %v2791
        %v2797 = vadd.f32 %v2761, %v2791
        %v2798 = vadd.f32 %v2762, %v2791
        %v2799 = vadd.f32 %v2763, %v2791
        %v2800 = vadd.f32 %v2764, %v2791
        %v2801 = vadd.f32 %v2765, %v2791
        %v2802 = vadd.f32 %v2766, %v2791
        %v2803 = vadd.f32 %v2767, %v2791
        %v2804 = vadd.f32 %v2768, %v2791
        %v2805 = vadd.f32 %v2769, %v2791
        %v2806 = vadd.f32 %v2770, %v2791
        %v2807 = vadd.f32 %v2771, %v2791
        %v2808 = vadd.f32 %v2772, %v2791
        %v2809 = vadd.f32 %v2773, %v2791
        %v2810 = vadd.f32 %v2774, %v2791
        %v2811 = vadd.f32 %v2775, %v2791
        %v2812 = vadd.f32 %v2776, %v2791
        %v2813 = vadd.f32 %v2777, %v2791
        %v2814 = vadd.f32 %v2778, %v2791
        %v2815 = vadd.f32 %v2779, %v2791
        %v2816 = vadd.f32 %v2780, %v2791
        %v2817 = vadd.f32 %v2781, %v2791
        %v2818 = vadd.f32 %v2782, %v2791
        %v2819 = vadd.f32 %v2783, %v2791
        %v2820 = vadd.f32 %v2784, %v2791
        %v2821 = vadd.f32 %v2785, %v2791
        %v2822 = vadd.f32 %v2786, %v2791
        %v2823 = vadd.f32 %v2787, %v2791
        %v2824 = vadd.f32 %v2788, %v2791
        %v2825 = vmax.f32 %v2793, 0.0
        %v2826 = vmax.f32 %v2794, 0.0
        %v2827 = vmax.f32 %v2795, 0.0
        %v2828 = vmax.f32 %v2796, 0.0
        %v2829 = vmax.f32 %v2797, 0.0
        %v2830 = vmax.f32 %v2798, 0.0
        %v2831 = vmax.f32 %v2799, 0.0
        %v2832 = vmax.f32 %v2800, 0.0
        %v2833 = vmax.f32 %v2801, 0.0
        %v2834 = vmax.f32 %v2802, 0.0
        %v2835 = vmax.f32 %v2803, 0.0
        %v2836 = vmax.f32 %v2804, 0.0
        %v2837 = vmax.f32 %v2805, 0.0
        %v2838 = vmax.f32 %v2806, 0.0
        %v2839 = vmax.f32 %v2807, 0.0
        %v2840 = vmax.f32 %v2808, 0.0
        %v2841 = vmax.f32 %v2809, 0.0
        %v2842 = vmax.f32 %v2810, 0.0
        %v2843 = vmax.f32 %v2811, 0.0
        %v2844 = vmax.f32 %v2812, 0.0
        %v2845 = vmax.f32 %v2813, 0.0
        %v2846 = vmax.f32 %v2814, 0.0
        %v2847 = vmax.f32 %v2815, 0.0
        %v2848 = vmax.f32 %v2816, 0.0
        %v2849 = vmax.f32 %v2817, 0.0
        %v2850 = vmax.f32 %v2818, 0.0
        %v2851 = vmax.f32 %v2819, 0.0
        %v2852 = vmax.f32 %v2820, 0.0
        %v2853 = vmax.f32 %v2821, 0.0
        %v2854 = vmax.f32 %v2822, 0.0
        %v2855 = vmax.f32 %v2823, 0.0
        %v2856 = vmax.f32 %v2824, 0.0
        %2857 = vst.msk [vmem:[%s207] sm:$0xff] %vm208, %v2825
        %2858 = vst.msk [vmem:[%s207 + $0x8] sm:$0xff] %vm208, %v2826
        %2859 = vst.msk [vmem:[%s207 + $0x10] sm:$0xff] %vm208, %v2827
        %2860 = vst.msk [vmem:[%s207 + $0x18] sm:$0xff] %vm208, %v2828
        %2861 = vst.msk [vmem:[%s207 + $0x20] sm:$0xff] %vm208, %v2829
        %2862 = vst.msk [vmem:[%s207 + $0x28] sm:$0xff] %vm208, %v2830
        %2863 = vst.msk [vmem:[%s207 + $0x30] sm:$0xff] %vm208, %v2831
        %2864 = vst.msk [vmem:[%s207 + $0x38] sm:$0xff] %vm208, %v2832
        %2865 = vst.msk [vmem:[%s207 + $0x40] sm:$0xff] %vm208, %v2833
        %2866 = vst.msk [vmem:[%s207 + $0x48] sm:$0xff] %vm208, %v2834
        %2867 = vst.msk [vmem:[%s207 + $0x50] sm:$0xff] %vm208, %v2835
        %2868 = vst.msk [vmem:[%s207 + $0x58] sm:$0xff] %vm208, %v2836
        %2869 = vst.msk [vmem:[%s207 + $0x60] sm:$0xff] %vm208, %v2837
        %2870 = vst.msk [vmem:[%s207 + $0x68] sm:$0xff] %vm208, %v2838
        %2871 = vst.msk [vmem:[%s207 + $0x70] sm:$0xff] %vm208, %v2839
        %2872 = vst.msk [vmem:[%s207 + $0x78] sm:$0xff] %vm208, %v2840
        %2873 = vst.msk [vmem:[%s207 + $0x80] sm:$0xff] %vm208, %v2841
        %2874 = vst.msk [vmem:[%s207 + $0x88] sm:$0xff] %vm208, %v2842
        %2875 = vst.msk [vmem:[%s207 + $0x90] sm:$0xff] %vm208, %v2843
        %2876 = vst.msk [vmem:[%s207 + $0x98] sm:$0xff] %vm208, %v2844
        %2877 = vst.msk [vmem:[%s207 + $0xa0] sm:$0xff] %vm208, %v2845
        %2878 = vst.msk [vmem:[%s207 + $0xa8] sm:$0xff] %vm208, %v2846
        %2879 = vst.msk [vmem:[%s207 + $0xb0] sm:$0xff] %vm208, %v2847
        %2880 = vst.msk [vmem:[%s207 + $0xb8] sm:$0xff] %vm208, %v2848
        %2881 = vst.msk [vmem:[%s207 + $0xc0] sm:$0xff] %vm208, %v2849
        %2882 = vst.msk [vmem:[%s207 + $0xc8] sm:$0xff] %vm208, %v2850
        %2883 = vst.msk [vmem:[%s207 + $0xd0] sm:$0xff] %vm208, %v2851
        %2884 = vst.msk [vmem:[%s207 + $0xd8] sm:$0xff] %vm208, %v2852
        %2885 = vst.msk [vmem:[%s207 + $0xe0] sm:$0xff] %vm208, %v2853
        %2886 = vst.msk [vmem:[%s207 + $0xe8] sm:$0xff] %vm208, %v2854
        %2887 = vst.msk [vmem:[%s207 + $0xf0] sm:$0xff] %vm208, %v2855
        %2888 = vst.msk [vmem:[%s207 + $0xf8] sm:$0xff] %vm208, %v2856
        %s2889 = sand.u32 %s97, 1
        %s2890 = scalar_lea.sflag [#allocation5], %s2889
        %s2891 = sand.u32 %s97, 1
        %s2892 = smul.addr %s2891, 256
        %s2893 = scalar_lea.vmem [#allocation8], %s2892
        // Predicated region
        $region41: #{tpu_custom_call.1} parent=31 // pred_check
          %p2894 = pneg %p107
        $region42: #{tpu_custom_call.1} parent=31 // pred_check_branch
          %2896 = sbr.rel (%p2894) target = $region44
        $region43: #{tpu_custom_call.1} parent=31 // pred_region
          %2898 = vsyncadd %s2890, 0
          %s2899 = smul.addr %s21, 32
          %s2900 = smul.addr %s2899, 8
          %s2901 = scalar_lea.hbm %s3, %s2900
          %s2902 = sshll.u32 %s2893, 4
          %s2903 = int_to_ptr.vmem [resolvable:$true] %s2902
          %s2904 = sshll.u32 %s2901, 4
          %s2905 = int_to_ptr.hbm [resolvable:$true] %s2904
          %2910 = dma.vmem_to_hbm [thread:$0]  %s2903, 4096, %s2905, %s2890, 128, 128, 8
        $region44: #{tpu_custom_call.1} parent=31 // pred_fallthru
          _
      $region32: #{tpu_custom_call.1} parent=5 // pred_fallthru
        _
      %p2911 = scmp.le.s32.totalorder 2, %s16
      // Predicated region
      $region45: #{tpu_custom_call.1} parent=5 // pred_check
        %p2912 = pneg %p2911
      $region46: #{tpu_custom_call.1} parent=5 // pred_check_branch
        %2914 = sbr.rel (%p2912) target = $region48
      $region47: #{tpu_custom_call.1} parent=5 // pred_region
        %s2915 = ssub.s32 %s16, 2
        // Predicated region
        $region49: #{tpu_custom_call.1} parent=47 // pred_check
          %p2916 = pneg %p113
        $region50: #{tpu_custom_call.1} parent=47 // pred_check_branch
          %2918 = sbr.rel (%p2916) target = $region52
        $region51: #{tpu_custom_call.1} parent=47 // pred_region
          %s2919 = sand.u32 %s98, 1
          %s2920 = scalar_lea.sflag [#allocation5], %s2919
          %s2921 = sand.u32 %s98, 1
          %s2922 = smul.addr %s2921, 256
          %s2923 = scalar_lea.vmem [#allocation8], %s2922
          %2925 = dma.done %s2920, 4096
        $region52: #{tpu_custom_call.1} parent=47 // pred_fallthru
          _
      $region48: #{tpu_custom_call.1} parent=5 // pred_fallthru
        _
    $region6: #{tpu_custom_call.1} parent=1 // loop_footer
      %s20 = sadd.s32 1, %s16
    $region7: #{tpu_custom_call.1} parent=1 // loop_footer_branch
      %15 = sbr.rel target = $region3
    $region8: #{tpu_custom_call.1} parent=1 // loop_exit
      _
    %2926 = vsyncpa [#allocation4], 1
    %s2927 = scalar_lea.sflag [#allocation4], 1
    %2928 = vsyncpa %s2927, 1
    %2929 = vsyncpa [#allocation7], 1
    %2930 = vsyncpa [#allocation5], 1
    %s2931 = scalar_lea.sflag [#allocation5], 1
    %2932 = vsyncpa %s2931, 1

// kernel: tpu_custom_call.1
$region0: #{tpu_custom_call.1}
  #allocation0 [shape = 'u32[]', space=smem, size = 0x4, offset = 0x4, fixed_abs, tag = 'smem constant byte address 0x4 - core index']
  #allocation1 [shape = 'u32[72,128]{1,0:T(1,128)}', space=vmem, size = 0x9000, scoped, tag = 'internal scratch']
  #allocation2 [shape = 'f32[18,18,64]{2,1,0:T(8,128)}', space=vmem, size = 0x36000, scoped, tag = 'scratch operand']
  %s0 = inlined_call_operand.hbm [shape: f32[2,16,16,64], index: 0, kind: input, shape index: {}]
  %s1 = inlined_call_operand.hbm [shape: f32[9,64,64], index: 1, kind: input, shape index: {}]
  %s2 = inlined_call_operand.vmem [shape: f32[1,64], index: 2, kind: input, shape index: {}]
  %s3 = inlined_call_operand.hbm [shape: f32[2,16,16,64], index: 3, kind: output, shape index: {}]
  %s4 = sld [smem:[#allocation0]]
  $region53: #{tpu_custom_call.1} parent=0
    _
  %s6 = ssub.s32 1, %s4
  %s7 = scalar_select 0, %s6, %s4
  $region1: #{tpu_custom_call.1} parent=0
    #allocation3 [shape = 'u8[262144]{0}', space=vmem, size = 0x40000, scoped, tag = 'input window, operand 0']
    #allocation4 [shape = 's32[2]{0}', space=sflag, size = 0x8, scoped, tag = 'scoped memory for tpu_custom_call.1']
    #allocation5 [shape = 's32[2]{0}', space=sflag, size = 0x8, scoped, tag = 'scoped memory for tpu_custom_call.1']
    #allocation6 [shape = 'u8[294912]{0}', space=vmem, size = 0x48000, scoped, tag = 'input window, operand 1, single buffered']
    #allocation7 [shape = 's32[1]{0}', space=sflag, size = 0x4, scoped, tag = 'scoped memory for tpu_custom_call.1']
    #allocation8 [shape = 'u8[262144]{0}', space=vmem, size = 0x40000, scoped, tag = 'output window, operand 0']
    %8 = vsyncpa [#allocation4], 0
    %s9 = scalar_lea.sflag [#allocation4], 1
    %10 = vsyncpa %s9, 0
    %11 = vsyncpa [#allocation7], 0
    %12 = vsyncpa [#allocation5], 0
    %s13 = scalar_lea.sflag [#allocation5], 1
    %14 = vsyncpa %s13, 0
    loop: start=0, step=1, limit=4
    $region2: #{tpu_custom_call.1} parent=1 // loop_pre_header
      _
    $region3: #{tpu_custom_call.1} parent=1 // loop_header
      %s16 = sphi 0, %s20
      %p17 = scmp.ge.s32.totalorder %s16, 4
      %s26 = sphi 0, %s28
      %s29 = sphi 0, %s26
      %s30 = sphi 0, %s29
      %s46 = sphi 0, %s30
      %s50 = sphi 0, %s50
      %s52 = sphi 0, %s50
      %s53 = sphi 0, %s52
      %s67 = sphi 0, %s53
      %s71 = sphi 0, %s71
      %s73 = sphi 0, %s71
      %s74 = sphi 0, %s73
      %s88 = sphi 0, %s74
      %s94 = sphi 0, %s96
      %s97 = sphi 0, %s94
      %s98 = sphi 0, %s97
      %s114 = sphi 0, %s98
    $region4: #{tpu_custom_call.1} parent=1 // loop_header_branch
      %19 = sbr.rel (%p17) target = $region8
    $region5: #{tpu_custom_call.1} parent=1 // loop_body
      %s21 = ssub.s32 %s16, 1
      %s22 = ssub.s32 %s16, 2
      %s23 = sadd.s32 %s16, 1
      %s24 = ssub.s32 %s16, %s23
      %p25 = scmp.eq.s32.totalorder %s24, 0
      %s27 = sadd.s32 %s26, 1
      %s28 = scalar_select %p25, %s26, %s27
      %p31 = pneg %p25
      %p32 = scmp.eq.s32.totalorder %s16, 1
      %p33 = por %p31, %p32
      %p34 = scmp.ne.s32.totalorder %s26, %s29
      %p35 = scmp.eq.s32.totalorder %s16, 0
      %p36 = por %p34, %p35
      %p37 = scmp.ne.s32.totalorder %s26, %s29
      %p38 = scmp.eq.s32.totalorder %s21, 1
      %p39 = por %p37, %p38
      %p40 = scmp.ne.s32.totalorder %s29, %s30
      %p41 = scmp.eq.s32.totalorder %s21, 0
      %p42 = por %p40, %p41
      %p43 = scmp.ne.s32.totalorder %s29, %s30
      %p44 = scmp.eq.s32.totalorder %s22, 1
      %p45 = por %p43, %p44
      %p47 = scmp.ne.s32.totalorder %s30, %s46
      %p48 = scmp.eq.s32.totalorder %s22, 0
      %p49 = por %p47, %p48
      %s51 = sadd.s32 %s50, 1
      %p54 = scmp.eq.s32.totalorder %s16, 1
      %p55 = scmp.ne.s32.totalorder %s50, %s52
      %p56 = scmp.eq.s32.totalorder %s16, 0
      %p57 = por %p55, %p56
      %p58 = scmp.ne.s32.totalorder %s50, %s52
      %p59 = scmp.eq.s32.totalorder %s21, 1
      %p60 = por %p58, %p59
      %p61 = scmp.ne.s32.totalorder %s52, %s53
      %p62 = scmp.eq.s32.totalorder %s21, 0
      %p63 = por %p61, %p62
      %p64 = scmp.ne.s32.totalorder %s52, %s53
      %p65 = scmp.eq.s32.totalorder %s22, 1
      %p66 = por %p64, %p65
      %p68 = scmp.ne.s32.totalorder %s53, %s67
      %p69 = scmp.eq.s32.totalorder %s22, 0
      %p70 = por %p68, %p69
      %s72 = sadd.s32 %s71, 1
      %p75 = scmp.eq.s32.totalorder %s16, 1
      %p76 = scmp.ne.s32.totalorder %s71, %s73
      %p77 = scmp.eq.s32.totalorder %s16, 0
      %p78 = por %p76, %p77
      %p79 = scmp.ne.s32.totalorder %s71, %s73
      %p80 = scmp.eq.s32.totalorder %s21, 1
      %p81 = por %p79, %p80
      %p82 = scmp.ne.s32.totalorder %s73, %s74
      %p83 = scmp.eq.s32.totalorder %s21, 0
      %p84 = por %p82, %p83
      %p85 = scmp.ne.s32.totalorder %s73, %s74
      %p86 = scmp.eq.s32.totalorder %s22, 1
      %p87 = por %p85, %p86
      %p89 = scmp.ne.s32.totalorder %s74, %s88
      %p90 = scmp.eq.s32.totalorder %s22, 0
      %p91 = por %p89, %p90
      %s92 = ssub.s32 %s16, %s23
      %p93 = scmp.eq.s32.totalorder %s92, 0
      %s95 = sadd.s32 %s94, 1
      %s96 = scalar_select %p93, %s94, %s95
      %p99 = pneg %p93
      %p100 = scmp.eq.s32.totalorder %s16, 1
      %p101 = por %p99, %p100
      %p102 = scmp.ne.s32.totalorder %s94, %s97
      %p103 = scmp.eq.s32.totalorder %s16, 0
      %p104 = por %p102, %p103
      %p105 = scmp.ne.s32.totalorder %s94, %s97
      %p106 = scmp.eq.s32.totalorder %s21, 1
      %p107 = por %p105, %p106
      %p108 = scmp.ne.s32.totalorder %s97, %s98
      %p109 = scmp.eq.s32.totalorder %s21, 0
      %p110 = por %p108, %p109
      %p111 = scmp.ne.s32.totalorder %s97, %s98
      %p112 = scmp.eq.s32.totalorder %s22, 1
      %p113 = por %p111, %p112
      %p115 = scmp.ne.s32.totalorder %s98, %s114
      %p116 = scmp.eq.s32.totalorder %s22, 0
      %p117 = por %p115, %p116
      %p118 = scmp.le.s32.totalorder 1, %s16
      %p119 = scmp.lt.s32.totalorder %s16, 3
      %p120 = pnand %p118, %p119
      %p121 = pneg %p120
      // Predicated region
      $region9: #{tpu_custom_call.1} parent=5 // pred_check
        _
      $region10: #{tpu_custom_call.1} parent=5 // pred_check_branch
        %123 = sbr.rel (%p120) target = $region12
      $region11: #{tpu_custom_call.1} parent=5 // pred_region
        %s124 = ssub.s32 %s16, 1
        // Predicated region
        $region13: #{tpu_custom_call.1} parent=11 // pred_check
          %p125 = pneg %p63
        $region14: #{tpu_custom_call.1} parent=11 // pred_check_branch
          %127 = sbr.rel (%p125) target = $region16
        $region15: #{tpu_custom_call.1} parent=11 // pred_region
          %129 = vsyncadd [#allocation7], 0
          %s130 = sshll.u32 %s1, 4
          %s131 = int_to_ptr.hbm [resolvable:$true] %s130
          %s132 = sshll.u32 [#allocation6], 4
          %s133 = int_to_ptr.vmem [resolvable:$true] %s132
          %138 = dma.hbm_to_vmem [thread:$0]  %s131, 9216, %s133, [#allocation7], 128, 128, 8
        $region16: #{tpu_custom_call.1} parent=11 // pred_fallthru
          _
        // Predicated region
        $region17: #{tpu_custom_call.1} parent=11 // pred_check
          %p139 = pneg %p84
        $region18: #{tpu_custom_call.1} parent=11 // pred_check_branch
          %141 = sbr.rel (%p139) target = $region20
        $region19: #{tpu_custom_call.1} parent=11 // pred_region
          _
        $region20: #{tpu_custom_call.1} parent=11 // pred_fallthru
          _
      $region12: #{tpu_custom_call.1} parent=5 // pred_fallthru
        _
      %p142 = scmp.lt.s32.totalorder %s16, 2
      // Predicated region
      $region21: #{tpu_custom_call.1} parent=5 // pred_check
        %p143 = pneg %p142
      $region22: #{tpu_custom_call.1} parent=5 // pred_check_branch
        %145 = sbr.rel (%p143) target = $region24
      $region23: #{tpu_custom_call.1} parent=5 // pred_region
        // Predicated region
        $region25: #{tpu_custom_call.1} parent=23 // pred_check
          %p146 = pneg %p36
        $region26: #{tpu_custom_call.1} parent=23 // pred_check_branch
          %148 = sbr.rel (%p146) target = $region28
        $region27: #{tpu_custom_call.1} parent=23 // pred_region
          %s149 = sand.u32 %s26, 1
          %s150 = scalar_lea.sflag [#allocation4], %s149
          %s151 = sand.u32 %s26, 1
          %s152 = smul.addr %s151, 256
          %s153 = scalar_lea.vmem [#allocation3], %s152
          %155 = vsyncadd %s150, 0
          %s156 = smul.addr %s16, 32
          %s157 = smul.addr %s156, 8
          %s158 = scalar_lea.hbm %s0, %s157
          %s159 = sshll.u32 %s158, 4
          %s160 = int_to_ptr.hbm [resolvable:$true] %s159
          %s161 = sshll.u32 %s153, 4
          %s162 = int_to_ptr.vmem [resolvable:$true] %s161
          %167 = dma.hbm_to_vmem [thread:$0]  %s160, 4096, %s162, %s150, 128, 128, 8
        $region28: #{tpu_custom_call.1} parent=23 // pred_fallthru
          _
      $region24: #{tpu_custom_call.1} parent=5 // pred_fallthru
        _
      %p168 = scmp.le.s32.totalorder 1, %s16
      %p169 = scmp.lt.s32.totalorder %s16, 3
      %p170 = pnand %p168, %p169
      %p171 = pneg %p170
      // Predicated region
      $region29: #{tpu_custom_call.1} parent=5 // pred_check
        _
      $region30: #{tpu_custom_call.1} parent=5 // pred_check_branch
        %173 = sbr.rel (%p170) target = $region32
      $region31: #{tpu_custom_call.1} parent=5 // pred_region
        %s174 = ssub.s32 %s16, 1
        %s175 = sand.u32 %s29, 1
        %s176 = scalar_lea.sflag [#allocation4], %s175
        %s177 = sand.u32 %s29, 1
        %s178 = smul.addr %s177, 256
        %s179 = scalar_lea.vmem [#allocation3], %s178
        // Predicated region
        $region33: #{tpu_custom_call.1} parent=31 // pred_check
          %p180 = pneg %p42
        $region34: #{tpu_custom_call.1} parent=31 // pred_check_branch
          %182 = sbr.rel (%p180) target = $region36
        $region35: #{tpu_custom_call.1} parent=31 // pred_region
          %184 = dma.done %s176, 4096
        $region36: #{tpu_custom_call.1} parent=31 // pred_fallthru
          _
        // Predicated region
        $region37: #{tpu_custom_call.1} parent=31 // pred_check
          %p185 = pneg %p63
        $region38: #{tpu_custom_call.1} parent=31 // pred_check_branch
          %187 = sbr.rel (%p185) target = $region40
        $region39: #{tpu_custom_call.1} parent=31 // pred_region
          %189 = dma.done [#allocation7], 9216
        $region40: #{tpu_custom_call.1} parent=31 // pred_fallthru
          _
        %s190 = sand.u32 %s29, 1
        %s191 = scalar_lea.sflag [#allocation4], %s190
        %s192 = sand.u32 %s29, 1
        %s193 = smul.addr %s192, 256
        %s194 = scalar_lea.vmem [#allocation3], %s193
        %p195 = pneg %p42
        %p196 = pneg %p39
        %p197 = pneg %p63
        %p198 = pneg %p60
        %p199 = pneg %p84
        %p200 = pneg %p81
        %p201 = pneg %p110
        %p202 = pneg %p107
        %s203 = sand.u32 %s97, 1
        %s204 = scalar_lea.sflag [#allocation5], %s203
        %s205 = sand.u32 %s97, 1
        %s206 = smul.addr %s205, 256
        %s207 = scalar_lea.vmem [#allocation8], %s206
        %vm208 = vcmask 523264
        %209 = vst.msk [vmem:[#allocation2] sm:$0xff] %vm208, 0.0
        %210 = vst.msk [vmem:[#allocation2 + $0x8] sm:$0xff] %vm208, 0.0
        %vm211 = vcmask 517120
        %212 = vst.msk [vmem:[#allocation2 + $0x10] sm:$0x3] %vm211, 0.0
        %s213 = scalar_lea.vmem [#allocation2], 408
        %214 = vst.msk [vmem:[%s213] sm:$0xff] %vm208, 0.0
        %215 = vst.msk [vmem:[%s213 + $0x8] sm:$0xff] %vm208, 0.0
        %216 = vst.msk [vmem:[%s213 + $0x10] sm:$0x3] %vm211, 0.0
        %s217 = scalar_lea.vmem [#allocation2], 24
        %vm218 = vcmask 516096
        %219 = vst.msk [vmem:[%s217] sm:$0x1] %vm218, 0.0
        %220 = vst.msk [vmem:[%s217 + $0x18] sm:$0x1] %vm218, 0.0
        %221 = vst.msk [vmem:[%s217 + $0x30] sm:$0x1] %vm218, 0.0
        %222 = vst.msk [vmem:[%s217 + $0x48] sm:$0x1] %vm218, 0.0
        %223 = vst.msk [vmem:[%s217 + $0x60] sm:$0x1] %vm218, 0.0
        %224 = vst.msk [vmem:[%s217 + $0x78] sm:$0x1] %vm218, 0.0
        %225 = vst.msk [vmem:[%s217 + $0x90] sm:$0x1] %vm218, 0.0
        %226 = vst.msk [vmem:[%s217 + $0xa8] sm:$0x1] %vm218, 0.0
        %227 = vst.msk [vmem:[%s217 + $0xc0] sm:$0x1] %vm218, 0.0
        %228 = vst.msk [vmem:[%s217 + $0xd8] sm:$0x1] %vm218, 0.0
        %229 = vst.msk [vmem:[%s217 + $0xf0] sm:$0x1] %vm218, 0.0
        %230 = vst.msk [vmem:[%s217 + $0x108] sm:$0x1] %vm218, 0.0
        %231 = vst.msk [vmem:[%s217 + $0x120] sm:$0x1] %vm218, 0.0
        %232 = vst.msk [vmem:[%s217 + $0x138] sm:$0x1] %vm218, 0.0
        %233 = vst.msk [vmem:[%s217 + $0x150] sm:$0x1] %vm218, 0.0
        %234 = vst.msk [vmem:[%s217 + $0x168] sm:$0x1] %vm218, 0.0
        %235 = vst.msk [vmem:[%s217 + $0x11] sm:$0x1] %vm218, 0.0
        %236 = vst.msk [vmem:[%s217 + $0x29] sm:$0x1] %vm218, 0.0
        %237 = vst.msk [vmem:[%s217 + $0x41] sm:$0x1] %vm218, 0.0
        %238 = vst.msk [vmem:[%s217 + $0x59] sm:$0x1] %vm218, 0.0
        %239 = vst.msk [vmem:[%s217 + $0x71] sm:$0x1] %vm218, 0.0
        %240 = vst.msk [vmem:[%s217 + $0x89] sm:$0x1] %vm218, 0.0
        %241 = vst.msk [vmem:[%s217 + $0xa1] sm:$0x1] %vm218, 0.0
        %242 = vst.msk [vmem:[%s217 + $0xb9] sm:$0x1] %vm218, 0.0
        %243 = vst.msk [vmem:[%s217 + $0xd1] sm:$0x1] %vm218, 0.0
        %244 = vst.msk [vmem:[%s217 + $0xe9] sm:$0x1] %vm218, 0.0
        %245 = vst.msk [vmem:[%s217 + $0x101] sm:$0x1] %vm218, 0.0
        %246 = vst.msk [vmem:[%s217 + $0x119] sm:$0x1] %vm218, 0.0
        %247 = vst.msk [vmem:[%s217 + $0x131] sm:$0x1] %vm218, 0.0
        %248 = vst.msk [vmem:[%s217 + $0x149] sm:$0x1] %vm218, 0.0
        %249 = vst.msk [vmem:[%s217 + $0x161] sm:$0x1] %vm218, 0.0
        %250 = vst.msk [vmem:[%s217 + $0x179] sm:$0x1] %vm218, 0.0
        %v251 = vld [vmem:[%s179] sm:$0xff]
        %v252 = vld [vmem:[%s179 + $0x8] sm:$0xff]
        %v253 = vld [vmem:[%s179 + $0x10] sm:$0xff]
        %v254 = vld [vmem:[%s179 + $0x18] sm:$0xff]
        %v255 = vld [vmem:[%s179 + $0x20] sm:$0xff]
        %v256 = vld [vmem:[%s179 + $0x28] sm:$0xff]
        %v257 = vld [vmem:[%s179 + $0x30] sm:$0xff]
        %v258 = vld [vmem:[%s179 + $0x38] sm:$0xff]
        %v259 = vld [vmem:[%s179 + $0x40] sm:$0xff]
        %v260 = vld [vmem:[%s179 + $0x48] sm:$0xff]
        %v261 = vld [vmem:[%s179 + $0x50] sm:$0xff]
        %v262 = vld [vmem:[%s179 + $0x58] sm:$0xff]
        %v263 = vld [vmem:[%s179 + $0x60] sm:$0xff]
        %v264 = vld [vmem:[%s179 + $0x68] sm:$0xff]
        %v265 = vld [vmem:[%s179 + $0x70] sm:$0xff]
        %v266 = vld [vmem:[%s179 + $0x78] sm:$0xff]
        %v267 = vld [vmem:[%s179 + $0x80] sm:$0xff]
        %v268 = vld [vmem:[%s179 + $0x88] sm:$0xff]
        %v269 = vld [vmem:[%s179 + $0x90] sm:$0xff]
        %v270 = vld [vmem:[%s179 + $0x98] sm:$0xff]
        %v271 = vld [vmem:[%s179 + $0xa0] sm:$0xff]
        %v272 = vld [vmem:[%s179 + $0xa8] sm:$0xff]
        %v273 = vld [vmem:[%s179 + $0xb0] sm:$0xff]
        %v274 = vld [vmem:[%s179 + $0xb8] sm:$0xff]
        %v275 = vld [vmem:[%s179 + $0xc0] sm:$0xff]
        %v276 = vld [vmem:[%s179 + $0xc8] sm:$0xff]
        %v277 = vld [vmem:[%s179 + $0xd0] sm:$0xff]
        %v278 = vld [vmem:[%s179 + $0xd8] sm:$0xff]
        %v279 = vld [vmem:[%s179 + $0xe0] sm:$0xff]
        %v280 = vld [vmem:[%s179 + $0xe8] sm:$0xff]
        %v281 = vld [vmem:[%s179 + $0xf0] sm:$0xff]
        %v282 = vld [vmem:[%s179 + $0xf8] sm:$0xff]
        %283 = vst.msk [vmem:[%s217 + $0x1] sm:$0xff] %vm208, %v251
        %284 = vst.msk [vmem:[%s217 + $0x9] sm:$0xff] %vm208, %v252
        %285 = vst.msk [vmem:[%s217 + $0x19] sm:$0xff] %vm208, %v253
        %286 = vst.msk [vmem:[%s217 + $0x21] sm:$0xff] %vm208, %v254
        %287 = vst.msk [vmem:[%s217 + $0x31] sm:$0xff] %vm208, %v255
        %288 = vst.msk [vmem:[%s217 + $0x39] sm:$0xff] %vm208, %v256
        %289 = vst.msk [vmem:[%s217 + $0x49] sm:$0xff] %vm208, %v257
        %290 = vst.msk [vmem:[%s217 + $0x51] sm:$0xff] %vm208, %v258
        %291 = vst.msk [vmem:[%s217 + $0x61] sm:$0xff] %vm208, %v259
        %292 = vst.msk [vmem:[%s217 + $0x69] sm:$0xff] %vm208, %v260
        %293 = vst.msk [vmem:[%s217 + $0x79] sm:$0xff] %vm208, %v261
        %294 = vst.msk [vmem:[%s217 + $0x81] sm:$0xff] %vm208, %v262
        %295 = vst.msk [vmem:[%s217 + $0x91] sm:$0xff] %vm208, %v263
        %296 = vst.msk [vmem:[%s217 + $0x99] sm:$0xff] %vm208, %v264
        %297 = vst.msk [vmem:[%s217 + $0xa9] sm:$0xff] %vm208, %v265
        %298 = vst.msk [vmem:[%s217 + $0xb1] sm:$0xff] %vm208, %v266
        %299 = vst.msk [vmem:[%s217 + $0xc1] sm:$0xff] %vm208, %v267
        %300 = vst.msk [vmem:[%s217 + $0xc9] sm:$0xff] %vm208, %v268
        %301 = vst.msk [vmem:[%s217 + $0xd9] sm:$0xff] %vm208, %v269
        %302 = vst.msk [vmem:[%s217 + $0xe1] sm:$0xff] %vm208, %v270
        %303 = vst.msk [vmem:[%s217 + $0xf1] sm:$0xff] %vm208, %v271
        %304 = vst.msk [vmem:[%s217 + $0xf9] sm:$0xff] %vm208, %v272
        %305 = vst.msk [vmem:[%s217 + $0x109] sm:$0xff] %vm208, %v273
        %306 = vst.msk [vmem:[%s217 + $0x111] sm:$0xff] %vm208, %v274
        %307 = vst.msk [vmem:[%s217 + $0x121] sm:$0xff] %vm208, %v275
        %308 = vst.msk [vmem:[%s217 + $0x129] sm:$0xff] %vm208, %v276
        %309 = vst.msk [vmem:[%s217 + $0x139] sm:$0xff] %vm208, %v277
        %310 = vst.msk [vmem:[%s217 + $0x141] sm:$0xff] %vm208, %v278
        %311 = vst.msk [vmem:[%s217 + $0x151] sm:$0xff] %vm208, %v279
        %312 = vst.msk [vmem:[%s217 + $0x159] sm:$0xff] %vm208, %v280
        %313 = vst.msk [vmem:[%s217 + $0x169] sm:$0xff] %vm208, %v281
        %314 = vst.msk [vmem:[%s217 + $0x171] sm:$0xff] %vm208, %v282
        %v315 = vld [vmem:[#allocation2] sm:$0xff]
        %v316 = vld [vmem:[#allocation2 + $0x8] sm:$0xff]
        %v317 = vld [vmem:[#allocation2 + $0x18] sm:$0xff]
        %v318 = vld [vmem:[#allocation2 + $0x20] sm:$0xff]
        %v319 = vld [vmem:[#allocation2 + $0x30] sm:$0xff]
        %v320 = vld [vmem:[#allocation2 + $0x38] sm:$0xff]
        %v321 = vld [vmem:[#allocation2 + $0x48] sm:$0xff]
        %v322 = vld [vmem:[#allocation2 + $0x50] sm:$0xff]
        %v323 = vld [vmem:[#allocation2 + $0x60] sm:$0xff]
        %v324 = vld [vmem:[#allocation2 + $0x68] sm:$0xff]
        %v325 = vld [vmem:[#allocation2 + $0x78] sm:$0xff]
        %v326 = vld [vmem:[#allocation2 + $0x80] sm:$0xff]
        %v327 = vld [vmem:[#allocation2 + $0x90] sm:$0xff]
        %v328 = vld [vmem:[#allocation2 + $0x98] sm:$0xff]
        %v329 = vld [vmem:[#allocation2 + $0xa8] sm:$0xff]
        %v330 = vld [vmem:[#allocation2 + $0xb0] sm:$0xff]
        %v331 = vld [vmem:[#allocation2 + $0xc0] sm:$0xff]
        %v332 = vld [vmem:[#allocation2 + $0xc8] sm:$0xff]
        %v333 = vld [vmem:[#allocation2 + $0xd8] sm:$0xff]
        %v334 = vld [vmem:[#allocation2 + $0xe0] sm:$0xff]
        %v335 = vld [vmem:[#allocation2 + $0xf0] sm:$0xff]
        %v336 = vld [vmem:[#allocation2 + $0xf8] sm:$0xff]
        %v337 = vld [vmem:[#allocation2 + $0x108] sm:$0xff]
        %v338 = vld [vmem:[#allocation2 + $0x110] sm:$0xff]
        %v339 = vld [vmem:[#allocation2 + $0x120] sm:$0xff]
        %v340 = vld [vmem:[#allocation2 + $0x128] sm:$0xff]
        %v341 = vld [vmem:[#allocation2 + $0x138] sm:$0xff]
        %v342 = vld [vmem:[#allocation2 + $0x140] sm:$0xff]
        %v343 = vld [vmem:[#allocation2 + $0x150] sm:$0xff]
        %v344 = vld [vmem:[#allocation2 + $0x158] sm:$0xff]
        %v345 = vld [vmem:[#allocation2 + $0x168] sm:$0xff]
        %v346 = vld [vmem:[#allocation2 + $0x170] sm:$0xff]
        %v347 = vld [vmem:[#allocation6] sm:$0xff]
        %v348 = vld [vmem:[#allocation6 + $0x8] sm:$0xff]
        %v349 = vld [vmem:[#allocation6 + $0x10] sm:$0xff]
        %v350 = vld [vmem:[#allocation6 + $0x18] sm:$0xff]
        %v351 = vld [vmem:[#allocation6 + $0x20] sm:$0xff]
        %v352 = vld [vmem:[#allocation6 + $0x28] sm:$0xff]
        %v353 = vld [vmem:[#allocation6 + $0x30] sm:$0xff]
        %v354 = vld [vmem:[#allocation6 + $0x38] sm:$0xff]
        %v355 = vld [vmem:[#allocation2 + $0x1] sm:$0xff]
        %v356 = vld [vmem:[#allocation2 + $0x9] sm:$0xff]
        %v357 = vld [vmem:[#allocation2 + $0x19] sm:$0xff]
        %v358 = vld [vmem:[#allocation2 + $0x21] sm:$0xff]
        %v359 = vld [vmem:[#allocation2 + $0x31] sm:$0xff]
        %v360 = vld [vmem:[#allocation2 + $0x39] sm:$0xff]
        %v361 = vld [vmem:[#allocation2 + $0x49] sm:$0xff]
        %v362 = vld [vmem:[#allocation2 + $0x51] sm:$0xff]
        %v363 = vld [vmem:[#allocation2 + $0x61] sm:$0xff]
        %v364 = vld [vmem:[#allocation2 + $0x69] sm:$0xff]
        %v365 = vld [vmem:[#allocation2 + $0x79] sm:$0xff]
        %v366 = vld [vmem:[#allocation2 + $0x81] sm:$0xff]
        %v367 = vld [vmem:[#allocation2 + $0x91] sm:$0xff]
        %v368 = vld [vmem:[#allocation2 + $0x99] sm:$0xff]
        %v369 = vld [vmem:[#allocation2 + $0xa9] sm:$0xff]
        %v370 = vld [vmem:[#allocation2 + $0xb1] sm:$0xff]
        %v371 = vld [vmem:[#allocation2 + $0xc1] sm:$0xff]
        %v372 = vld [vmem:[#allocation2 + $0xc9] sm:$0xff]
        %v373 = vld [vmem:[#allocation2 + $0xd9] sm:$0xff]
        %v374 = vld [vmem:[#allocation2 + $0xe1] sm:$0xff]
        %v375 = vld [vmem:[#allocation2 + $0xf1] sm:$0xff]
        %v376 = vld [vmem:[#allocation2 + $0xf9] sm:$0xff]
        %v377 = vld [vmem:[#allocation2 + $0x109] sm:$0xff]
        %v378 = vld [vmem:[#allocation2 + $0x111] sm:$0xff]
        %v379 = vld [vmem:[#allocation2 + $0x121] sm:$0xff]
        %v380 = vld [vmem:[#allocation2 + $0x129] sm:$0xff]
        %v381 = vld [vmem:[#allocation2 + $0x139] sm:$0xff]
        %v382 = vld [vmem:[#allocation2 + $0x141] sm:$0xff]
        %v383 = vld [vmem:[#allocation2 + $0x151] sm:$0xff]
        %v384 = vld [vmem:[#allocation2 + $0x159] sm:$0xff]
        %v385 = vld [vmem:[#allocation2 + $0x169] sm:$0xff]
        %v386 = vld [vmem:[#allocation2 + $0x171] sm:$0xff]
        %s387 = scalar_lea.vmem [#allocation6], 64
        %v388 = vld [vmem:[%s387] sm:$0xff]
        %v389 = vld [vmem:[%s387 + $0x8] sm:$0xff]
        %v390 = vld [vmem:[%s387 + $0x10] sm:$0xff]
        %v391 = vld [vmem:[%s387 + $0x18] sm:$0xff]
        %v392 = vld [vmem:[%s387 + $0x20] sm:$0xff]
        %v393 = vld [vmem:[%s387 + $0x28] sm:$0xff]
        %v394 = vld [vmem:[%s387 + $0x30] sm:$0xff]
        %v395 = vld [vmem:[%s387 + $0x38] sm:$0xff]
        %v397 = vsel %vm208, %v355, 0
        %v400 = vsel %vm208, %v356, 0
        %v403 = vsel %vm208, %v357, 0
        %v406 = vsel %vm208, %v358, 0
        %v409 = vsel %vm208, %v359, 0
        %v412 = vsel %vm208, %v360, 0
        %v415 = vsel %vm208, %v361, 0
        %v418 = vsel %vm208, %v362, 0
        %v421 = vsel %vm208, %v363, 0
        %v424 = vsel %vm208, %v364, 0
        %v427 = vsel %vm208, %v365, 0
        %v430 = vsel %vm208, %v366, 0
        %v433 = vsel %vm208, %v367, 0
        %v436 = vsel %vm208, %v368, 0
        %v439 = vsel %vm208, %v369, 0
        %v442 = vsel %vm208, %v370, 0
        %v445 = vsel %vm208, %v371, 0
        %v448 = vsel %vm208, %v372, 0
        %v451 = vsel %vm208, %v373, 0
        %v454 = vsel %vm208, %v374, 0
        %v457 = vsel %vm208, %v375, 0
        %v460 = vsel %vm208, %v376, 0
        %v463 = vsel %vm208, %v377, 0
        %v466 = vsel %vm208, %v378, 0
        %v469 = vsel %vm208, %v379, 0
        %v472 = vsel %vm208, %v380, 0
        %v475 = vsel %vm208, %v381, 0
        %v478 = vsel %vm208, %v382, 0
        %v481 = vsel %vm208, %v383, 0
        %v484 = vsel %vm208, %v384, 0
        %v487 = vsel %vm208, %v385, 0
        %v490 = vsel %vm208, %v386, 0
        %492 = vmatpush.msra.mxu0 0.0
        %493 = vmatpush.msra.mxu0 0.0
        %494 = vmatpush.msra.mxu0 0.0
        %495 = vmatpush.msra.mxu0 0.0
        %496 = vmatpush.msra.mxu0 0.0
        %497 = vmatpush.msra.mxu0 0.0
        %498 = vmatpush.msra.mxu0 0.0
        %499 = vmatpush.msra.mxu0 0.0
        %500 = vmatpush.msra.mxu0 %v395
        %501 = vmatpush.msra.mxu0 %v394
        %502 = vmatpush.msra.mxu0 %v393
        %503 = vmatpush.msra.mxu0 %v392
        %504 = vmatpush.msra.mxu0 %v391
        %505 = vmatpush.msra.mxu0 %v390
        %506 = vmatpush.msra.mxu0 %v389
        %507 = vmatpush.msra.mxu0 %v388
        %508 = vmatmul.f32.gmra.mxu0 %v397
        %v509 = vpop.f32.mrf.mxu0
        %v510 = vadd.f32 0.0, %v509
        %511 = vmatmul.f32.gmra.mxu0 %v400
        %v512 = vpop.f32.mrf.mxu0
        %v513 = vadd.f32 0.0, %v512
        %514 = vmatmul.f32.gmra.mxu0 %v403
        %v515 = vpop.f32.mrf.mxu0
        %v516 = vadd.f32 0.0, %v515
        %517 = vmatmul.f32.gmra.mxu0 %v406
        %v518 = vpop.f32.mrf.mxu0
        %v519 = vadd.f32 0.0, %v518
        %520 = vmatmul.f32.gmra.mxu0 %v409
        %v521 = vpop.f32.mrf.mxu0
        %v522 = vadd.f32 0.0, %v521
        %523 = vmatmul.f32.gmra.mxu0 %v412
        %v524 = vpop.f32.mrf.mxu0
        %v525 = vadd.f32 0.0, %v524
        %526 = vmatmul.f32.gmra.mxu0 %v415
        %v527 = vpop.f32.mrf.mxu0
        %v528 = vadd.f32 0.0, %v527
        %529 = vmatmul.f32.gmra.mxu0 %v418
        %v530 = vpop.f32.mrf.mxu0
        %v531 = vadd.f32 0.0, %v530
        %532 = vmatmul.f32.gmra.mxu0 %v421
        %v533 = vpop.f32.mrf.mxu0
        %v534 = vadd.f32 0.0, %v533
        %535 = vmatmul.f32.gmra.mxu0 %v424
        %v536 = vpop.f32.mrf.mxu0
        %v537 = vadd.f32 0.0, %v536
        %538 = vmatmul.f32.gmra.mxu0 %v427
        %v539 = vpop.f32.mrf.mxu0
        %v540 = vadd.f32 0.0, %v539
        %541 = vmatmul.f32.gmra.mxu0 %v430
        %v542 = vpop.f32.mrf.mxu0
        %v543 = vadd.f32 0.0, %v542
        %544 = vmatmul.f32.gmra.mxu0 %v433
        %v545 = vpop.f32.mrf.mxu0
        %v546 = vadd.f32 0.0, %v545
        %547 = vmatmul.f32.gmra.mxu0 %v436
        %v548 = vpop.f32.mrf.mxu0
        %v549 = vadd.f32 0.0, %v548
        %550 = vmatmul.f32.gmra.mxu0 %v439
        %v551 = vpop.f32.mrf.mxu0
        %v552 = vadd.f32 0.0, %v551
        %553 = vmatmul.f32.gmra.mxu0 %v442
        %v554 = vpop.f32.mrf.mxu0
        %v555 = vadd.f32 0.0, %v554
        %556 = vmatmul.f32.gmra.mxu0 %v445
        %v557 = vpop.f32.mrf.mxu0
        %v558 = vadd.f32 0.0, %v557
        %559 = vmatmul.f32.gmra.mxu0 %v448
        %v560 = vpop.f32.mrf.mxu0
        %v561 = vadd.f32 0.0, %v560
        %562 = vmatmul.f32.gmra.mxu0 %v451
        %v563 = vpop.f32.mrf.mxu0
        %v564 = vadd.f32 0.0, %v563
        %565 = vmatmul.f32.gmra.mxu0 %v454
        %v566 = vpop.f32.mrf.mxu0
        %v567 = vadd.f32 0.0, %v566
        %568 = vmatmul.f32.gmra.mxu0 %v457
        %v569 = vpop.f32.mrf.mxu0
        %v570 = vadd.f32 0.0, %v569
        %571 = vmatmul.f32.gmra.mxu0 %v460
        %v572 = vpop.f32.mrf.mxu0
        %v573 = vadd.f32 0.0, %v572
        %574 = vmatmul.f32.gmra.mxu0 %v463
        %v575 = vpop.f32.mrf.mxu0
        %v576 = vadd.f32 0.0, %v575
        %577 = vmatmul.f32.gmra.mxu0 %v466
        %v578 = vpop.f32.mrf.mxu0
        %v579 = vadd.f32 0.0, %v578
        %580 = vmatmul.f32.gmra.mxu0 %v469
        %v581 = vpop.f32.mrf.mxu0
        %v582 = vadd.f32 0.0, %v581
        %583 = vmatmul.f32.gmra.mxu0 %v472
        %v584 = vpop.f32.mrf.mxu0
        %v585 = vadd.f32 0.0, %v584
        %586 = vmatmul.f32.gmra.mxu0 %v475
        %v587 = vpop.f32.mrf.mxu0
        %v588 = vadd.f32 0.0, %v587
        %589 = vmatmul.f32.gmra.mxu0 %v478
        %v590 = vpop.f32.mrf.mxu0
        %v591 = vadd.f32 0.0, %v590
        %592 = vmatmul.f32.gmra.mxu0 %v481
        %v593 = vpop.f32.mrf.mxu0
        %v594 = vadd.f32 0.0, %v593
        %595 = vmatmul.f32.gmra.mxu0 %v484
        %v596 = vpop.f32.mrf.mxu0
        %v597 = vadd.f32 0.0, %v596
        %598 = vmatmul.f32.gmra.mxu0 %v487
        %v599 = vpop.f32.mrf.mxu0
        %v600 = vadd.f32 0.0, %v599
        %601 = vmatmul.f32.gmra.mxu0 %v490
        %v602 = vpop.f32.mrf.mxu0
        %v603 = vadd.f32 0.0, %v602
        %604 = vdwg.mxu0
        %v606 = vsel %vm208, %v315, 0
        %v609 = vsel %vm208, %v316, 0
        %v612 = vsel %vm208, %v317, 0
        %v615 = vsel %vm208, %v318, 0
        %v618 = vsel %vm208, %v319, 0
        %v621 = vsel %vm208, %v320, 0
        %v624 = vsel %vm208, %v321, 0
        %v627 = vsel %vm208, %v322, 0
        %v630 = vsel %vm208, %v323, 0
        %v633 = vsel %vm208, %v324, 0
        %v636 = vsel %vm208, %v325, 0
        %v639 = vsel %vm208, %v326, 0
        %v642 = vsel %vm208, %v327, 0
        %v645 = vsel %vm208, %v328, 0
        %v648 = vsel %vm208, %v329, 0
        %v651 = vsel %vm208, %v330, 0
        %v654 = vsel %vm208, %v331, 0
        %v657 = vsel %vm208, %v332, 0
        %v660 = vsel %vm208, %v333, 0
        %v663 = vsel %vm208, %v334, 0
        %v666 = vsel %vm208, %v335, 0
        %v669 = vsel %vm208, %v336, 0
        %v672 = vsel %vm208, %v337, 0
        %v675 = vsel %vm208, %v338, 0
        %v678 = vsel %vm208, %v339, 0
        %v681 = vsel %vm208, %v340, 0
        %v684 = vsel %vm208, %v341, 0
        %v687 = vsel %vm208, %v342, 0
        %v690 = vsel %vm208, %v343, 0
        %v693 = vsel %vm208, %v344, 0
        %v696 = vsel %vm208, %v345, 0
        %v699 = vsel %vm208, %v346, 0
        %701 = vmatpush.msra.mxu0 0.0
        %702 = vmatpush.msra.mxu0 0.0
        %703 = vmatpush.msra.mxu0 0.0
        %704 = vmatpush.msra.mxu0 0.0
        %705 = vmatpush.msra.mxu0 0.0
        %706 = vmatpush.msra.mxu0 0.0
        %707 = vmatpush.msra.mxu0 0.0
        %708 = vmatpush.msra.mxu0 0.0
        %709 = vmatpush.msra.mxu0 %v354
        %710 = vmatpush.msra.mxu0 %v353
        %711 = vmatpush.msra.mxu0 %v352
        %712 = vmatpush.msra.mxu0 %v351
        %713 = vmatpush.msra.mxu0 %v350
        %714 = vmatpush.msra.mxu0 %v349
        %715 = vmatpush.msra.mxu0 %v348
        %716 = vmatpush.msra.mxu0 %v347
        %717 = vmatmul.f32.gmra.mxu0 %v606
        %v718 = vpop.f32.mrf.mxu0
        %v719 = vadd.f32 %v510, %v718
        %720 = vmatmul.f32.gmra.mxu0 %v609
        %v721 = vpop.f32.mrf.mxu0
        %v722 = vadd.f32 %v513, %v721
        %723 = vmatmul.f32.gmra.mxu0 %v612
        %v724 = vpop.f32.mrf.mxu0
        %v725 = vadd.f32 %v516, %v724
        %726 = vmatmul.f32.gmra.mxu0 %v615
        %v727 = vpop.f32.mrf.mxu0
        %v728 = vadd.f32 %v519, %v727
        %729 = vmatmul.f32.gmra.mxu0 %v618
        %v730 = vpop.f32.mrf.mxu0
        %v731 = vadd.f32 %v522, %v730
        %732 = vmatmul.f32.gmra.mxu0 %v621
        %v733 = vpop.f32.mrf.mxu0
        %v734 = vadd.f32 %v525, %v733
        %735 = vmatmul.f32.gmra.mxu0 %v624
        %v736 = vpop.f32.mrf.mxu0
        %v737 = vadd.f32 %v528, %v736
        %738 = vmatmul.f32.gmra.mxu0 %v627
        %v739 = vpop.f32.mrf.mxu0
        %v740 = vadd.f32 %v531, %v739
        %741 = vmatmul.f32.gmra.mxu0 %v630
        %v742 = vpop.f32.mrf.mxu0
        %v743 = vadd.f32 %v534, %v742
        %744 = vmatmul.f32.gmra.mxu0 %v633
        %v745 = vpop.f32.mrf.mxu0
        %v746 = vadd.f32 %v537, %v745
        %747 = vmatmul.f32.gmra.mxu0 %v636
        %v748 = vpop.f32.mrf.mxu0
        %v749 = vadd.f32 %v540, %v748
        %750 = vmatmul.f32.gmra.mxu0 %v639
        %v751 = vpop.f32.mrf.mxu0
        %v752 = vadd.f32 %v543, %v751
        %753 = vmatmul.f32.gmra.mxu0 %v642
        %v754 = vpop.f32.mrf.mxu0
        %v755 = vadd.f32 %v546, %v754
        %756 = vmatmul.f32.gmra.mxu0 %v645
        %v757 = vpop.f32.mrf.mxu0
        %v758 = vadd.f32 %v549, %v757
        %759 = vmatmul.f32.gmra.mxu0 %v648
        %v760 = vpop.f32.mrf.mxu0
        %v761 = vadd.f32 %v552, %v760
        %762 = vmatmul.f32.gmra.mxu0 %v651
        %v763 = vpop.f32.mrf.mxu0
        %v764 = vadd.f32 %v555, %v763
        %765 = vmatmul.f32.gmra.mxu0 %v654
        %v766 = vpop.f32.mrf.mxu0
        %v767 = vadd.f32 %v558, %v766
        %768 = vmatmul.f32.gmra.mxu0 %v657
        %v769 = vpop.f32.mrf.mxu0
        %v770 = vadd.f32 %v561, %v769
        %771 = vmatmul.f32.gmra.mxu0 %v660
        %v772 = vpop.f32.mrf.mxu0
        %v773 = vadd.f32 %v564, %v772
        %774 = vmatmul.f32.gmra.mxu0 %v663
        %v775 = vpop.f32.mrf.mxu0
        %v776 = vadd.f32 %v567, %v775
        %777 = vmatmul.f32.gmra.mxu0 %v666
        %v778 = vpop.f32.mrf.mxu0
        %v779 = vadd.f32 %v570, %v778
        %780 = vmatmul.f32.gmra.mxu0 %v669
        %v781 = vpop.f32.mrf.mxu0
        %v782 = vadd.f32 %v573, %v781
        %783 = vmatmul.f32.gmra.mxu0 %v672
        %v784 = vpop.f32.mrf.mxu0
        %v785 = vadd.f32 %v576, %v784
        %786 = vmatmul.f32.gmra.mxu0 %v675
        %v787 = vpop.f32.mrf.mxu0
        %v788 = vadd.f32 %v579, %v787
        %789 = vmatmul.f32.gmra.mxu0 %v678
        %v790 = vpop.f32.mrf.mxu0
        %v791 = vadd.f32 %v582, %v790
        %792 = vmatmul.f32.gmra.mxu0 %v681
        %v793 = vpop.f32.mrf.mxu0
        %v794 = vadd.f32 %v585, %v793
        %795 = vmatmul.f32.gmra.mxu0 %v684
        %v796 = vpop.f32.mrf.mxu0
        %v797 = vadd.f32 %v588, %v796
        %798 = vmatmul.f32.gmra.mxu0 %v687
        %v799 = vpop.f32.mrf.mxu0
        %v800 = vadd.f32 %v591, %v799
        %801 = vmatmul.f32.gmra.mxu0 %v690
        %v802 = vpop.f32.mrf.mxu0
        %v803 = vadd.f32 %v594, %v802
        %804 = vmatmul.f32.gmra.mxu0 %v693
        %v805 = vpop.f32.mrf.mxu0
        %v806 = vadd.f32 %v597, %v805
        %807 = vmatmul.f32.gmra.mxu0 %v696
        %v808 = vpop.f32.mrf.mxu0
        %v809 = vadd.f32 %v600, %v808
        %810 = vmatmul.f32.gmra.mxu0 %v699
        %v811 = vpop.f32.mrf.mxu0
        %v812 = vadd.f32 %v603, %v811
        %813 = vdwg.mxu0
        %v814 = vld [vmem:[#allocation2 + $0x2] sm:$0xff]
        %v815 = vld [vmem:[#allocation2 + $0xa] sm:$0xff]
        %v816 = vld [vmem:[#allocation2 + $0x1a] sm:$0xff]
        %v817 = vld [vmem:[#allocation2 + $0x22] sm:$0xff]
        %v818 = vld [vmem:[#allocation2 + $0x32] sm:$0xff]
        %v819 = vld [vmem:[#allocation2 + $0x3a] sm:$0xff]
        %v820 = vld [vmem:[#allocation2 + $0x4a] sm:$0xff]
        %v821 = vld [vmem:[#allocation2 + $0x52] sm:$0xff]
        %v822 = vld [vmem:[#allocation2 + $0x62] sm:$0xff]
        %v823 = vld [vmem:[#allocation2 + $0x6a] sm:$0xff]
        %v824 = vld [vmem:[#allocation2 + $0x7a] sm:$0xff]
        %v825 = vld [vmem:[#allocation2 + $0x82] sm:$0xff]
        %v826 = vld [vmem:[#allocation2 + $0x92] sm:$0xff]
        %v827 = vld [vmem:[#allocation2 + $0x9a] sm:$0xff]
        %v828 = vld [vmem:[#allocation2 + $0xaa] sm:$0xff]
        %v829 = vld [vmem:[#allocation2 + $0xb2] sm:$0xff]
        %v830 = vld [vmem:[#allocation2 + $0xc2] sm:$0xff]
        %v831 = vld [vmem:[#allocation2 + $0xca] sm:$0xff]
        %v832 = vld [vmem:[#allocation2 + $0xda] sm:$0xff]
        %v833 = vld [vmem:[#allocation2 + $0xe2] sm:$0xff]
        %v834 = vld [vmem:[#allocation2 + $0xf2] sm:$0xff]
        %v835 = vld [vmem:[#allocation2 + $0xfa] sm:$0xff]
        %v836 = vld [vmem:[#allocation2 + $0x10a] sm:$0xff]
        %v837 = vld [vmem:[#allocation2 + $0x112] sm:$0xff]
        %v838 = vld [vmem:[#allocation2 + $0x122] sm:$0xff]
        %v839 = vld [vmem:[#allocation2 + $0x12a] sm:$0xff]
        %v840 = vld [vmem:[#allocation2 + $0x13a] sm:$0xff]
        %v841 = vld [vmem:[#allocation2 + $0x142] sm:$0xff]
        %v842 = vld [vmem:[#allocation2 + $0x152] sm:$0xff]
        %v843 = vld [vmem:[#allocation2 + $0x15a] sm:$0xff]
        %v844 = vld [vmem:[#allocation2 + $0x16a] sm:$0xff]
        %v845 = vld [vmem:[#allocation2 + $0x172] sm:$0xff]
        %s846 = scalar_lea.vmem [#allocation6], 128
        %v847 = vld [vmem:[%s846] sm:$0xff]
        %v848 = vld [vmem:[%s846 + $0x8] sm:$0xff]
        %v849 = vld [vmem:[%s846 + $0x10] sm:$0xff]
        %v850 = vld [vmem:[%s846 + $0x18] sm:$0xff]
        %v851 = vld [vmem:[%s846 + $0x20] sm:$0xff]
        %v852 = vld [vmem:[%s846 + $0x28] sm:$0xff]
        %v853 = vld [vmem:[%s846 + $0x30] sm:$0xff]
        %v854 = vld [vmem:[%s846 + $0x38] sm:$0xff]
        %v856 = vsel %vm208, %v814, 0
        %v859 = vsel %vm208, %v815, 0
        %v862 = vsel %vm208, %v816, 0
        %v865 = vsel %vm208, %v817, 0
        %v868 = vsel %vm208, %v818, 0
        %v871 = vsel %vm208, %v819, 0
        %v874 = vsel %vm208, %v820, 0
        %v877 = vsel %vm208, %v821, 0
        %v880 = vsel %vm208, %v822, 0
        %v883 = vsel %vm208, %v823, 0
        %v886 = vsel %vm208, %v824, 0
        %v889 = vsel %vm208, %v825, 0
        %v892 = vsel %vm208, %v826, 0
        %v895 = vsel %vm208, %v827, 0
        %v898 = vsel %vm208, %v828, 0
        %v901 = vsel %vm208, %v829, 0
        %v904 = vsel %vm208, %v830, 0
        %v907 = vsel %vm208, %v831, 0
        %v910 = vsel %vm208, %v832, 0
        %v913 = vsel %vm208, %v833, 0
        %v916 = vsel %vm208, %v834, 0
        %v919 = vsel %vm208, %v835, 0
        %v922 = vsel %vm208, %v836, 0
        %v925 = vsel %vm208, %v837, 0
        %v928 = vsel %vm208, %v838, 0
        %v931 = vsel %vm208, %v839, 0
        %v934 = vsel %vm208, %v840, 0
        %v937 = vsel %vm208, %v841, 0
        %v940 = vsel %vm208, %v842, 0
        %v943 = vsel %vm208, %v843, 0
        %v946 = vsel %vm208, %v844, 0
        %v949 = vsel %vm208, %v845, 0
        %951 = vmatpush.msra.mxu0 0.0
        %952 = vmatpush.msra.mxu0 0.0
        %953 = vmatpush.msra.mxu0 0.0
        %954 = vmatpush.msra.mxu0 0.0
        %955 = vmatpush.msra.mxu0 0.0
        %956 = vmatpush.msra.mxu0 0.0
        %957 = vmatpush.msra.mxu0 0.0
        %958 = vmatpush.msra.mxu0 0.0
        %959 = vmatpush.msra.mxu0 %v854
        %960 = vmatpush.msra.mxu0 %v853
        %961 = vmatpush.msra.mxu0 %v852
        %962 = vmatpush.msra.mxu0 %v851
        %963 = vmatpush.msra.mxu0 %v850
        %964 = vmatpush.msra.mxu0 %v849
        %965 = vmatpush.msra.mxu0 %v848
        %966 = vmatpush.msra.mxu0 %v847
        %967 = vmatmul.f32.gmra.mxu0 %v856
        %v968 = vpop.f32.mrf.mxu0
        %v969 = vadd.f32 0.0, %v968
        %970 = vmatmul.f32.gmra.mxu0 %v859
        %v971 = vpop.f32.mrf.mxu0
        %v972 = vadd.f32 0.0, %v971
        %973 = vmatmul.f32.gmra.mxu0 %v862
        %v974 = vpop.f32.mrf.mxu0
        %v975 = vadd.f32 0.0, %v974
        %976 = vmatmul.f32.gmra.mxu0 %v865
        %v977 = vpop.f32.mrf.mxu0
        %v978 = vadd.f32 0.0, %v977
        %979 = vmatmul.f32.gmra.mxu0 %v868
        %v980 = vpop.f32.mrf.mxu0
        %v981 = vadd.f32 0.0, %v980
        %982 = vmatmul.f32.gmra.mxu0 %v871
        %v983 = vpop.f32.mrf.mxu0
        %v984 = vadd.f32 0.0, %v983
        %985 = vmatmul.f32.gmra.mxu0 %v874
        %v986 = vpop.f32.mrf.mxu0
        %v987 = vadd.f32 0.0, %v986
        %988 = vmatmul.f32.gmra.mxu0 %v877
        %v989 = vpop.f32.mrf.mxu0
        %v990 = vadd.f32 0.0, %v989
        %991 = vmatmul.f32.gmra.mxu0 %v880
        %v992 = vpop.f32.mrf.mxu0
        %v993 = vadd.f32 0.0, %v992
        %994 = vmatmul.f32.gmra.mxu0 %v883
        %v995 = vpop.f32.mrf.mxu0
        %v996 = vadd.f32 0.0, %v995
        %997 = vmatmul.f32.gmra.mxu0 %v886
        %v998 = vpop.f32.mrf.mxu0
        %v999 = vadd.f32 0.0, %v998
        %1000 = vmatmul.f32.gmra.mxu0 %v889
        %v1001 = vpop.f32.mrf.mxu0
        %v1002 = vadd.f32 0.0, %v1001
        %1003 = vmatmul.f32.gmra.mxu0 %v892
        %v1004 = vpop.f32.mrf.mxu0
        %v1005 = vadd.f32 0.0, %v1004
        %1006 = vmatmul.f32.gmra.mxu0 %v895
        %v1007 = vpop.f32.mrf.mxu0
        %v1008 = vadd.f32 0.0, %v1007
        %1009 = vmatmul.f32.gmra.mxu0 %v898
        %v1010 = vpop.f32.mrf.mxu0
        %v1011 = vadd.f32 0.0, %v1010
        %1012 = vmatmul.f32.gmra.mxu0 %v901
        %v1013 = vpop.f32.mrf.mxu0
        %v1014 = vadd.f32 0.0, %v1013
        %1015 = vmatmul.f32.gmra.mxu0 %v904
        %v1016 = vpop.f32.mrf.mxu0
        %v1017 = vadd.f32 0.0, %v1016
        %1018 = vmatmul.f32.gmra.mxu0 %v907
        %v1019 = vpop.f32.mrf.mxu0
        %v1020 = vadd.f32 0.0, %v1019
        %1021 = vmatmul.f32.gmra.mxu0 %v910
        %v1022 = vpop.f32.mrf.mxu0
        %v1023 = vadd.f32 0.0, %v1022
        %1024 = vmatmul.f32.gmra.mxu0 %v913
        %v1025 = vpop.f32.mrf.mxu0
        %v1026 = vadd.f32 0.0, %v1025
        %1027 = vmatmul.f32.gmra.mxu0 %v916
        %v1028 = vpop.f32.mrf.mxu0
        %v1029 = vadd.f32 0.0, %v1028
        %1030 = vmatmul.f32.gmra.mxu0 %v919
        %v1031 = vpop.f32.mrf.mxu0
        %v1032 = vadd.f32 0.0, %v1031
        %1033 = vmatmul.f32.gmra.mxu0 %v922
        %v1034 = vpop.f32.mrf.mxu0
        %v1035 = vadd.f32 0.0, %v1034
        %1036 = vmatmul.f32.gmra.mxu0 %v925
        %v1037 = vpop.f32.mrf.mxu0
        %v1038 = vadd.f32 0.0, %v1037
        %1039 = vmatmul.f32.gmra.mxu0 %v928
        %v1040 = vpop.f32.mrf.mxu0
        %v1041 = vadd.f32 0.0, %v1040
        %1042 = vmatmul.f32.gmra.mxu0 %v931
        %v1043 = vpop.f32.mrf.mxu0
        %v1044 = vadd.f32 0.0, %v1043
        %1045 = vmatmul.f32.gmra.mxu0 %v934
        %v1046 = vpop.f32.mrf.mxu0
        %v1047 = vadd.f32 0.0, %v1046
        %1048 = vmatmul.f32.gmra.mxu0 %v937
        %v1049 = vpop.f32.mrf.mxu0
        %v1050 = vadd.f32 0.0, %v1049
        %1051 = vmatmul.f32.gmra.mxu0 %v940
        %v1052 = vpop.f32.mrf.mxu0
        %v1053 = vadd.f32 0.0, %v1052
        %1054 = vmatmul.f32.gmra.mxu0 %v943
        %v1055 = vpop.f32.mrf.mxu0
        %v1056 = vadd.f32 0.0, %v1055
        %1057 = vmatmul.f32.gmra.mxu0 %v946
        %v1058 = vpop.f32.mrf.mxu0
        %v1059 = vadd.f32 0.0, %v1058
        %1060 = vmatmul.f32.gmra.mxu0 %v949
        %v1061 = vpop.f32.mrf.mxu0
        %v1062 = vadd.f32 0.0, %v1061
        %1063 = vdwg.mxu0
        %v1064 = vadd.f32 %v719, %v969
        %v1065 = vadd.f32 %v722, %v972
        %v1066 = vadd.f32 %v725, %v975
        %v1067 = vadd.f32 %v728, %v978
        %v1068 = vadd.f32 %v731, %v981
        %v1069 = vadd.f32 %v734, %v984
        %v1070 = vadd.f32 %v737, %v987
        %v1071 = vadd.f32 %v740, %v990
        %v1072 = vadd.f32 %v743, %v993
        %v1073 = vadd.f32 %v746, %v996
        %v1074 = vadd.f32 %v749, %v999
        %v1075 = vadd.f32 %v752, %v1002
        %v1076 = vadd.f32 %v755, %v1005
        %v1077 = vadd.f32 %v758, %v1008
        %v1078 = vadd.f32 %v761, %v1011
        %v1079 = vadd.f32 %v764, %v1014
        %v1080 = vadd.f32 %v767, %v1017
        %v1081 = vadd.f32 %v770, %v1020
        %v1082 = vadd.f32 %v773, %v1023
        %v1083 = vadd.f32 %v776, %v1026
        %v1084 = vadd.f32 %v779, %v1029
        %v1085 = vadd.f32 %v782, %v1032
        %v1086 = vadd.f32 %v785, %v1035
        %v1087 = vadd.f32 %v788, %v1038
        %v1088 = vadd.f32 %v791, %v1041
        %v1089 = vadd.f32 %v794, %v1044
        %v1090 = vadd.f32 %v797, %v1047
        %v1091 = vadd.f32 %v800, %v1050
        %v1092 = vadd.f32 %v803, %v1053
        %v1093 = vadd.f32 %v806, %v1056
        %v1094 = vadd.f32 %v809, %v1059
        %v1095 = vadd.f32 %v812, %v1062
        %v1096 = vld [vmem:[%s217] sm:$0xff]
        %v1097 = vld [vmem:[%s217 + $0x8] sm:$0xff]
        %v1098 = vld [vmem:[%s217 + $0x18] sm:$0xff]
        %v1099 = vld [vmem:[%s217 + $0x20] sm:$0xff]
        %v1100 = vld [vmem:[%s217 + $0x30] sm:$0xff]
        %v1101 = vld [vmem:[%s217 + $0x38] sm:$0xff]
        %v1102 = vld [vmem:[%s217 + $0x48] sm:$0xff]
        %v1103 = vld [vmem:[%s217 + $0x50] sm:$0xff]
        %v1104 = vld [vmem:[%s217 + $0x60] sm:$0xff]
        %v1105 = vld [vmem:[%s217 + $0x68] sm:$0xff]
        %v1106 = vld [vmem:[%s217 + $0x78] sm:$0xff]
        %v1107 = vld [vmem:[%s217 + $0x80] sm:$0xff]
        %v1108 = vld [vmem:[%s217 + $0x90] sm:$0xff]
        %v1109 = vld [vmem:[%s217 + $0x98] sm:$0xff]
        %v1110 = vld [vmem:[%s217 + $0xa8] sm:$0xff]
        %v1111 = vld [vmem:[%s217 + $0xb0] sm:$0xff]
        %v1112 = vld [vmem:[%s217 + $0xc0] sm:$0xff]
        %v1113 = vld [vmem:[%s217 + $0xc8] sm:$0xff]
        %v1114 = vld [vmem:[%s217 + $0xd8] sm:$0xff]
        %v1115 = vld [vmem:[%s217 + $0xe0] sm:$0xff]
        %v1116 = vld [vmem:[%s217 + $0xf0] sm:$0xff]
        %v1117 = vld [vmem:[%s217 + $0xf8] sm:$0xff]
        %v1118 = vld [vmem:[%s217 + $0x108] sm:$0xff]
        %v1119 = vld [vmem:[%s217 + $0x110] sm:$0xff]
        %v1120 = vld [vmem:[%s217 + $0x120] sm:$0xff]
        %v1121 = vld [vmem:[%s217 + $0x128] sm:$0xff]
        %v1122 = vld [vmem:[%s217 + $0x138] sm:$0xff]
        %v1123 = vld [vmem:[%s217 + $0x140] sm:$0xff]
        %v1124 = vld [vmem:[%s217 + $0x150] sm:$0xff]
        %v1125 = vld [vmem:[%s217 + $0x158] sm:$0xff]
        %v1126 = vld [vmem:[%s217 + $0x168] sm:$0xff]
        %v1127 = vld [vmem:[%s217 + $0x170] sm:$0xff]
        %s1128 = scalar_lea.vmem [#allocation6], 192
        %v1129 = vld [vmem:[%s1128] sm:$0xff]
        %v1130 = vld [vmem:[%s1128 + $0x8] sm:$0xff]
        %v1131 = vld [vmem:[%s1128 + $0x10] sm:$0xff]
        %v1132 = vld [vmem:[%s1128 + $0x18] sm:$0xff]
        %v1133 = vld [vmem:[%s1128 + $0x20] sm:$0xff]
        %v1134 = vld [vmem:[%s1128 + $0x28] sm:$0xff]
        %v1135 = vld [vmem:[%s1128 + $0x30] sm:$0xff]
        %v1136 = vld [vmem:[%s1128 + $0x38] sm:$0xff]
        %v1138 = vsel %vm208, %v1096, 0
        %v1141 = vsel %vm208, %v1097, 0
        %v1144 = vsel %vm208, %v1098, 0
        %v1147 = vsel %vm208, %v1099, 0
        %v1150 = vsel %vm208, %v1100, 0
        %v1153 = vsel %vm208, %v1101, 0
        %v1156 = vsel %vm208, %v1102, 0
        %v1159 = vsel %vm208, %v1103, 0
        %v1162 = vsel %vm208, %v1104, 0
        %v1165 = vsel %vm208, %v1105, 0
        %v1168 = vsel %vm208, %v1106, 0
        %v1171 = vsel %vm208, %v1107, 0
        %v1174 = vsel %vm208, %v1108, 0
        %v1177 = vsel %vm208, %v1109, 0
        %v1180 = vsel %vm208, %v1110, 0
        %v1183 = vsel %vm208, %v1111, 0
        %v1186 = vsel %vm208, %v1112, 0
        %v1189 = vsel %vm208, %v1113, 0
        %v1192 = vsel %vm208, %v1114, 0
        %v1195 = vsel %vm208, %v1115, 0
        %v1198 = vsel %vm208, %v1116, 0
        %v1201 = vsel %vm208, %v1117, 0
        %v1204 = vsel %vm208, %v1118, 0
        %v1207 = vsel %vm208, %v1119, 0
        %v1210 = vsel %vm208, %v1120, 0
        %v1213 = vsel %vm208, %v1121, 0
        %v1216 = vsel %vm208, %v1122, 0
        %v1219 = vsel %vm208, %v1123, 0
        %v1222 = vsel %vm208, %v1124, 0
        %v1225 = vsel %vm208, %v1125, 0
        %v1228 = vsel %vm208, %v1126, 0
        %v1231 = vsel %vm208, %v1127, 0
        %1233 = vmatpush.msra.mxu0 0.0
        %1234 = vmatpush.msra.mxu0 0.0
        %1235 = vmatpush.msra.mxu0 0.0
        %1236 = vmatpush.msra.mxu0 0.0
        %1237 = vmatpush.msra.mxu0 0.0
        %1238 = vmatpush.msra.mxu0 0.0
        %1239 = vmatpush.msra.mxu0 0.0
        %1240 = vmatpush.msra.mxu0 0.0
        %1241 = vmatpush.msra.mxu0 %v1136
        %1242 = vmatpush.msra.mxu0 %v1135
        %1243 = vmatpush.msra.mxu0 %v1134
        %1244 = vmatpush.msra.mxu0 %v1133
        %1245 = vmatpush.msra.mxu0 %v1132
        %1246 = vmatpush.msra.mxu0 %v1131
        %1247 = vmatpush.msra.mxu0 %v1130
        %1248 = vmatpush.msra.mxu0 %v1129
        %1249 = vmatmul.f32.gmra.mxu0 %v1138
        %v1250 = vpop.f32.mrf.mxu0
        %v1251 = vadd.f32 0.0, %v1250
        %1252 = vmatmul.f32.gmra.mxu0 %v1141
        %v1253 = vpop.f32.mrf.mxu0
        %v1254 = vadd.f32 0.0, %v1253
        %1255 = vmatmul.f32.gmra.mxu0 %v1144
        %v1256 = vpop.f32.mrf.mxu0
        %v1257 = vadd.f32 0.0, %v1256
        %1258 = vmatmul.f32.gmra.mxu0 %v1147
        %v1259 = vpop.f32.mrf.mxu0
        %v1260 = vadd.f32 0.0, %v1259
        %1261 = vmatmul.f32.gmra.mxu0 %v1150
        %v1262 = vpop.f32.mrf.mxu0
        %v1263 = vadd.f32 0.0, %v1262
        %1264 = vmatmul.f32.gmra.mxu0 %v1153
        %v1265 = vpop.f32.mrf.mxu0
        %v1266 = vadd.f32 0.0, %v1265
        %1267 = vmatmul.f32.gmra.mxu0 %v1156
        %v1268 = vpop.f32.mrf.mxu0
        %v1269 = vadd.f32 0.0, %v1268
        %1270 = vmatmul.f32.gmra.mxu0 %v1159
        %v1271 = vpop.f32.mrf.mxu0
        %v1272 = vadd.f32 0.0, %v1271
        %1273 = vmatmul.f32.gmra.mxu0 %v1162
        %v1274 = vpop.f32.mrf.mxu0
        %v1275 = vadd.f32 0.0, %v1274
        %1276 = vmatmul.f32.gmra.mxu0 %v1165
        %v1277 = vpop.f32.mrf.mxu0
        %v1278 = vadd.f32 0.0, %v1277
        %1279 = vmatmul.f32.gmra.mxu0 %v1168
        %v1280 = vpop.f32.mrf.mxu0
        %v1281 = vadd.f32 0.0, %v1280
        %1282 = vmatmul.f32.gmra.mxu0 %v1171
        %v1283 = vpop.f32.mrf.mxu0
        %v1284 = vadd.f32 0.0, %v1283
        %1285 = vmatmul.f32.gmra.mxu0 %v1174
        %v1286 = vpop.f32.mrf.mxu0
        %v1287 = vadd.f32 0.0, %v1286
        %1288 = vmatmul.f32.gmra.mxu0 %v1177
        %v1289 = vpop.f32.mrf.mxu0
        %v1290 = vadd.f32 0.0, %v1289
        %1291 = vmatmul.f32.gmra.mxu0 %v1180
        %v1292 = vpop.f32.mrf.mxu0
        %v1293 = vadd.f32 0.0, %v1292
        %1294 = vmatmul.f32.gmra.mxu0 %v1183
        %v1295 = vpop.f32.mrf.mxu0
        %v1296 = vadd.f32 0.0, %v1295
        %1297 = vmatmul.f32.gmra.mxu0 %v1186
        %v1298 = vpop.f32.mrf.mxu0
        %v1299 = vadd.f32 0.0, %v1298
        %1300 = vmatmul.f32.gmra.mxu0 %v1189
        %v1301 = vpop.f32.mrf.mxu0
        %v1302 = vadd.f32 0.0, %v1301
        %1303 = vmatmul.f32.gmra.mxu0 %v1192
        %v1304 = vpop.f32.mrf.mxu0
        %v1305 = vadd.f32 0.0, %v1304
        %1306 = vmatmul.f32.gmra.mxu0 %v1195
        %v1307 = vpop.f32.mrf.mxu0
        %v1308 = vadd.f32 0.0, %v1307
        %1309 = vmatmul.f32.gmra.mxu0 %v1198
        %v1310 = vpop.f32.mrf.mxu0
        %v1311 = vadd.f32 0.0, %v1310
        %1312 = vmatmul.f32.gmra.mxu0 %v1201
        %v1313 = vpop.f32.mrf.mxu0
        %v1314 = vadd.f32 0.0, %v1313
        %1315 = vmatmul.f32.gmra.mxu0 %v1204
        %v1316 = vpop.f32.mrf.mxu0
        %v1317 = vadd.f32 0.0, %v1316
        %1318 = vmatmul.f32.gmra.mxu0 %v1207
        %v1319 = vpop.f32.mrf.mxu0
        %v1320 = vadd.f32 0.0, %v1319
        %1321 = vmatmul.f32.gmra.mxu0 %v1210
        %v1322 = vpop.f32.mrf.mxu0
        %v1323 = vadd.f32 0.0, %v1322
        %1324 = vmatmul.f32.gmra.mxu0 %v1213
        %v1325 = vpop.f32.mrf.mxu0
        %v1326 = vadd.f32 0.0, %v1325
        %1327 = vmatmul.f32.gmra.mxu0 %v1216
        %v1328 = vpop.f32.mrf.mxu0
        %v1329 = vadd.f32 0.0, %v1328
        %1330 = vmatmul.f32.gmra.mxu0 %v1219
        %v1331 = vpop.f32.mrf.mxu0
        %v1332 = vadd.f32 0.0, %v1331
        %1333 = vmatmul.f32.gmra.mxu0 %v1222
        %v1334 = vpop.f32.mrf.mxu0
        %v1335 = vadd.f32 0.0, %v1334
        %1336 = vmatmul.f32.gmra.mxu0 %v1225
        %v1337 = vpop.f32.mrf.mxu0
        %v1338 = vadd.f32 0.0, %v1337
        %1339 = vmatmul.f32.gmra.mxu0 %v1228
        %v1340 = vpop.f32.mrf.mxu0
        %v1341 = vadd.f32 0.0, %v1340
        %1342 = vmatmul.f32.gmra.mxu0 %v1231
        %v1343 = vpop.f32.mrf.mxu0
        %v1344 = vadd.f32 0.0, %v1343
        %1345 = vdwg.mxu0
        %v1346 = vadd.f32 %v1064, %v1251
        %v1347 = vadd.f32 %v1065, %v1254
        %v1348 = vadd.f32 %v1066, %v1257
        %v1349 = vadd.f32 %v1067, %v1260
        %v1350 = vadd.f32 %v1068, %v1263
        %v1351 = vadd.f32 %v1069, %v1266
        %v1352 = vadd.f32 %v1070, %v1269
        %v1353 = vadd.f32 %v1071, %v1272
        %v1354 = vadd.f32 %v1072, %v1275
        %v1355 = vadd.f32 %v1073, %v1278
        %v1356 = vadd.f32 %v1074, %v1281
        %v1357 = vadd.f32 %v1075, %v1284
        %v1358 = vadd.f32 %v1076, %v1287
        %v1359 = vadd.f32 %v1077, %v1290
        %v1360 = vadd.f32 %v1078, %v1293
        %v1361 = vadd.f32 %v1079, %v1296
        %v1362 = vadd.f32 %v1080, %v1299
        %v1363 = vadd.f32 %v1081, %v1302
        %v1364 = vadd.f32 %v1082, %v1305
        %v1365 = vadd.f32 %v1083, %v1308
        %v1366 = vadd.f32 %v1084, %v1311
        %v1367 = vadd.f32 %v1085, %v1314
        %v1368 = vadd.f32 %v1086, %v1317
        %v1369 = vadd.f32 %v1087, %v1320
        %v1370 = vadd.f32 %v1088, %v1323
        %v1371 = vadd.f32 %v1089, %v1326
        %v1372 = vadd.f32 %v1090, %v1329
        %v1373 = vadd.f32 %v1091, %v1332
        %v1374 = vadd.f32 %v1092, %v1335
        %v1375 = vadd.f32 %v1093, %v1338
        %v1376 = vadd.f32 %v1094, %v1341
        %v1377 = vadd.f32 %v1095, %v1344
        %v1378 = vld [vmem:[%s217 + $0x1] sm:$0xff]
        %v1379 = vld [vmem:[%s217 + $0x9] sm:$0xff]
        %v1380 = vld [vmem:[%s217 + $0x19] sm:$0xff]
        %v1381 = vld [vmem:[%s217 + $0x21] sm:$0xff]
        %v1382 = vld [vmem:[%s217 + $0x31] sm:$0xff]
        %v1383 = vld [vmem:[%s217 + $0x39] sm:$0xff]
        %v1384 = vld [vmem:[%s217 + $0x49] sm:$0xff]
        %v1385 = vld [vmem:[%s217 + $0x51] sm:$0xff]
        %v1386 = vld [vmem:[%s217 + $0x61] sm:$0xff]
        %v1387 = vld [vmem:[%s217 + $0x69] sm:$0xff]
        %v1388 = vld [vmem:[%s217 + $0x79] sm:$0xff]
        %v1389 = vld [vmem:[%s217 + $0x81] sm:$0xff]
        %v1390 = vld [vmem:[%s217 + $0x91] sm:$0xff]
        %v1391 = vld [vmem:[%s217 + $0x99] sm:$0xff]
        %v1392 = vld [vmem:[%s217 + $0xa9] sm:$0xff]
        %v1393 = vld [vmem:[%s217 + $0xb1] sm:$0xff]
        %v1394 = vld [vmem:[%s217 + $0xc1] sm:$0xff]
        %v1395 = vld [vmem:[%s217 + $0xc9] sm:$0xff]
        %v1396 = vld [vmem:[%s217 + $0xd9] sm:$0xff]
        %v1397 = vld [vmem:[%s217 + $0xe1] sm:$0xff]
        %v1398 = vld [vmem:[%s217 + $0xf1] sm:$0xff]
        %v1399 = vld [vmem:[%s217 + $0xf9] sm:$0xff]
        %v1400 = vld [vmem:[%s217 + $0x109] sm:$0xff]
        %v1401 = vld [vmem:[%s217 + $0x111] sm:$0xff]
        %v1402 = vld [vmem:[%s217 + $0x121] sm:$0xff]
        %v1403 = vld [vmem:[%s217 + $0x129] sm:$0xff]
        %v1404 = vld [vmem:[%s217 + $0x139] sm:$0xff]
        %v1405 = vld [vmem:[%s217 + $0x141] sm:$0xff]
        %v1406 = vld [vmem:[%s217 + $0x151] sm:$0xff]
        %v1407 = vld [vmem:[%s217 + $0x159] sm:$0xff]
        %v1408 = vld [vmem:[%s217 + $0x169] sm:$0xff]
        %v1409 = vld [vmem:[%s217 + $0x171] sm:$0xff]
        %s1410 = scalar_lea.vmem [#allocation6], 256
        %v1411 = vld [vmem:[%s1410] sm:$0xff]
        %v1412 = vld [vmem:[%s1410 + $0x8] sm:$0xff]
        %v1413 = vld [vmem:[%s1410 + $0x10] sm:$0xff]
        %v1414 = vld [vmem:[%s1410 + $0x18] sm:$0xff]
        %v1415 = vld [vmem:[%s1410 + $0x20] sm:$0xff]
        %v1416 = vld [vmem:[%s1410 + $0x28] sm:$0xff]
        %v1417 = vld [vmem:[%s1410 + $0x30] sm:$0xff]
        %v1418 = vld [vmem:[%s1410 + $0x38] sm:$0xff]
        %v1420 = vsel %vm208, %v1378, 0
        %v1423 = vsel %vm208, %v1379, 0
        %v1426 = vsel %vm208, %v1380, 0
        %v1429 = vsel %vm208, %v1381, 0
        %v1432 = vsel %vm208, %v1382, 0
        %v1435 = vsel %vm208, %v1383, 0
        %v1438 = vsel %vm208, %v1384, 0
        %v1441 = vsel %vm208, %v1385, 0
        %v1444 = vsel %vm208, %v1386, 0
        %v1447 = vsel %vm208, %v1387, 0
        %v1450 = vsel %vm208, %v1388, 0
        %v1453 = vsel %vm208, %v1389, 0
        %v1456 = vsel %vm208, %v1390, 0
        %v1459 = vsel %vm208, %v1391, 0
        %v1462 = vsel %vm208, %v1392, 0
        %v1465 = vsel %vm208, %v1393, 0
        %v1468 = vsel %vm208, %v1394, 0
        %v1471 = vsel %vm208, %v1395, 0
        %v1474 = vsel %vm208, %v1396, 0
        %v1477 = vsel %vm208, %v1397, 0
        %v1480 = vsel %vm208, %v1398, 0
        %v1483 = vsel %vm208, %v1399, 0
        %v1486 = vsel %vm208, %v1400, 0
        %v1489 = vsel %vm208, %v1401, 0
        %v1492 = vsel %vm208, %v1402, 0
        %v1495 = vsel %vm208, %v1403, 0
        %v1498 = vsel %vm208, %v1404, 0
        %v1501 = vsel %vm208, %v1405, 0
        %v1504 = vsel %vm208, %v1406, 0
        %v1507 = vsel %vm208, %v1407, 0
        %v1510 = vsel %vm208, %v1408, 0
        %v1513 = vsel %vm208, %v1409, 0
        %1515 = vmatpush.msra.mxu0 0.0
        %1516 = vmatpush.msra.mxu0 0.0
        %1517 = vmatpush.msra.mxu0 0.0
        %1518 = vmatpush.msra.mxu0 0.0
        %1519 = vmatpush.msra.mxu0 0.0
        %1520 = vmatpush.msra.mxu0 0.0
        %1521 = vmatpush.msra.mxu0 0.0
        %1522 = vmatpush.msra.mxu0 0.0
        %1523 = vmatpush.msra.mxu0 %v1418
        %1524 = vmatpush.msra.mxu0 %v1417
        %1525 = vmatpush.msra.mxu0 %v1416
        %1526 = vmatpush.msra.mxu0 %v1415
        %1527 = vmatpush.msra.mxu0 %v1414
        %1528 = vmatpush.msra.mxu0 %v1413
        %1529 = vmatpush.msra.mxu0 %v1412
        %1530 = vmatpush.msra.mxu0 %v1411
        %1531 = vmatmul.f32.gmra.mxu0 %v1420
        %v1532 = vpop.f32.mrf.mxu0
        %v1533 = vadd.f32 0.0, %v1532
        %1534 = vmatmul.f32.gmra.mxu0 %v1423
        %v1535 = vpop.f32.mrf.mxu0
        %v1536 = vadd.f32 0.0, %v1535
        %1537 = vmatmul.f32.gmra.mxu0 %v1426
        %v1538 = vpop.f32.mrf.mxu0
        %v1539 = vadd.f32 0.0, %v1538
        %1540 = vmatmul.f32.gmra.mxu0 %v1429
        %v1541 = vpop.f32.mrf.mxu0
        %v1542 = vadd.f32 0.0, %v1541
        %1543 = vmatmul.f32.gmra.mxu0 %v1432
        %v1544 = vpop.f32.mrf.mxu0
        %v1545 = vadd.f32 0.0, %v1544
        %1546 = vmatmul.f32.gmra.mxu0 %v1435
        %v1547 = vpop.f32.mrf.mxu0
        %v1548 = vadd.f32 0.0, %v1547
        %1549 = vmatmul.f32.gmra.mxu0 %v1438
        %v1550 = vpop.f32.mrf.mxu0
        %v1551 = vadd.f32 0.0, %v1550
        %1552 = vmatmul.f32.gmra.mxu0 %v1441
        %v1553 = vpop.f32.mrf.mxu0
        %v1554 = vadd.f32 0.0, %v1553
        %1555 = vmatmul.f32.gmra.mxu0 %v1444
        %v1556 = vpop.f32.mrf.mxu0
        %v1557 = vadd.f32 0.0, %v1556
        %1558 = vmatmul.f32.gmra.mxu0 %v1447
        %v1559 = vpop.f32.mrf.mxu0
        %v1560 = vadd.f32 0.0, %v1559
        %1561 = vmatmul.f32.gmra.mxu0 %v1450
        %v1562 = vpop.f32.mrf.mxu0
        %v1563 = vadd.f32 0.0, %v1562
        %1564 = vmatmul.f32.gmra.mxu0 %v1453
        %v1565 = vpop.f32.mrf.mxu0
        %v1566 = vadd.f32 0.0, %v1565
        %1567 = vmatmul.f32.gmra.mxu0 %v1456
        %v1568 = vpop.f32.mrf.mxu0
        %v1569 = vadd.f32 0.0, %v1568
        %1570 = vmatmul.f32.gmra.mxu0 %v1459
        %v1571 = vpop.f32.mrf.mxu0
        %v1572 = vadd.f32 0.0, %v1571
        %1573 = vmatmul.f32.gmra.mxu0 %v1462
        %v1574 = vpop.f32.mrf.mxu0
        %v1575 = vadd.f32 0.0, %v1574
        %1576 = vmatmul.f32.gmra.mxu0 %v1465
        %v1577 = vpop.f32.mrf.mxu0
        %v1578 = vadd.f32 0.0, %v1577
        %1579 = vmatmul.f32.gmra.mxu0 %v1468
        %v1580 = vpop.f32.mrf.mxu0
        %v1581 = vadd.f32 0.0, %v1580
        %1582 = vmatmul.f32.gmra.mxu0 %v1471
        %v1583 = vpop.f32.mrf.mxu0
        %v1584 = vadd.f32 0.0, %v1583
        %1585 = vmatmul.f32.gmra.mxu0 %v1474
        %v1586 = vpop.f32.mrf.mxu0
        %v1587 = vadd.f32 0.0, %v1586
        %1588 = vmatmul.f32.gmra.mxu0 %v1477
        %v1589 = vpop.f32.mrf.mxu0
        %v1590 = vadd.f32 0.0, %v1589
        %1591 = vmatmul.f32.gmra.mxu0 %v1480
        %v1592 = vpop.f32.mrf.mxu0
        %v1593 = vadd.f32 0.0, %v1592
        %1594 = vmatmul.f32.gmra.mxu0 %v1483
        %v1595 = vpop.f32.mrf.mxu0
        %v1596 = vadd.f32 0.0, %v1595
        %1597 = vmatmul.f32.gmra.mxu0 %v1486
        %v1598 = vpop.f32.mrf.mxu0
        %v1599 = vadd.f32 0.0, %v1598
        %1600 = vmatmul.f32.gmra.mxu0 %v1489
        %v1601 = vpop.f32.mrf.mxu0
        %v1602 = vadd.f32 0.0, %v1601
        %1603 = vmatmul.f32.gmra.mxu0 %v1492
        %v1604 = vpop.f32.mrf.mxu0
        %v1605 = vadd.f32 0.0, %v1604
        %1606 = vmatmul.f32.gmra.mxu0 %v1495
        %v1607 = vpop.f32.mrf.mxu0
        %v1608 = vadd.f32 0.0, %v1607
        %1609 = vmatmul.f32.gmra.mxu0 %v1498
        %v1610 = vpop.f32.mrf.mxu0
        %v1611 = vadd.f32 0.0, %v1610
        %1612 = vmatmul.f32.gmra.mxu0 %v1501
        %v1613 = vpop.f32.mrf.mxu0
        %v1614 = vadd.f32 0.0, %v1613
        %1615 = vmatmul.f32.gmra.mxu0 %v1504
        %v1616 = vpop.f32.mrf.mxu0
        %v1617 = vadd.f32 0.0, %v1616
        %1618 = vmatmul.f32.gmra.mxu0 %v1507
        %v1619 = vpop.f32.mrf.mxu0
        %v1620 = vadd.f32 0.0, %v1619
        %1621 = vmatmul.f32.gmra.mxu0 %v1510
        %v1622 = vpop.f32.mrf.mxu0
        %v1623 = vadd.f32 0.0, %v1622
        %1624 = vmatmul.f32.gmra.mxu0 %v1513
        %v1625 = vpop.f32.mrf.mxu0
        %v1626 = vadd.f32 0.0, %v1625
        %1627 = vdwg.mxu0
        %v1628 = vadd.f32 %v1346, %v1533
        %v1629 = vadd.f32 %v1347, %v1536
        %v1630 = vadd.f32 %v1348, %v1539
        %v1631 = vadd.f32 %v1349, %v1542
        %v1632 = vadd.f32 %v1350, %v1545
        %v1633 = vadd.f32 %v1351, %v1548
        %v1634 = vadd.f32 %v1352, %v1551
        %v1635 = vadd.f32 %v1353, %v1554
        %v1636 = vadd.f32 %v1354, %v1557
        %v1637 = vadd.f32 %v1355, %v1560
        %v1638 = vadd.f32 %v1356, %v1563
        %v1639 = vadd.f32 %v1357, %v1566
        %v1640 = vadd.f32 %v1358, %v1569
        %v1641 = vadd.f32 %v1359, %v1572
        %v1642 = vadd.f32 %v1360, %v1575
        %v1643 = vadd.f32 %v1361, %v1578
        %v1644 = vadd.f32 %v1362, %v1581
        %v1645 = vadd.f32 %v1363, %v1584
        %v1646 = vadd.f32 %v1364, %v1587
        %v1647 = vadd.f32 %v1365, %v1590
        %v1648 = vadd.f32 %v1366, %v1593
        %v1649 = vadd.f32 %v1367, %v1596
        %v1650 = vadd.f32 %v1368, %v1599
        %v1651 = vadd.f32 %v1369, %v1602
        %v1652 = vadd.f32 %v1370, %v1605
        %v1653 = vadd.f32 %v1371, %v1608
        %v1654 = vadd.f32 %v1372, %v1611
        %v1655 = vadd.f32 %v1373, %v1614
        %v1656 = vadd.f32 %v1374, %v1617
        %v1657 = vadd.f32 %v1375, %v1620
        %v1658 = vadd.f32 %v1376, %v1623
        %v1659 = vadd.f32 %v1377, %v1626
        %v1660 = vld [vmem:[%s217 + $0x2] sm:$0xff]
        %v1661 = vld [vmem:[%s217 + $0xa] sm:$0xff]
        %v1662 = vld [vmem:[%s217 + $0x1a] sm:$0xff]
        %v1663 = vld [vmem:[%s217 + $0x22] sm:$0xff]
        %v1664 = vld [vmem:[%s217 + $0x32] sm:$0xff]
        %v1665 = vld [vmem:[%s217 + $0x3a] sm:$0xff]
        %v1666 = vld [vmem:[%s217 + $0x4a] sm:$0xff]
        %v1667 = vld [vmem:[%s217 + $0x52] sm:$0xff]
        %v1668 = vld [vmem:[%s217 + $0x62] sm:$0xff]
        %v1669 = vld [vmem:[%s217 + $0x6a] sm:$0xff]
        %v1670 = vld [vmem:[%s217 + $0x7a] sm:$0xff]
        %v1671 = vld [vmem:[%s217 + $0x82] sm:$0xff]
        %v1672 = vld [vmem:[%s217 + $0x92] sm:$0xff]
        %v1673 = vld [vmem:[%s217 + $0x9a] sm:$0xff]
        %v1674 = vld [vmem:[%s217 + $0xaa] sm:$0xff]
        %v1675 = vld [vmem:[%s217 + $0xb2] sm:$0xff]
        %v1676 = vld [vmem:[%s217 + $0xc2] sm:$0xff]
        %v1677 = vld [vmem:[%s217 + $0xca] sm:$0xff]
        %v1678 = vld [vmem:[%s217 + $0xda] sm:$0xff]
        %v1679 = vld [vmem:[%s217 + $0xe2] sm:$0xff]
        %v1680 = vld [vmem:[%s217 + $0xf2] sm:$0xff]
        %v1681 = vld [vmem:[%s217 + $0xfa] sm:$0xff]
        %v1682 = vld [vmem:[%s217 + $0x10a] sm:$0xff]
        %v1683 = vld [vmem:[%s217 + $0x112] sm:$0xff]
        %v1684 = vld [vmem:[%s217 + $0x122] sm:$0xff]
        %v1685 = vld [vmem:[%s217 + $0x12a] sm:$0xff]
        %v1686 = vld [vmem:[%s217 + $0x13a] sm:$0xff]
        %v1687 = vld [vmem:[%s217 + $0x142] sm:$0xff]
        %v1688 = vld [vmem:[%s217 + $0x152] sm:$0xff]
        %v1689 = vld [vmem:[%s217 + $0x15a] sm:$0xff]
        %v1690 = vld [vmem:[%s217 + $0x16a] sm:$0xff]
        %v1691 = vld [vmem:[%s217 + $0x172] sm:$0xff]
        %s1692 = scalar_lea.vmem [#allocation6], 320
        %v1693 = vld [vmem:[%s1692] sm:$0xff]
        %v1694 = vld [vmem:[%s1692 + $0x8] sm:$0xff]
        %v1695 = vld [vmem:[%s1692 + $0x10] sm:$0xff]
        %v1696 = vld [vmem:[%s1692 + $0x18] sm:$0xff]
        %v1697 = vld [vmem:[%s1692 + $0x20] sm:$0xff]
        %v1698 = vld [vmem:[%s1692 + $0x28] sm:$0xff]
        %v1699 = vld [vmem:[%s1692 + $0x30] sm:$0xff]
        %v1700 = vld [vmem:[%s1692 + $0x38] sm:$0xff]
        %v1702 = vsel %vm208, %v1660, 0
        %v1705 = vsel %vm208, %v1661, 0
        %v1708 = vsel %vm208, %v1662, 0
        %v1711 = vsel %vm208, %v1663, 0
        %v1714 = vsel %vm208, %v1664, 0
        %v1717 = vsel %vm208, %v1665, 0
        %v1720 = vsel %vm208, %v1666, 0
        %v1723 = vsel %vm208, %v1667, 0
        %v1726 = vsel %vm208, %v1668, 0
        %v1729 = vsel %vm208, %v1669, 0
        %v1732 = vsel %vm208, %v1670, 0
        %v1735 = vsel %vm208, %v1671, 0
        %v1738 = vsel %vm208, %v1672, 0
        %v1741 = vsel %vm208, %v1673, 0
        %v1744 = vsel %vm208, %v1674, 0
        %v1747 = vsel %vm208, %v1675, 0
        %v1750 = vsel %vm208, %v1676, 0
        %v1753 = vsel %vm208, %v1677, 0
        %v1756 = vsel %vm208, %v1678, 0
        %v1759 = vsel %vm208, %v1679, 0
        %v1762 = vsel %vm208, %v1680, 0
        %v1765 = vsel %vm208, %v1681, 0
        %v1768 = vsel %vm208, %v1682, 0
        %v1771 = vsel %vm208, %v1683, 0
        %v1774 = vsel %vm208, %v1684, 0
        %v1777 = vsel %vm208, %v1685, 0
        %v1780 = vsel %vm208, %v1686, 0
        %v1783 = vsel %vm208, %v1687, 0
        %v1786 = vsel %vm208, %v1688, 0
        %v1789 = vsel %vm208, %v1689, 0
        %v1792 = vsel %vm208, %v1690, 0
        %v1795 = vsel %vm208, %v1691, 0
        %1797 = vmatpush.msra.mxu0 0.0
        %1798 = vmatpush.msra.mxu0 0.0
        %1799 = vmatpush.msra.mxu0 0.0
        %1800 = vmatpush.msra.mxu0 0.0
        %1801 = vmatpush.msra.mxu0 0.0
        %1802 = vmatpush.msra.mxu0 0.0
        %1803 = vmatpush.msra.mxu0 0.0
        %1804 = vmatpush.msra.mxu0 0.0
        %1805 = vmatpush.msra.mxu0 %v1700
        %1806 = vmatpush.msra.mxu0 %v1699
        %1807 = vmatpush.msra.mxu0 %v1698
        %1808 = vmatpush.msra.mxu0 %v1697
        %1809 = vmatpush.msra.mxu0 %v1696
        %1810 = vmatpush.msra.mxu0 %v1695
        %1811 = vmatpush.msra.mxu0 %v1694
        %1812 = vmatpush.msra.mxu0 %v1693
        %1813 = vmatmul.f32.gmra.mxu0 %v1702
        %v1814 = vpop.f32.mrf.mxu0
        %v1815 = vadd.f32 0.0, %v1814
        %1816 = vmatmul.f32.gmra.mxu0 %v1705
        %v1817 = vpop.f32.mrf.mxu0
        %v1818 = vadd.f32 0.0, %v1817
        %1819 = vmatmul.f32.gmra.mxu0 %v1708
        %v1820 = vpop.f32.mrf.mxu0
        %v1821 = vadd.f32 0.0, %v1820
        %1822 = vmatmul.f32.gmra.mxu0 %v1711
        %v1823 = vpop.f32.mrf.mxu0
        %v1824 = vadd.f32 0.0, %v1823
        %1825 = vmatmul.f32.gmra.mxu0 %v1714
        %v1826 = vpop.f32.mrf.mxu0
        %v1827 = vadd.f32 0.0, %v1826
        %1828 = vmatmul.f32.gmra.mxu0 %v1717
        %v1829 = vpop.f32.mrf.mxu0
        %v1830 = vadd.f32 0.0, %v1829
        %1831 = vmatmul.f32.gmra.mxu0 %v1720
        %v1832 = vpop.f32.mrf.mxu0
        %v1833 = vadd.f32 0.0, %v1832
        %1834 = vmatmul.f32.gmra.mxu0 %v1723
        %v1835 = vpop.f32.mrf.mxu0
        %v1836 = vadd.f32 0.0, %v1835
        %1837 = vmatmul.f32.gmra.mxu0 %v1726
        %v1838 = vpop.f32.mrf.mxu0
        %v1839 = vadd.f32 0.0, %v1838
        %1840 = vmatmul.f32.gmra.mxu0 %v1729
        %v1841 = vpop.f32.mrf.mxu0
        %v1842 = vadd.f32 0.0, %v1841
        %1843 = vmatmul.f32.gmra.mxu0 %v1732
        %v1844 = vpop.f32.mrf.mxu0
        %v1845 = vadd.f32 0.0, %v1844
        %1846 = vmatmul.f32.gmra.mxu0 %v1735
        %v1847 = vpop.f32.mrf.mxu0
        %v1848 = vadd.f32 0.0, %v1847
        %1849 = vmatmul.f32.gmra.mxu0 %v1738
        %v1850 = vpop.f32.mrf.mxu0
        %v1851 = vadd.f32 0.0, %v1850
        %1852 = vmatmul.f32.gmra.mxu0 %v1741
        %v1853 = vpop.f32.mrf.mxu0
        %v1854 = vadd.f32 0.0, %v1853
        %1855 = vmatmul.f32.gmra.mxu0 %v1744
        %v1856 = vpop.f32.mrf.mxu0
        %v1857 = vadd.f32 0.0, %v1856
        %1858 = vmatmul.f32.gmra.mxu0 %v1747
        %v1859 = vpop.f32.mrf.mxu0
        %v1860 = vadd.f32 0.0, %v1859
        %1861 = vmatmul.f32.gmra.mxu0 %v1750
        %v1862 = vpop.f32.mrf.mxu0
        %v1863 = vadd.f32 0.0, %v1862
        %1864 = vmatmul.f32.gmra.mxu0 %v1753
        %v1865 = vpop.f32.mrf.mxu0
        %v1866 = vadd.f32 0.0, %v1865
        %1867 = vmatmul.f32.gmra.mxu0 %v1756
        %v1868 = vpop.f32.mrf.mxu0
        %v1869 = vadd.f32 0.0, %v1868
        %1870 = vmatmul.f32.gmra.mxu0 %v1759
        %v1871 = vpop.f32.mrf.mxu0
        %v1872 = vadd.f32 0.0, %v1871
        %1873 = vmatmul.f32.gmra.mxu0 %v1762
        %v1874 = vpop.f32.mrf.mxu0
        %v1875 = vadd.f32 0.0, %v1874
        %1876 = vmatmul.f32.gmra.mxu0 %v1765
        %v1877 = vpop.f32.mrf.mxu0
        %v1878 = vadd.f32 0.0, %v1877
        %1879 = vmatmul.f32.gmra.mxu0 %v1768
        %v1880 = vpop.f32.mrf.mxu0
        %v1881 = vadd.f32 0.0, %v1880
        %1882 = vmatmul.f32.gmra.mxu0 %v1771
        %v1883 = vpop.f32.mrf.mxu0
        %v1884 = vadd.f32 0.0, %v1883
        %1885 = vmatmul.f32.gmra.mxu0 %v1774
        %v1886 = vpop.f32.mrf.mxu0
        %v1887 = vadd.f32 0.0, %v1886
        %1888 = vmatmul.f32.gmra.mxu0 %v1777
        %v1889 = vpop.f32.mrf.mxu0
        %v1890 = vadd.f32 0.0, %v1889
        %1891 = vmatmul.f32.gmra.mxu0 %v1780
        %v1892 = vpop.f32.mrf.mxu0
        %v1893 = vadd.f32 0.0, %v1892
        %1894 = vmatmul.f32.gmra.mxu0 %v1783
        %v1895 = vpop.f32.mrf.mxu0
        %v1896 = vadd.f32 0.0, %v1895
        %1897 = vmatmul.f32.gmra.mxu0 %v1786
        %v1898 = vpop.f32.mrf.mxu0
        %v1899 = vadd.f32 0.0, %v1898
        %1900 = vmatmul.f32.gmra.mxu0 %v1789
        %v1901 = vpop.f32.mrf.mxu0
        %v1902 = vadd.f32 0.0, %v1901
        %1903 = vmatmul.f32.gmra.mxu0 %v1792
        %v1904 = vpop.f32.mrf.mxu0
        %v1905 = vadd.f32 0.0, %v1904
        %1906 = vmatmul.f32.gmra.mxu0 %v1795
        %v1907 = vpop.f32.mrf.mxu0
        %v1908 = vadd.f32 0.0, %v1907
        %1909 = vdwg.mxu0
        %v1910 = vadd.f32 %v1628, %v1815
        %v1911 = vadd.f32 %v1629, %v1818
        %v1912 = vadd.f32 %v1630, %v1821
        %v1913 = vadd.f32 %v1631, %v1824
        %v1914 = vadd.f32 %v1632, %v1827
        %v1915 = vadd.f32 %v1633, %v1830
        %v1916 = vadd.f32 %v1634, %v1833
        %v1917 = vadd.f32 %v1635, %v1836
        %v1918 = vadd.f32 %v1636, %v1839
        %v1919 = vadd.f32 %v1637, %v1842
        %v1920 = vadd.f32 %v1638, %v1845
        %v1921 = vadd.f32 %v1639, %v1848
        %v1922 = vadd.f32 %v1640, %v1851
        %v1923 = vadd.f32 %v1641, %v1854
        %v1924 = vadd.f32 %v1642, %v1857
        %v1925 = vadd.f32 %v1643, %v1860
        %v1926 = vadd.f32 %v1644, %v1863
        %v1927 = vadd.f32 %v1645, %v1866
        %v1928 = vadd.f32 %v1646, %v1869
        %v1929 = vadd.f32 %v1647, %v1872
        %v1930 = vadd.f32 %v1648, %v1875
        %v1931 = vadd.f32 %v1649, %v1878
        %v1932 = vadd.f32 %v1650, %v1881
        %v1933 = vadd.f32 %v1651, %v1884
        %v1934 = vadd.f32 %v1652, %v1887
        %v1935 = vadd.f32 %v1653, %v1890
        %v1936 = vadd.f32 %v1654, %v1893
        %v1937 = vadd.f32 %v1655, %v1896
        %v1938 = vadd.f32 %v1656, %v1899
        %v1939 = vadd.f32 %v1657, %v1902
        %v1940 = vadd.f32 %v1658, %v1905
        %v1941 = vadd.f32 %v1659, %v1908
        %s1942 = scalar_lea.vmem [#allocation2], 48
        %v1943 = vld [vmem:[%s1942] sm:$0xff]
        %v1944 = vld [vmem:[%s1942 + $0x8] sm:$0xff]
        %v1945 = vld [vmem:[%s1942 + $0x18] sm:$0xff]
        %v1946 = vld [vmem:[%s1942 + $0x20] sm:$0xff]
        %v1947 = vld [vmem:[%s1942 + $0x30] sm:$0xff]
        %v1948 = vld [vmem:[%s1942 + $0x38] sm:$0xff]
        %v1949 = vld [vmem:[%s1942 + $0x48] sm:$0xff]
        %v1950 = vld [vmem:[%s1942 + $0x50] sm:$0xff]
        %v1951 = vld [vmem:[%s1942 + $0x60] sm:$0xff]
        %v1952 = vld [vmem:[%s1942 + $0x68] sm:$0xff]
        %v1953 = vld [vmem:[%s1942 + $0x78] sm:$0xff]
        %v1954 = vld [vmem:[%s1942 + $0x80] sm:$0xff]
        %v1955 = vld [vmem:[%s1942 + $0x90] sm:$0xff]
        %v1956 = vld [vmem:[%s1942 + $0x98] sm:$0xff]
        %v1957 = vld [vmem:[%s1942 + $0xa8] sm:$0xff]
        %v1958 = vld [vmem:[%s1942 + $0xb0] sm:$0xff]
        %v1959 = vld [vmem:[%s1942 + $0xc0] sm:$0xff]
        %v1960 = vld [vmem:[%s1942 + $0xc8] sm:$0xff]
        %v1961 = vld [vmem:[%s1942 + $0xd8] sm:$0xff]
        %v1962 = vld [vmem:[%s1942 + $0xe0] sm:$0xff]
        %v1963 = vld [vmem:[%s1942 + $0xf0] sm:$0xff]
        %v1964 = vld [vmem:[%s1942 + $0xf8] sm:$0xff]
        %v1965 = vld [vmem:[%s1942 + $0x108] sm:$0xff]
        %v1966 = vld [vmem:[%s1942 + $0x110] sm:$0xff]
        %v1967 = vld [vmem:[%s1942 + $0x120] sm:$0xff]
        %v1968 = vld [vmem:[%s1942 + $0x128] sm:$0xff]
        %v1969 = vld [vmem:[%s1942 + $0x138] sm:$0xff]
        %v1970 = vld [vmem:[%s1942 + $0x140] sm:$0xff]
        %v1971 = vld [vmem:[%s1942 + $0x150] sm:$0xff]
        %v1972 = vld [vmem:[%s1942 + $0x158] sm:$0xff]
        %v1973 = vld [vmem:[%s1942 + $0x168] sm:$0xff]
        %v1974 = vld [vmem:[%s1942 + $0x170] sm:$0xff]
        %s1975 = scalar_lea.vmem [#allocation6], 384
        %v1976 = vld [vmem:[%s1975] sm:$0xff]
        %v1977 = vld [vmem:[%s1975 + $0x8] sm:$0xff]
        %v1978 = vld [vmem:[%s1975 + $0x10] sm:$0xff]
        %v1979 = vld [vmem:[%s1975 + $0x18] sm:$0xff]
        %v1980 = vld [vmem:[%s1975 + $0x20] sm:$0xff]
        %v1981 = vld [vmem:[%s1975 + $0x28] sm:$0xff]
        %v1982 = vld [vmem:[%s1975 + $0x30] sm:$0xff]
        %v1983 = vld [vmem:[%s1975 + $0x38] sm:$0xff]
        %v1985 = vsel %vm208, %v1943, 0
        %v1988 = vsel %vm208, %v1944, 0
        %v1991 = vsel %vm208, %v1945, 0
        %v1994 = vsel %vm208, %v1946, 0
        %v1997 = vsel %vm208, %v1947, 0
        %v2000 = vsel %vm208, %v1948, 0
        %v2003 = vsel %vm208, %v1949, 0
        %v2006 = vsel %vm208, %v1950, 0
        %v2009 = vsel %vm208, %v1951, 0
        %v2012 = vsel %vm208, %v1952, 0
        %v2015 = vsel %vm208, %v1953, 0
        %v2018 = vsel %vm208, %v1954, 0
        %v2021 = vsel %vm208, %v1955, 0
        %v2024 = vsel %vm208, %v1956, 0
        %v2027 = vsel %vm208, %v1957, 0
        %v2030 = vsel %vm208, %v1958, 0
        %v2033 = vsel %vm208, %v1959, 0
        %v2036 = vsel %vm208, %v1960, 0
        %v2039 = vsel %vm208, %v1961, 0
        %v2042 = vsel %vm208, %v1962, 0
        %v2045 = vsel %vm208, %v1963, 0
        %v2048 = vsel %vm208, %v1964, 0
        %v2051 = vsel %vm208, %v1965, 0
        %v2054 = vsel %vm208, %v1966, 0
        %v2057 = vsel %vm208, %v1967, 0
        %v2060 = vsel %vm208, %v1968, 0
        %v2063 = vsel %vm208, %v1969, 0
        %v2066 = vsel %vm208, %v1970, 0
        %v2069 = vsel %vm208, %v1971, 0
        %v2072 = vsel %vm208, %v1972, 0
        %v2075 = vsel %vm208, %v1973, 0
        %v2078 = vsel %vm208, %v1974, 0
        %2080 = vmatpush.msra.mxu0 0.0
        %2081 = vmatpush.msra.mxu0 0.0
        %2082 = vmatpush.msra.mxu0 0.0
        %2083 = vmatpush.msra.mxu0 0.0
        %2084 = vmatpush.msra.mxu0 0.0
        %2085 = vmatpush.msra.mxu0 0.0
        %2086 = vmatpush.msra.mxu0 0.0
        %2087 = vmatpush.msra.mxu0 0.0
        %2088 = vmatpush.msra.mxu0 %v1983
        %2089 = vmatpush.msra.mxu0 %v1982
        %2090 = vmatpush.msra.mxu0 %v1981
        %2091 = vmatpush.msra.mxu0 %v1980
        %2092 = vmatpush.msra.mxu0 %v1979
        %2093 = vmatpush.msra.mxu0 %v1978
        %2094 = vmatpush.msra.mxu0 %v1977
        %2095 = vmatpush.msra.mxu0 %v1976
        %2096 = vmatmul.f32.gmra.mxu0 %v1985
        %v2097 = vpop.f32.mrf.mxu0
        %v2098 = vadd.f32 0.0, %v2097
        %2099 = vmatmul.f32.gmra.mxu0 %v1988
        %v2100 = vpop.f32.mrf.mxu0
        %v2101 = vadd.f32 0.0, %v2100
        %2102 = vmatmul.f32.gmra.mxu0 %v1991
        %v2103 = vpop.f32.mrf.mxu0
        %v2104 = vadd.f32 0.0, %v2103
        %2105 = vmatmul.f32.gmra.mxu0 %v1994
        %v2106 = vpop.f32.mrf.mxu0
        %v2107 = vadd.f32 0.0, %v2106
        %2108 = vmatmul.f32.gmra.mxu0 %v1997
        %v2109 = vpop.f32.mrf.mxu0
        %v2110 = vadd.f32 0.0, %v2109
        %2111 = vmatmul.f32.gmra.mxu0 %v2000
        %v2112 = vpop.f32.mrf.mxu0
        %v2113 = vadd.f32 0.0, %v2112
        %2114 = vmatmul.f32.gmra.mxu0 %v2003
        %v2115 = vpop.f32.mrf.mxu0
        %v2116 = vadd.f32 0.0, %v2115
        %2117 = vmatmul.f32.gmra.mxu0 %v2006
        %v2118 = vpop.f32.mrf.mxu0
        %v2119 = vadd.f32 0.0, %v2118
        %2120 = vmatmul.f32.gmra.mxu0 %v2009
        %v2121 = vpop.f32.mrf.mxu0
        %v2122 = vadd.f32 0.0, %v2121
        %2123 = vmatmul.f32.gmra.mxu0 %v2012
        %v2124 = vpop.f32.mrf.mxu0
        %v2125 = vadd.f32 0.0, %v2124
        %2126 = vmatmul.f32.gmra.mxu0 %v2015
        %v2127 = vpop.f32.mrf.mxu0
        %v2128 = vadd.f32 0.0, %v2127
        %2129 = vmatmul.f32.gmra.mxu0 %v2018
        %v2130 = vpop.f32.mrf.mxu0
        %v2131 = vadd.f32 0.0, %v2130
        %2132 = vmatmul.f32.gmra.mxu0 %v2021
        %v2133 = vpop.f32.mrf.mxu0
        %v2134 = vadd.f32 0.0, %v2133
        %2135 = vmatmul.f32.gmra.mxu0 %v2024
        %v2136 = vpop.f32.mrf.mxu0
        %v2137 = vadd.f32 0.0, %v2136
        %2138 = vmatmul.f32.gmra.mxu0 %v2027
        %v2139 = vpop.f32.mrf.mxu0
        %v2140 = vadd.f32 0.0, %v2139
        %2141 = vmatmul.f32.gmra.mxu0 %v2030
        %v2142 = vpop.f32.mrf.mxu0
        %v2143 = vadd.f32 0.0, %v2142
        %2144 = vmatmul.f32.gmra.mxu0 %v2033
        %v2145 = vpop.f32.mrf.mxu0
        %v2146 = vadd.f32 0.0, %v2145
        %2147 = vmatmul.f32.gmra.mxu0 %v2036
        %v2148 = vpop.f32.mrf.mxu0
        %v2149 = vadd.f32 0.0, %v2148
        %2150 = vmatmul.f32.gmra.mxu0 %v2039
        %v2151 = vpop.f32.mrf.mxu0
        %v2152 = vadd.f32 0.0, %v2151
        %2153 = vmatmul.f32.gmra.mxu0 %v2042
        %v2154 = vpop.f32.mrf.mxu0
        %v2155 = vadd.f32 0.0, %v2154
        %2156 = vmatmul.f32.gmra.mxu0 %v2045
        %v2157 = vpop.f32.mrf.mxu0
        %v2158 = vadd.f32 0.0, %v2157
        %2159 = vmatmul.f32.gmra.mxu0 %v2048
        %v2160 = vpop.f32.mrf.mxu0
        %v2161 = vadd.f32 0.0, %v2160
        %2162 = vmatmul.f32.gmra.mxu0 %v2051
        %v2163 = vpop.f32.mrf.mxu0
        %v2164 = vadd.f32 0.0, %v2163
        %2165 = vmatmul.f32.gmra.mxu0 %v2054
        %v2166 = vpop.f32.mrf.mxu0
        %v2167 = vadd.f32 0.0, %v2166
        %2168 = vmatmul.f32.gmra.mxu0 %v2057
        %v2169 = vpop.f32.mrf.mxu0
        %v2170 = vadd.f32 0.0, %v2169
        %2171 = vmatmul.f32.gmra.mxu0 %v2060
        %v2172 = vpop.f32.mrf.mxu0
        %v2173 = vadd.f32 0.0, %v2172
        %2174 = vmatmul.f32.gmra.mxu0 %v2063
        %v2175 = vpop.f32.mrf.mxu0
        %v2176 = vadd.f32 0.0, %v2175
        %2177 = vmatmul.f32.gmra.mxu0 %v2066
        %v2178 = vpop.f32.mrf.mxu0
        %v2179 = vadd.f32 0.0, %v2178
        %2180 = vmatmul.f32.gmra.mxu0 %v2069
        %v2181 = vpop.f32.mrf.mxu0
        %v2182 = vadd.f32 0.0, %v2181
        %2183 = vmatmul.f32.gmra.mxu0 %v2072
        %v2184 = vpop.f32.mrf.mxu0
        %v2185 = vadd.f32 0.0, %v2184
        %2186 = vmatmul.f32.gmra.mxu0 %v2075
        %v2187 = vpop.f32.mrf.mxu0
        %v2188 = vadd.f32 0.0, %v2187
        %2189 = vmatmul.f32.gmra.mxu0 %v2078
        %v2190 = vpop.f32.mrf.mxu0
        %v2191 = vadd.f32 0.0, %v2190
        %2192 = vdwg.mxu0
        %v2193 = vadd.f32 %v1910, %v2098
        %v2194 = vadd.f32 %v1911, %v2101
        %v2195 = vadd.f32 %v1912, %v2104
        %v2196 = vadd.f32 %v1913, %v2107
        %v2197 = vadd.f32 %v1914, %v2110
        %v2198 = vadd.f32 %v1915, %v2113
        %v2199 = vadd.f32 %v1916, %v2116
        %v2200 = vadd.f32 %v1917, %v2119
        %v2201 = vadd.f32 %v1918, %v2122
        %v2202 = vadd.f32 %v1919, %v2125
        %v2203 = vadd.f32 %v1920, %v2128
        %v2204 = vadd.f32 %v1921, %v2131
        %v2205 = vadd.f32 %v1922, %v2134
        %v2206 = vadd.f32 %v1923, %v2137
        %v2207 = vadd.f32 %v1924, %v2140
        %v2208 = vadd.f32 %v1925, %v2143
        %v2209 = vadd.f32 %v1926, %v2146
        %v2210 = vadd.f32 %v1927, %v2149
        %v2211 = vadd.f32 %v1928, %v2152
        %v2212 = vadd.f32 %v1929, %v2155
        %v2213 = vadd.f32 %v1930, %v2158
        %v2214 = vadd.f32 %v1931, %v2161
        %v2215 = vadd.f32 %v1932, %v2164
        %v2216 = vadd.f32 %v1933, %v2167
        %v2217 = vadd.f32 %v1934, %v2170
        %v2218 = vadd.f32 %v1935, %v2173
        %v2219 = vadd.f32 %v1936, %v2176
        %v2220 = vadd.f32 %v1937, %v2179
        %v2221 = vadd.f32 %v1938, %v2182
        %v2222 = vadd.f32 %v1939, %v2185
        %v2223 = vadd.f32 %v1940, %v2188
        %v2224 = vadd.f32 %v1941, %v2191
        %v2225 = vld [vmem:[%s1942 + $0x1] sm:$0xff]
        %v2226 = vld [vmem:[%s1942 + $0x9] sm:$0xff]
        %v2227 = vld [vmem:[%s1942 + $0x19] sm:$0xff]
        %v2228 = vld [vmem:[%s1942 + $0x21] sm:$0xff]
        %v2229 = vld [vmem:[%s1942 + $0x31] sm:$0xff]
        %v2230 = vld [vmem:[%s1942 + $0x39] sm:$0xff]
        %v2231 = vld [vmem:[%s1942 + $0x49] sm:$0xff]
        %v2232 = vld [vmem:[%s1942 + $0x51] sm:$0xff]
        %v2233 = vld [vmem:[%s1942 + $0x61] sm:$0xff]
        %v2234 = vld [vmem:[%s1942 + $0x69] sm:$0xff]
        %v2235 = vld [vmem:[%s1942 + $0x79] sm:$0xff]
        %v2236 = vld [vmem:[%s1942 + $0x81] sm:$0xff]
        %v2237 = vld [vmem:[%s1942 + $0x91] sm:$0xff]
        %v2238 = vld [vmem:[%s1942 + $0x99] sm:$0xff]
        %v2239 = vld [vmem:[%s1942 + $0xa9] sm:$0xff]
        %v2240 = vld [vmem:[%s1942 + $0xb1] sm:$0xff]
        %v2241 = vld [vmem:[%s1942 + $0xc1] sm:$0xff]
        %v2242 = vld [vmem:[%s1942 + $0xc9] sm:$0xff]
        %v2243 = vld [vmem:[%s1942 + $0xd9] sm:$0xff]
        %v2244 = vld [vmem:[%s1942 + $0xe1] sm:$0xff]
        %v2245 = vld [vmem:[%s1942 + $0xf1] sm:$0xff]
        %v2246 = vld [vmem:[%s1942 + $0xf9] sm:$0xff]
        %v2247 = vld [vmem:[%s1942 + $0x109] sm:$0xff]
        %v2248 = vld [vmem:[%s1942 + $0x111] sm:$0xff]
        %v2249 = vld [vmem:[%s1942 + $0x121] sm:$0xff]
        %v2250 = vld [vmem:[%s1942 + $0x129] sm:$0xff]
        %v2251 = vld [vmem:[%s1942 + $0x139] sm:$0xff]
        %v2252 = vld [vmem:[%s1942 + $0x141] sm:$0xff]
        %v2253 = vld [vmem:[%s1942 + $0x151] sm:$0xff]
        %v2254 = vld [vmem:[%s1942 + $0x159] sm:$0xff]
        %v2255 = vld [vmem:[%s1942 + $0x169] sm:$0xff]
        %v2256 = vld [vmem:[%s1942 + $0x171] sm:$0xff]
        %s2257 = scalar_lea.vmem [#allocation6], 448
        %v2258 = vld [vmem:[%s2257] sm:$0xff]
        %v2259 = vld [vmem:[%s2257 + $0x8] sm:$0xff]
        %v2260 = vld [vmem:[%s2257 + $0x10] sm:$0xff]
        %v2261 = vld [vmem:[%s2257 + $0x18] sm:$0xff]
        %v2262 = vld [vmem:[%s2257 + $0x20] sm:$0xff]
        %v2263 = vld [vmem:[%s2257 + $0x28] sm:$0xff]
        %v2264 = vld [vmem:[%s2257 + $0x30] sm:$0xff]
        %v2265 = vld [vmem:[%s2257 + $0x38] sm:$0xff]
        %v2267 = vsel %vm208, %v2225, 0
        %v2270 = vsel %vm208, %v2226, 0
        %v2273 = vsel %vm208, %v2227, 0
        %v2276 = vsel %vm208, %v2228, 0
        %v2279 = vsel %vm208, %v2229, 0
        %v2282 = vsel %vm208, %v2230, 0
        %v2285 = vsel %vm208, %v2231, 0
        %v2288 = vsel %vm208, %v2232, 0
        %v2291 = vsel %vm208, %v2233, 0
        %v2294 = vsel %vm208, %v2234, 0
        %v2297 = vsel %vm208, %v2235, 0
        %v2300 = vsel %vm208, %v2236, 0
        %v2303 = vsel %vm208, %v2237, 0
        %v2306 = vsel %vm208, %v2238, 0
        %v2309 = vsel %vm208, %v2239, 0
        %v2312 = vsel %vm208, %v2240, 0
        %v2315 = vsel %vm208, %v2241, 0
        %v2318 = vsel %vm208, %v2242, 0
        %v2321 = vsel %vm208, %v2243, 0
        %v2324 = vsel %vm208, %v2244, 0
        %v2327 = vsel %vm208, %v2245, 0
        %v2330 = vsel %vm208, %v2246, 0
        %v2333 = vsel %vm208, %v2247, 0
        %v2336 = vsel %vm208, %v2248, 0
        %v2339 = vsel %vm208, %v2249, 0
        %v2342 = vsel %vm208, %v2250, 0
        %v2345 = vsel %vm208, %v2251, 0
        %v2348 = vsel %vm208, %v2252, 0
        %v2351 = vsel %vm208, %v2253, 0
        %v2354 = vsel %vm208, %v2254, 0
        %v2357 = vsel %vm208, %v2255, 0
        %v2360 = vsel %vm208, %v2256, 0
        %2362 = vmatpush.msra.mxu0 0.0
        %2363 = vmatpush.msra.mxu0 0.0
        %2364 = vmatpush.msra.mxu0 0.0
        %2365 = vmatpush.msra.mxu0 0.0
        %2366 = vmatpush.msra.mxu0 0.0
        %2367 = vmatpush.msra.mxu0 0.0
        %2368 = vmatpush.msra.mxu0 0.0
        %2369 = vmatpush.msra.mxu0 0.0
        %2370 = vmatpush.msra.mxu0 %v2265
        %2371 = vmatpush.msra.mxu0 %v2264
        %2372 = vmatpush.msra.mxu0 %v2263
        %2373 = vmatpush.msra.mxu0 %v2262
        %2374 = vmatpush.msra.mxu0 %v2261
        %2375 = vmatpush.msra.mxu0 %v2260
        %2376 = vmatpush.msra.mxu0 %v2259
        %2377 = vmatpush.msra.mxu0 %v2258
        %2378 = vmatmul.f32.gmra.mxu0 %v2267
        %v2379 = vpop.f32.mrf.mxu0
        %v2380 = vadd.f32 0.0, %v2379
        %2381 = vmatmul.f32.gmra.mxu0 %v2270
        %v2382 = vpop.f32.mrf.mxu0
        %v2383 = vadd.f32 0.0, %v2382
        %2384 = vmatmul.f32.gmra.mxu0 %v2273
        %v2385 = vpop.f32.mrf.mxu0
        %v2386 = vadd.f32 0.0, %v2385
        %2387 = vmatmul.f32.gmra.mxu0 %v2276
        %v2388 = vpop.f32.mrf.mxu0
        %v2389 = vadd.f32 0.0, %v2388
        %2390 = vmatmul.f32.gmra.mxu0 %v2279
        %v2391 = vpop.f32.mrf.mxu0
        %v2392 = vadd.f32 0.0, %v2391
        %2393 = vmatmul.f32.gmra.mxu0 %v2282
        %v2394 = vpop.f32.mrf.mxu0
        %v2395 = vadd.f32 0.0, %v2394
        %2396 = vmatmul.f32.gmra.mxu0 %v2285
        %v2397 = vpop.f32.mrf.mxu0
        %v2398 = vadd.f32 0.0, %v2397
        %2399 = vmatmul.f32.gmra.mxu0 %v2288
        %v2400 = vpop.f32.mrf.mxu0
        %v2401 = vadd.f32 0.0, %v2400
        %2402 = vmatmul.f32.gmra.mxu0 %v2291
        %v2403 = vpop.f32.mrf.mxu0
        %v2404 = vadd.f32 0.0, %v2403
        %2405 = vmatmul.f32.gmra.mxu0 %v2294
        %v2406 = vpop.f32.mrf.mxu0
        %v2407 = vadd.f32 0.0, %v2406
        %2408 = vmatmul.f32.gmra.mxu0 %v2297
        %v2409 = vpop.f32.mrf.mxu0
        %v2410 = vadd.f32 0.0, %v2409
        %2411 = vmatmul.f32.gmra.mxu0 %v2300
        %v2412 = vpop.f32.mrf.mxu0
        %v2413 = vadd.f32 0.0, %v2412
        %2414 = vmatmul.f32.gmra.mxu0 %v2303
        %v2415 = vpop.f32.mrf.mxu0
        %v2416 = vadd.f32 0.0, %v2415
        %2417 = vmatmul.f32.gmra.mxu0 %v2306
        %v2418 = vpop.f32.mrf.mxu0
        %v2419 = vadd.f32 0.0, %v2418
        %2420 = vmatmul.f32.gmra.mxu0 %v2309
        %v2421 = vpop.f32.mrf.mxu0
        %v2422 = vadd.f32 0.0, %v2421
        %2423 = vmatmul.f32.gmra.mxu0 %v2312
        %v2424 = vpop.f32.mrf.mxu0
        %v2425 = vadd.f32 0.0, %v2424
        %2426 = vmatmul.f32.gmra.mxu0 %v2315
        %v2427 = vpop.f32.mrf.mxu0
        %v2428 = vadd.f32 0.0, %v2427
        %2429 = vmatmul.f32.gmra.mxu0 %v2318
        %v2430 = vpop.f32.mrf.mxu0
        %v2431 = vadd.f32 0.0, %v2430
        %2432 = vmatmul.f32.gmra.mxu0 %v2321
        %v2433 = vpop.f32.mrf.mxu0
        %v2434 = vadd.f32 0.0, %v2433
        %2435 = vmatmul.f32.gmra.mxu0 %v2324
        %v2436 = vpop.f32.mrf.mxu0
        %v2437 = vadd.f32 0.0, %v2436
        %2438 = vmatmul.f32.gmra.mxu0 %v2327
        %v2439 = vpop.f32.mrf.mxu0
        %v2440 = vadd.f32 0.0, %v2439
        %2441 = vmatmul.f32.gmra.mxu0 %v2330
        %v2442 = vpop.f32.mrf.mxu0
        %v2443 = vadd.f32 0.0, %v2442
        %2444 = vmatmul.f32.gmra.mxu0 %v2333
        %v2445 = vpop.f32.mrf.mxu0
        %v2446 = vadd.f32 0.0, %v2445
        %2447 = vmatmul.f32.gmra.mxu0 %v2336
        %v2448 = vpop.f32.mrf.mxu0
        %v2449 = vadd.f32 0.0, %v2448
        %2450 = vmatmul.f32.gmra.mxu0 %v2339
        %v2451 = vpop.f32.mrf.mxu0
        %v2452 = vadd.f32 0.0, %v2451
        %2453 = vmatmul.f32.gmra.mxu0 %v2342
        %v2454 = vpop.f32.mrf.mxu0
        %v2455 = vadd.f32 0.0, %v2454
        %2456 = vmatmul.f32.gmra.mxu0 %v2345
        %v2457 = vpop.f32.mrf.mxu0
        %v2458 = vadd.f32 0.0, %v2457
        %2459 = vmatmul.f32.gmra.mxu0 %v2348
        %v2460 = vpop.f32.mrf.mxu0
        %v2461 = vadd.f32 0.0, %v2460
        %2462 = vmatmul.f32.gmra.mxu0 %v2351
        %v2463 = vpop.f32.mrf.mxu0
        %v2464 = vadd.f32 0.0, %v2463
        %2465 = vmatmul.f32.gmra.mxu0 %v2354
        %v2466 = vpop.f32.mrf.mxu0
        %v2467 = vadd.f32 0.0, %v2466
        %2468 = vmatmul.f32.gmra.mxu0 %v2357
        %v2469 = vpop.f32.mrf.mxu0
        %v2470 = vadd.f32 0.0, %v2469
        %2471 = vmatmul.f32.gmra.mxu0 %v2360
        %v2472 = vpop.f32.mrf.mxu0
        %v2473 = vadd.f32 0.0, %v2472
        %2474 = vdwg.mxu0
        %v2475 = vadd.f32 %v2193, %v2380
        %v2476 = vadd.f32 %v2194, %v2383
        %v2477 = vadd.f32 %v2195, %v2386
        %v2478 = vadd.f32 %v2196, %v2389
        %v2479 = vadd.f32 %v2197, %v2392
        %v2480 = vadd.f32 %v2198, %v2395
        %v2481 = vadd.f32 %v2199, %v2398
        %v2482 = vadd.f32 %v2200, %v2401
        %v2483 = vadd.f32 %v2201, %v2404
        %v2484 = vadd.f32 %v2202, %v2407
        %v2485 = vadd.f32 %v2203, %v2410
        %v2486 = vadd.f32 %v2204, %v2413
        %v2487 = vadd.f32 %v2205, %v2416
        %v2488 = vadd.f32 %v2206, %v2419
        %v2489 = vadd.f32 %v2207, %v2422
        %v2490 = vadd.f32 %v2208, %v2425
        %v2491 = vadd.f32 %v2209, %v2428
        %v2492 = vadd.f32 %v2210, %v2431
        %v2493 = vadd.f32 %v2211, %v2434
        %v2494 = vadd.f32 %v2212, %v2437
        %v2495 = vadd.f32 %v2213, %v2440
        %v2496 = vadd.f32 %v2214, %v2443
        %v2497 = vadd.f32 %v2215, %v2446
        %v2498 = vadd.f32 %v2216, %v2449
        %v2499 = vadd.f32 %v2217, %v2452
        %v2500 = vadd.f32 %v2218, %v2455
        %v2501 = vadd.f32 %v2219, %v2458
        %v2502 = vadd.f32 %v2220, %v2461
        %v2503 = vadd.f32 %v2221, %v2464
        %v2504 = vadd.f32 %v2222, %v2467
        %v2505 = vadd.f32 %v2223, %v2470
        %v2506 = vadd.f32 %v2224, %v2473
        %v2507 = vld [vmem:[%s1942 + $0x2] sm:$0xff]
        %v2508 = vld [vmem:[%s1942 + $0xa] sm:$0xff]
        %v2509 = vld [vmem:[%s1942 + $0x1a] sm:$0xff]
        %v2510 = vld [vmem:[%s1942 + $0x22] sm:$0xff]
        %v2511 = vld [vmem:[%s1942 + $0x32] sm:$0xff]
        %v2512 = vld [vmem:[%s1942 + $0x3a] sm:$0xff]
        %v2513 = vld [vmem:[%s1942 + $0x4a] sm:$0xff]
        %v2514 = vld [vmem:[%s1942 + $0x52] sm:$0xff]
        %v2515 = vld [vmem:[%s1942 + $0x62] sm:$0xff]
        %v2516 = vld [vmem:[%s1942 + $0x6a] sm:$0xff]
        %v2517 = vld [vmem:[%s1942 + $0x7a] sm:$0xff]
        %v2518 = vld [vmem:[%s1942 + $0x82] sm:$0xff]
        %v2519 = vld [vmem:[%s1942 + $0x92] sm:$0xff]
        %v2520 = vld [vmem:[%s1942 + $0x9a] sm:$0xff]
        %v2521 = vld [vmem:[%s1942 + $0xaa] sm:$0xff]
        %v2522 = vld [vmem:[%s1942 + $0xb2] sm:$0xff]
        %v2523 = vld [vmem:[%s1942 + $0xc2] sm:$0xff]
        %v2524 = vld [vmem:[%s1942 + $0xca] sm:$0xff]
        %v2525 = vld [vmem:[%s1942 + $0xda] sm:$0xff]
        %v2526 = vld [vmem:[%s1942 + $0xe2] sm:$0xff]
        %v2527 = vld [vmem:[%s1942 + $0xf2] sm:$0xff]
        %v2528 = vld [vmem:[%s1942 + $0xfa] sm:$0xff]
        %v2529 = vld [vmem:[%s1942 + $0x10a] sm:$0xff]
        %v2530 = vld [vmem:[%s1942 + $0x112] sm:$0xff]
        %v2531 = vld [vmem:[%s1942 + $0x122] sm:$0xff]
        %v2532 = vld [vmem:[%s1942 + $0x12a] sm:$0xff]
        %v2533 = vld [vmem:[%s1942 + $0x13a] sm:$0xff]
        %v2534 = vld [vmem:[%s1942 + $0x142] sm:$0xff]
        %v2535 = vld [vmem:[%s1942 + $0x152] sm:$0xff]
        %v2536 = vld [vmem:[%s1942 + $0x15a] sm:$0xff]
        %v2537 = vld [vmem:[%s1942 + $0x16a] sm:$0xff]
        %v2538 = vld [vmem:[%s1942 + $0x172] sm:$0xff]
        %s2539 = scalar_lea.vmem [#allocation6], 512
        %v2540 = vld [vmem:[%s2539] sm:$0xff]
        %v2541 = vld [vmem:[%s2539 + $0x8] sm:$0xff]
        %v2542 = vld [vmem:[%s2539 + $0x10] sm:$0xff]
        %v2543 = vld [vmem:[%s2539 + $0x18] sm:$0xff]
        %v2544 = vld [vmem:[%s2539 + $0x20] sm:$0xff]
        %v2545 = vld [vmem:[%s2539 + $0x28] sm:$0xff]
        %v2546 = vld [vmem:[%s2539 + $0x30] sm:$0xff]
        %v2547 = vld [vmem:[%s2539 + $0x38] sm:$0xff]
        %v2549 = vsel %vm208, %v2507, 0
        %v2552 = vsel %vm208, %v2508, 0
        %v2555 = vsel %vm208, %v2509, 0
        %v2558 = vsel %vm208, %v2510, 0
        %v2561 = vsel %vm208, %v2511, 0
        %v2564 = vsel %vm208, %v2512, 0
        %v2567 = vsel %vm208, %v2513, 0
        %v2570 = vsel %vm208, %v2514, 0
        %v2573 = vsel %vm208, %v2515, 0
        %v2576 = vsel %vm208, %v2516, 0
        %v2579 = vsel %vm208, %v2517, 0
        %v2582 = vsel %vm208, %v2518, 0
        %v2585 = vsel %vm208, %v2519, 0
        %v2588 = vsel %vm208, %v2520, 0
        %v2591 = vsel %vm208, %v2521, 0
        %v2594 = vsel %vm208, %v2522, 0
        %v2597 = vsel %vm208, %v2523, 0
        %v2600 = vsel %vm208, %v2524, 0
        %v2603 = vsel %vm208, %v2525, 0
        %v2606 = vsel %vm208, %v2526, 0
        %v2609 = vsel %vm208, %v2527, 0
        %v2612 = vsel %vm208, %v2528, 0
        %v2615 = vsel %vm208, %v2529, 0
        %v2618 = vsel %vm208, %v2530, 0
        %v2621 = vsel %vm208, %v2531, 0
        %v2624 = vsel %vm208, %v2532, 0
        %v2627 = vsel %vm208, %v2533, 0
        %v2630 = vsel %vm208, %v2534, 0
        %v2633 = vsel %vm208, %v2535, 0
        %v2636 = vsel %vm208, %v2536, 0
        %v2639 = vsel %vm208, %v2537, 0
        %v2642 = vsel %vm208, %v2538, 0
        %2644 = vmatpush.msra.mxu0 0.0
        %2645 = vmatpush.msra.mxu0 0.0
        %2646 = vmatpush.msra.mxu0 0.0
        %2647 = vmatpush.msra.mxu0 0.0
        %2648 = vmatpush.msra.mxu0 0.0
        %2649 = vmatpush.msra.mxu0 0.0
        %2650 = vmatpush.msra.mxu0 0.0
        %2651 = vmatpush.msra.mxu0 0.0
        %2652 = vmatpush.msra.mxu0 %v2547
        %2653 = vmatpush.msra.mxu0 %v2546
        %2654 = vmatpush.msra.mxu0 %v2545
        %2655 = vmatpush.msra.mxu0 %v2544
        %2656 = vmatpush.msra.mxu0 %v2543
        %2657 = vmatpush.msra.mxu0 %v2542
        %2658 = vmatpush.msra.mxu0 %v2541
        %2659 = vmatpush.msra.mxu0 %v2540
        %2660 = vmatmul.f32.gmra.mxu0 %v2549
        %v2661 = vpop.f32.mrf.mxu0
        %v2662 = vadd.f32 0.0, %v2661
        %2663 = vmatmul.f32.gmra.mxu0 %v2552
        %v2664 = vpop.f32.mrf.mxu0
        %v2665 = vadd.f32 0.0, %v2664
        %2666 = vmatmul.f32.gmra.mxu0 %v2555
        %v2667 = vpop.f32.mrf.mxu0
        %v2668 = vadd.f32 0.0, %v2667
        %2669 = vmatmul.f32.gmra.mxu0 %v2558
        %v2670 = vpop.f32.mrf.mxu0
        %v2671 = vadd.f32 0.0, %v2670
        %2672 = vmatmul.f32.gmra.mxu0 %v2561
        %v2673 = vpop.f32.mrf.mxu0
        %v2674 = vadd.f32 0.0, %v2673
        %2675 = vmatmul.f32.gmra.mxu0 %v2564
        %v2676 = vpop.f32.mrf.mxu0
        %v2677 = vadd.f32 0.0, %v2676
        %2678 = vmatmul.f32.gmra.mxu0 %v2567
        %v2679 = vpop.f32.mrf.mxu0
        %v2680 = vadd.f32 0.0, %v2679
        %2681 = vmatmul.f32.gmra.mxu0 %v2570
        %v2682 = vpop.f32.mrf.mxu0
        %v2683 = vadd.f32 0.0, %v2682
        %2684 = vmatmul.f32.gmra.mxu0 %v2573
        %v2685 = vpop.f32.mrf.mxu0
        %v2686 = vadd.f32 0.0, %v2685
        %2687 = vmatmul.f32.gmra.mxu0 %v2576
        %v2688 = vpop.f32.mrf.mxu0
        %v2689 = vadd.f32 0.0, %v2688
        %2690 = vmatmul.f32.gmra.mxu0 %v2579
        %v2691 = vpop.f32.mrf.mxu0
        %v2692 = vadd.f32 0.0, %v2691
        %2693 = vmatmul.f32.gmra.mxu0 %v2582
        %v2694 = vpop.f32.mrf.mxu0
        %v2695 = vadd.f32 0.0, %v2694
        %2696 = vmatmul.f32.gmra.mxu0 %v2585
        %v2697 = vpop.f32.mrf.mxu0
        %v2698 = vadd.f32 0.0, %v2697
        %2699 = vmatmul.f32.gmra.mxu0 %v2588
        %v2700 = vpop.f32.mrf.mxu0
        %v2701 = vadd.f32 0.0, %v2700
        %2702 = vmatmul.f32.gmra.mxu0 %v2591
        %v2703 = vpop.f32.mrf.mxu0
        %v2704 = vadd.f32 0.0, %v2703
        %2705 = vmatmul.f32.gmra.mxu0 %v2594
        %v2706 = vpop.f32.mrf.mxu0
        %v2707 = vadd.f32 0.0, %v2706
        %2708 = vmatmul.f32.gmra.mxu0 %v2597
        %v2709 = vpop.f32.mrf.mxu0
        %v2710 = vadd.f32 0.0, %v2709
        %2711 = vmatmul.f32.gmra.mxu0 %v2600
        %v2712 = vpop.f32.mrf.mxu0
        %v2713 = vadd.f32 0.0, %v2712
        %2714 = vmatmul.f32.gmra.mxu0 %v2603
        %v2715 = vpop.f32.mrf.mxu0
        %v2716 = vadd.f32 0.0, %v2715
        %2717 = vmatmul.f32.gmra.mxu0 %v2606
        %v2718 = vpop.f32.mrf.mxu0
        %v2719 = vadd.f32 0.0, %v2718
        %2720 = vmatmul.f32.gmra.mxu0 %v2609
        %v2721 = vpop.f32.mrf.mxu0
        %v2722 = vadd.f32 0.0, %v2721
        %2723 = vmatmul.f32.gmra.mxu0 %v2612
        %v2724 = vpop.f32.mrf.mxu0
        %v2725 = vadd.f32 0.0, %v2724
        %2726 = vmatmul.f32.gmra.mxu0 %v2615
        %v2727 = vpop.f32.mrf.mxu0
        %v2728 = vadd.f32 0.0, %v2727
        %2729 = vmatmul.f32.gmra.mxu0 %v2618
        %v2730 = vpop.f32.mrf.mxu0
        %v2731 = vadd.f32 0.0, %v2730
        %2732 = vmatmul.f32.gmra.mxu0 %v2621
        %v2733 = vpop.f32.mrf.mxu0
        %v2734 = vadd.f32 0.0, %v2733
        %2735 = vmatmul.f32.gmra.mxu0 %v2624
        %v2736 = vpop.f32.mrf.mxu0
        %v2737 = vadd.f32 0.0, %v2736
        %2738 = vmatmul.f32.gmra.mxu0 %v2627
        %v2739 = vpop.f32.mrf.mxu0
        %v2740 = vadd.f32 0.0, %v2739
        %2741 = vmatmul.f32.gmra.mxu0 %v2630
        %v2742 = vpop.f32.mrf.mxu0
        %v2743 = vadd.f32 0.0, %v2742
        %2744 = vmatmul.f32.gmra.mxu0 %v2633
        %v2745 = vpop.f32.mrf.mxu0
        %v2746 = vadd.f32 0.0, %v2745
        %2747 = vmatmul.f32.gmra.mxu0 %v2636
        %v2748 = vpop.f32.mrf.mxu0
        %v2749 = vadd.f32 0.0, %v2748
        %2750 = vmatmul.f32.gmra.mxu0 %v2639
        %v2751 = vpop.f32.mrf.mxu0
        %v2752 = vadd.f32 0.0, %v2751
        %2753 = vmatmul.f32.gmra.mxu0 %v2642
        %v2754 = vpop.f32.mrf.mxu0
        %v2755 = vadd.f32 0.0, %v2754
        %2756 = vdwg.mxu0
        %v2757 = vadd.f32 %v2475, %v2662
        %v2758 = vadd.f32 %v2476, %v2665
        %v2759 = vadd.f32 %v2477, %v2668
        %v2760 = vadd.f32 %v2478, %v2671
        %v2761 = vadd.f32 %v2479, %v2674
        %v2762 = vadd.f32 %v2480, %v2677
        %v2763 = vadd.f32 %v2481, %v2680
        %v2764 = vadd.f32 %v2482, %v2683
        %v2765 = vadd.f32 %v2483, %v2686
        %v2766 = vadd.f32 %v2484, %v2689
        %v2767 = vadd.f32 %v2485, %v2692
        %v2768 = vadd.f32 %v2486, %v2695
        %v2769 = vadd.f32 %v2487, %v2698
        %v2770 = vadd.f32 %v2488, %v2701
        %v2771 = vadd.f32 %v2489, %v2704
        %v2772 = vadd.f32 %v2490, %v2707
        %v2773 = vadd.f32 %v2491, %v2710
        %v2774 = vadd.f32 %v2492, %v2713
        %v2775 = vadd.f32 %v2493, %v2716
        %v2776 = vadd.f32 %v2494, %v2719
        %v2777 = vadd.f32 %v2495, %v2722
        %v2778 = vadd.f32 %v2496, %v2725
        %v2779 = vadd.f32 %v2497, %v2728
        %v2780 = vadd.f32 %v2498, %v2731
        %v2781 = vadd.f32 %v2499, %v2734
        %v2782 = vadd.f32 %v2500, %v2737
        %v2783 = vadd.f32 %v2501, %v2740
        %v2784 = vadd.f32 %v2502, %v2743
        %v2785 = vadd.f32 %v2503, %v2746
        %v2786 = vadd.f32 %v2504, %v2749
        %v2787 = vadd.f32 %v2505, %v2752
        %v2788 = vadd.f32 %v2506, %v2755
        %v2789 = vld [vmem:[%s2] sm:$0x1]
        %v2791 = vperm.slane %v2789, 0
        %v2793 = vadd.f32 %v2757, %v2791
        %v2794 = vadd.f32 %v2758, %v2791
        %v2795 = vadd.f32 %v2759, %v2791
        %v2796 = vadd.f32 %v2760, %v2791
        %v2797 = vadd.f32 %v2761, %v2791
        %v2798 = vadd.f32 %v2762, %v2791
        %v2799 = vadd.f32 %v2763, %v2791
        %v2800 = vadd.f32 %v2764, %v2791
        %v2801 = vadd.f32 %v2765, %v2791
        %v2802 = vadd.f32 %v2766, %v2791
        %v2803 = vadd.f32 %v2767, %v2791
        %v2804 = vadd.f32 %v2768, %v2791
        %v2805 = vadd.f32 %v2769, %v2791
        %v2806 = vadd.f32 %v2770, %v2791
        %v2807 = vadd.f32 %v2771, %v2791
        %v2808 = vadd.f32 %v2772, %v2791
        %v2809 = vadd.f32 %v2773, %v2791
        %v2810 = vadd.f32 %v2774, %v2791
        %v2811 = vadd.f32 %v2775, %v2791
        %v2812 = vadd.f32 %v2776, %v2791
        %v2813 = vadd.f32 %v2777, %v2791
        %v2814 = vadd.f32 %v2778, %v2791
        %v2815 = vadd.f32 %v2779, %v2791
        %v2816 = vadd.f32 %v2780, %v2791
        %v2817 = vadd.f32 %v2781, %v2791
        %v2818 = vadd.f32 %v2782, %v2791
        %v2819 = vadd.f32 %v2783, %v2791
        %v2820 = vadd.f32 %v2784, %v2791
        %v2821 = vadd.f32 %v2785, %v2791
        %v2822 = vadd.f32 %v2786, %v2791
        %v2823 = vadd.f32 %v2787, %v2791
        %v2824 = vadd.f32 %v2788, %v2791
        %v2825 = vmax.f32 %v2793, 0.0
        %v2826 = vmax.f32 %v2794, 0.0
        %v2827 = vmax.f32 %v2795, 0.0
        %v2828 = vmax.f32 %v2796, 0.0
        %v2829 = vmax.f32 %v2797, 0.0
        %v2830 = vmax.f32 %v2798, 0.0
        %v2831 = vmax.f32 %v2799, 0.0
        %v2832 = vmax.f32 %v2800, 0.0
        %v2833 = vmax.f32 %v2801, 0.0
        %v2834 = vmax.f32 %v2802, 0.0
        %v2835 = vmax.f32 %v2803, 0.0
        %v2836 = vmax.f32 %v2804, 0.0
        %v2837 = vmax.f32 %v2805, 0.0
        %v2838 = vmax.f32 %v2806, 0.0
        %v2839 = vmax.f32 %v2807, 0.0
        %v2840 = vmax.f32 %v2808, 0.0
        %v2841 = vmax.f32 %v2809, 0.0
        %v2842 = vmax.f32 %v2810, 0.0
        %v2843 = vmax.f32 %v2811, 0.0
        %v2844 = vmax.f32 %v2812, 0.0
        %v2845 = vmax.f32 %v2813, 0.0
        %v2846 = vmax.f32 %v2814, 0.0
        %v2847 = vmax.f32 %v2815, 0.0
        %v2848 = vmax.f32 %v2816, 0.0
        %v2849 = vmax.f32 %v2817, 0.0
        %v2850 = vmax.f32 %v2818, 0.0
        %v2851 = vmax.f32 %v2819, 0.0
        %v2852 = vmax.f32 %v2820, 0.0
        %v2853 = vmax.f32 %v2821, 0.0
        %v2854 = vmax.f32 %v2822, 0.0
        %v2855 = vmax.f32 %v2823, 0.0
        %v2856 = vmax.f32 %v2824, 0.0
        %2857 = vst.msk [vmem:[%s207] sm:$0xff] %vm208, %v2825
        %2858 = vst.msk [vmem:[%s207 + $0x8] sm:$0xff] %vm208, %v2826
        %2859 = vst.msk [vmem:[%s207 + $0x10] sm:$0xff] %vm208, %v2827
        %2860 = vst.msk [vmem:[%s207 + $0x18] sm:$0xff] %vm208, %v2828
        %2861 = vst.msk [vmem:[%s207 + $0x20] sm:$0xff] %vm208, %v2829
        %2862 = vst.msk [vmem:[%s207 + $0x28] sm:$0xff] %vm208, %v2830
        %2863 = vst.msk [vmem:[%s207 + $0x30] sm:$0xff] %vm208, %v2831
        %2864 = vst.msk [vmem:[%s207 + $0x38] sm:$0xff] %vm208, %v2832
        %2865 = vst.msk [vmem:[%s207 + $0x40] sm:$0xff] %vm208, %v2833
        %2866 = vst.msk [vmem:[%s207 + $0x48] sm:$0xff] %vm208, %v2834
        %2867 = vst.msk [vmem:[%s207 + $0x50] sm:$0xff] %vm208, %v2835
        %2868 = vst.msk [vmem:[%s207 + $0x58] sm:$0xff] %vm208, %v2836
        %2869 = vst.msk [vmem:[%s207 + $0x60] sm:$0xff] %vm208, %v2837
        %2870 = vst.msk [vmem:[%s207 + $0x68] sm:$0xff] %vm208, %v2838
        %2871 = vst.msk [vmem:[%s207 + $0x70] sm:$0xff] %vm208, %v2839
        %2872 = vst.msk [vmem:[%s207 + $0x78] sm:$0xff] %vm208, %v2840
        %2873 = vst.msk [vmem:[%s207 + $0x80] sm:$0xff] %vm208, %v2841
        %2874 = vst.msk [vmem:[%s207 + $0x88] sm:$0xff] %vm208, %v2842
        %2875 = vst.msk [vmem:[%s207 + $0x90] sm:$0xff] %vm208, %v2843
        %2876 = vst.msk [vmem:[%s207 + $0x98] sm:$0xff] %vm208, %v2844
        %2877 = vst.msk [vmem:[%s207 + $0xa0] sm:$0xff] %vm208, %v2845
        %2878 = vst.msk [vmem:[%s207 + $0xa8] sm:$0xff] %vm208, %v2846
        %2879 = vst.msk [vmem:[%s207 + $0xb0] sm:$0xff] %vm208, %v2847
        %2880 = vst.msk [vmem:[%s207 + $0xb8] sm:$0xff] %vm208, %v2848
        %2881 = vst.msk [vmem:[%s207 + $0xc0] sm:$0xff] %vm208, %v2849
        %2882 = vst.msk [vmem:[%s207 + $0xc8] sm:$0xff] %vm208, %v2850
        %2883 = vst.msk [vmem:[%s207 + $0xd0] sm:$0xff] %vm208, %v2851
        %2884 = vst.msk [vmem:[%s207 + $0xd8] sm:$0xff] %vm208, %v2852
        %2885 = vst.msk [vmem:[%s207 + $0xe0] sm:$0xff] %vm208, %v2853
        %2886 = vst.msk [vmem:[%s207 + $0xe8] sm:$0xff] %vm208, %v2854
        %2887 = vst.msk [vmem:[%s207 + $0xf0] sm:$0xff] %vm208, %v2855
        %2888 = vst.msk [vmem:[%s207 + $0xf8] sm:$0xff] %vm208, %v2856
        %s2889 = sand.u32 %s97, 1
        %s2890 = scalar_lea.sflag [#allocation5], %s2889
        %s2891 = sand.u32 %s97, 1
        %s2892 = smul.addr %s2891, 256
        %s2893 = scalar_lea.vmem [#allocation8], %s2892
        // Predicated region
        $region41: #{tpu_custom_call.1} parent=31 // pred_check
          %p2894 = pneg %p107
        $region42: #{tpu_custom_call.1} parent=31 // pred_check_branch
          %2896 = sbr.rel (%p2894) target = $region44
        $region43: #{tpu_custom_call.1} parent=31 // pred_region
          %2898 = vsyncadd %s2890, 0
          %s2899 = smul.addr %s21, 32
          %s2900 = smul.addr %s2899, 8
          %s2901 = scalar_lea.hbm %s3, %s2900
          %s2902 = sshll.u32 %s2893, 4
          %s2903 = int_to_ptr.vmem [resolvable:$true] %s2902
          %s2904 = sshll.u32 %s2901, 4
          %s2905 = int_to_ptr.hbm [resolvable:$true] %s2904
          %2910 = dma.vmem_to_hbm [thread:$0]  %s2903, 4096, %s2905, %s2890, 128, 128, 8
        $region44: #{tpu_custom_call.1} parent=31 // pred_fallthru
          _
      $region32: #{tpu_custom_call.1} parent=5 // pred_fallthru
        _
      %p2911 = scmp.le.s32.totalorder 2, %s16
      // Predicated region
      $region45: #{tpu_custom_call.1} parent=5 // pred_check
        %p2912 = pneg %p2911
      $region46: #{tpu_custom_call.1} parent=5 // pred_check_branch
        %2914 = sbr.rel (%p2912) target = $region48
      $region47: #{tpu_custom_call.1} parent=5 // pred_region
        %s2915 = ssub.s32 %s16, 2
        // Predicated region
        $region49: #{tpu_custom_call.1} parent=47 // pred_check
          %p2916 = pneg %p113
        $region50: #{tpu_custom_call.1} parent=47 // pred_check_branch
          %2918 = sbr.rel (%p2916) target = $region52
        $region51: #{tpu_custom_call.1} parent=47 // pred_region
          %s2919 = sand.u32 %s98, 1
          %s2920 = scalar_lea.sflag [#allocation5], %s2919
          %s2921 = sand.u32 %s98, 1
          %s2922 = smul.addr %s2921, 256
          %s2923 = scalar_lea.vmem [#allocation8], %s2922
          %2925 = dma.done %s2920, 4096
        $region52: #{tpu_custom_call.1} parent=47 // pred_fallthru
          _
      $region48: #{tpu_custom_call.1} parent=5 // pred_fallthru
        _
    $region6: #{tpu_custom_call.1} parent=1 // loop_footer
      %s20 = sadd.s32 1, %s16
    $region7: #{tpu_custom_call.1} parent=1 // loop_footer_branch
      %15 = sbr.rel target = $region3
    $region8: #{tpu_custom_call.1} parent=1 // loop_exit
      _
    %2926 = vsyncpa [#allocation4], 1
    %s2927 = scalar_lea.sflag [#allocation4], 1
    %2928 = vsyncpa %s2927, 1
    %2929 = vsyncpa [#allocation7], 1
    %2930 = vsyncpa [#allocation5], 1
    %s2931 = scalar_lea.sflag [#allocation5], 1
    %2932 = vsyncpa %s2931, 1

</llo_original>
